<compile_context>
chip_gen: v5e
topology: v5e:2x2
jax: 0.10.0
libtpu: 0.0.40
codegen_flags: <defaults>
</compile_context>

<pallas_src>
import functools
import math

import jax
import jax.numpy as jnp
from jax.experimental import pallas as pl
from jax.experimental.pallas import tpu as pltpu


VMEM_LIMIT = 32 * 1024 * 1024  # safe on v5e/v6e/v7x; kernels below use far less


# ------------------------------ tiling helper -------------------------------

def _pick_tile(dim, align, target):
    """Largest multiple of `align` that divides `dim`, capped at `target`.
    Falls back to the full dim (always legal: block extent == array extent)."""
    if dim % align != 0:
        return dim
    t = min(target, dim)
    t -= t % align
    while t >= align:
        if dim % t == 0:
            return t
        t -= align
    return dim


# ------------------------------ Pallas kernels ------------------------------

def _dense_kernel(x_ref, w_ref, b_ref, o_ref, acc_ref, *, activation):
    """One (tm, tn) output tile; K axis is the last grid dim (accumulated)."""
    @pl.when(pl.program_id(2) == 0)
    def _():
        acc_ref[...] = jnp.zeros_like(acc_ref)

    acc_ref[...] += jnp.dot(x_ref[...], w_ref[...],
                            preferred_element_type=jnp.float32)

    @pl.when(pl.program_id(2) == pl.num_programs(2) - 1)
    def _():
        y = acc_ref[...] + b_ref[...].astype(jnp.float32)
        if activation == "relu":
            y = jnp.maximum(y, 0.0)
        elif activation == "tanh":
            y = jnp.tanh(y)
        o_ref[...] = y.astype(o_ref.dtype)


def dense(x, w, b, activation="none", out_dtype=jnp.bfloat16):
    """y = act(x @ w + b).  x:(M,K) bf16, w:(K,N) bf16, b:(N,) f32 -> (M,N) out_dtype."""
    M, K = x.shape
    N = w.shape[1]
    tm = _pick_tile(M, 8, 256)
    tk = _pick_tile(K, 128, 256)
    tn = _pick_tile(N, 128, 256)
    grid = (M // tm, N // tn, K // tk)
    return pl.pallas_call(
        functools.partial(_dense_kernel, activation=activation),
        grid=grid,
        in_specs=[
            pl.BlockSpec((tm, tk), lambda i, j, k: (i, k)),
            pl.BlockSpec((tk, tn), lambda i, j, k: (k, j)),
            pl.BlockSpec((1, tn), lambda i, j, k: (0, j)),
        ],
        out_specs=pl.BlockSpec((tm, tn), lambda i, j, k: (i, j)),
        out_shape=jax.ShapeDtypeStruct((M, N), out_dtype),
        scratch_shapes=[pltpu.VMEM((tm, tn), jnp.float32)],
        compiler_params=pltpu.CompilerParams(
            dimension_semantics=("parallel", "parallel", "arbitrary"),
            vmem_limit_bytes=VMEM_LIMIT,
        ),
    )(x, w, b.reshape(1, N))


def _dense_res_ln_kernel(x_ref, w_ref, b_ref, r_ref, g_ref, bb_ref,
                         o_ref, acc_ref, *, eps):
    """Matmul + bias, then residual add + LayerNorm fused into the epilogue.
    The full feature dim N is resident in the output tile (needed for LN stats)."""
    @pl.when(pl.program_id(1) == 0)
    def _():
        acc_ref[...] = jnp.zeros_like(acc_ref)

    acc_ref[...] += jnp.dot(x_ref[...], w_ref[...],
                            preferred_element_type=jnp.float32)

    @pl.when(pl.program_id(1) == pl.num_programs(1) - 1)
    def _():
        h = (acc_ref[...] + b_ref[...].astype(jnp.float32)
             + r_ref[...].astype(jnp.float32))
        mean = jnp.mean(h, axis=-1, keepdims=True)
        var = jnp.mean(jnp.square(h - mean), axis=-1, keepdims=True)
        inv = jax.lax.rsqrt(var + eps)
        y = (h - mean) * inv * g_ref[...].astype(jnp.float32) \
            + bb_ref[...].astype(jnp.float32)
        o_ref[...] = y.astype(o_ref.dtype)


def dense_residual_layernorm(x, w, b, residual, gamma, beta, eps=1e-5,
                             out_dtype=jnp.bfloat16):
    """LayerNorm(residual + x @ w + b).  x:(M,K), w:(K,N), residual:(M,N)."""
    M, K = x.shape
    N = w.shape[1]
    tm = _pick_tile(M, 8, 256)
    if M // tm < 2 and tm % 16 == 0:
        tm //= 2  # give the parallel M axis >= 2 blocks (keeps both TCs busy on v7x)
    tk = _pick_tile(K, 128, 256)
    grid = (M // tm, K // tk)
    return pl.pallas_call(
        functools.partial(_dense_res_ln_kernel, eps=eps),
        grid=grid,
        in_specs=[
            pl.BlockSpec((tm, tk), lambda i, k: (i, k)),
            pl.BlockSpec((tk, N), lambda i, k: (k, 0)),
            pl.BlockSpec((1, N), lambda i, k: (0, 0)),
            pl.BlockSpec((tm, N), lambda i, k: (i, 0)),
            pl.BlockSpec((1, N), lambda i, k: (0, 0)),
            pl.BlockSpec((1, N), lambda i, k: (0, 0)),
        ],
        out_specs=pl.BlockSpec((tm, N), lambda i, k: (i, 0)),
        out_shape=jax.ShapeDtypeStruct((M, N), out_dtype),
        scratch_shapes=[pltpu.VMEM((tm, N), jnp.float32)],
        compiler_params=pltpu.CompilerParams(
            dimension_semantics=("parallel", "arbitrary"),
            vmem_limit_bytes=VMEM_LIMIT,
        ),
    )(x, w, b.reshape(1, N), residual, gamma.reshape(1, N), beta.reshape(1, N))


def _mha_kernel(q_ref, k_ref, v_ref, o_ref, *, num_heads, head_dim, scale):
    """Full attention for one batch element.  q/k/v/o blocks: (1, S, D) with D=H*Dh
    on the lanes (lane-dense); heads handled via static lane slices."""
    q = q_ref[0]          # (S, D) bf16
    k = k_ref[0]
    v = v_ref[0]
    outs = []
    for h in range(num_heads):
        lo = h * head_dim
        qh = q[:, lo:lo + head_dim]
        kh = k[:, lo:lo + head_dim]
        vh = v[:, lo:lo + head_dim]
        # scores: contract the last dims directly (no explicit k.T relayout)
        s = jax.lax.dot_general(qh, kh, (((1,), (1,)), ((), ())),
                                preferred_element_type=jnp.float32) * scale
        s = s - jnp.max(s, axis=-1, keepdims=True)
        p = jnp.exp(s)
        denom = jnp.sum(p, axis=-1, keepdims=True)
        p = p * pl.reciprocal(denom, approx=True)       # EUP slot, ~free
        outs.append(jnp.dot(p.astype(vh.dtype), vh,
                            preferred_element_type=jnp.float32))
    o_ref[0] = jnp.concatenate(outs, axis=-1).astype(o_ref.dtype)


def multi_head_attention(q, k, v, num_heads):
    """q, k, v: (B, S, D) bf16 with D = num_heads * head_dim. Returns (B, S, D)."""
    B, S, D = q.shape
    head_dim = D // num_heads
    scale = 1.0 / math.sqrt(head_dim)
    spec = pl.BlockSpec((1, S, D), lambda b: (b, 0, 0))
    return pl.pallas_call(
        functools.partial(_mha_kernel, num_heads=num_heads,
                          head_dim=head_dim, scale=scale),
        grid=(B,),
        in_specs=[spec, spec, spec],
        out_specs=spec,
        out_shape=jax.ShapeDtypeStruct((B, S, D), q.dtype),
        compiler_params=pltpu.CompilerParams(
            dimension_semantics=("parallel",),
            vmem_limit_bytes=VMEM_LIMIT,
        ),
    )(q, k, v)


def _pool_cls_kernel(h_ref, w_ref, b_ref, o_ref, *, inv_s):
    """Mean over the sequence axis + padded classifier matmul, one fused kernel."""
    pooled = jnp.sum(h_ref[...].astype(jnp.float32), axis=1) * inv_s     # (B, D)
    y = jnp.dot(pooled.astype(w_ref.dtype), w_ref[...],
                preferred_element_type=jnp.float32) + b_ref[...]
    o_ref[...] = y


def mean_pool_classify(hidden, w_pad, b_pad):
    """hidden: (B, S, D); w_pad: (D, 128); b_pad: (128,) -> (B, 128) f32 logits slab."""
    B, S, D = hidden.shape
    n_pad = w_pad.shape[1]
    return pl.pallas_call(
        functools.partial(_pool_cls_kernel, inv_s=1.0 / S),
        out_shape=jax.ShapeDtypeStruct((B, n_pad), jnp.float32),
    )(hidden, w_pad, b_pad.reshape(1, n_pad))


# ------------------------------ model (glue) --------------------------------

class Config:
    vocabulary_size = 100
    embedding_dim = 128      # d_model; must be divisible by nhead
    nhead = 8                # hard-coded in the PyTorch module
    dim_feedforward = 2048   # hard-coded in the PyTorch module
    num_layers = 2           # hard-coded in the PyTorch module
    class_num = 4
    layer_norm_eps = 1e-5
    cls_pad = 128            # pad classifier output to a lane-dense 128-wide slab


def init_params(key, cfg):
    def nrm(k, shape, dtype=jnp.bfloat16):
        return (jax.random.normal(k, shape, jnp.float32) * 0.02).astype(dtype)

    D, FF = cfg.embedding_dim, cfg.dim_feedforward
    keys = iter(jax.random.split(key, 64))
    params = {
        "embedding": nrm(next(keys), (cfg.vocabulary_size, D)),
        "layers": [],
    }
    for _ in range(cfg.num_layers):
        params["layers"].append({
            # fused QKV in-projection (D, 3D)
            "w_qkv": nrm(next(keys), (D, 3 * D)),
            "b_qkv": jnp.zeros((3 * D,), jnp.float32),
            "w_o": nrm(next(keys), (D, D)),
            "b_o": jnp.zeros((D,), jnp.float32),
            "ln1_g": jnp.ones((D,), jnp.float32),
            "ln1_b": jnp.zeros((D,), jnp.float32),
            "w1": nrm(next(keys), (D, FF)),
            "b1": jnp.zeros((FF,), jnp.float32),
            "w2": nrm(next(keys), (FF, D)),
            "b2": jnp.zeros((D,), jnp.float32),
            "ln2_g": jnp.ones((D,), jnp.float32),
            "ln2_b": jnp.zeros((D,), jnp.float32),
        })
    # classifier, zero-padded to a lane-dense 128-wide output
    fc_w = nrm(next(keys), (D, cfg.class_num))
    w_pad = jnp.zeros((D, cfg.cls_pad), jnp.bfloat16)
    params["fc_w_pad"] = w_pad.at[:, :cfg.class_num].set(fc_w)
    params["fc_b_pad"] = jnp.zeros((cfg.cls_pad,), jnp.float32)
    return params


def transformer_forward(params, token_ids, cfg):
    B, S = token_ids.shape
    D = cfg.embedding_dim
    eps = cfg.layer_norm_eps

    # TODO(synk): embedding lookup is a data-dependent gather; kept in plain JAX.
    emb = jnp.take(params["embedding"], token_ids, axis=0)        # (B, S, D) bf16
    x = emb.reshape(B * S, D)                                     # tokens on rows

    for layer in params["layers"]:
        # ---- self attention: fused QKV dense, then per-batch fused attention ----
        qkv = dense(x, layer["w_qkv"], layer["b_qkv"])            # (B*S, 3D) bf16
        q = qkv[:, :D].reshape(B, S, D)                           # pure reshapes,
        k = qkv[:, D:2 * D].reshape(B, S, D)                      # no transposes
        v = qkv[:, 2 * D:].reshape(B, S, D)
        ctx = multi_head_attention(q, k, v, cfg.nhead)            # (B, S, D)
        ctx = ctx.reshape(B * S, D)

        # out-projection + residual + LayerNorm fused in one kernel
        x = dense_residual_layernorm(ctx, layer["w_o"], layer["b_o"], x,
                                     layer["ln1_g"], layer["ln1_b"], eps=eps)

        # ---- feed forward (relu), second matmul fused with residual + LayerNorm ----
        h = dense(x, layer["w1"], layer["b1"], activation="relu")  # (B*S, FF)
        x = dense_residual_layernorm(h, layer["w2"], layer["b2"], x,
                                     layer["ln2_g"], layer["ln2_b"], eps=eps)

    # ---- mean pool over the sequence + classifier, fused, lane-dense output ----
    hidden = x.reshape(B, S, D)
    logits_pad = mean_pool_classify(hidden, params["fc_w_pad"], params["fc_b_pad"])
    return logits_pad[:, :cfg.class_num]                           # (B, class_num) f32


# ---------------------------------- main -------------------------------------

if __name__ == "__main__":
    cfg = Config()
    key = jax.random.PRNGKey(0)
    k_param, k_ids = jax.random.split(key)

    params = init_params(k_param, cfg)

    B, S = 2, 8
    token_ids = jax.random.randint(k_ids, (B, S), 0, cfg.vocabulary_size,
                                   dtype=jnp.int32)

    fwd = jax.jit(lambda p, ids: transformer_forward(p, ids, cfg))
    logits = fwd(params, token_ids)
    logits = jax.block_until_ready(logits)

    assert logits.shape == (B, cfg.class_num)
    assert bool(jnp.all(jnp.isfinite(logits)))
    print("KERNEL_OK")
</pallas_src>

<mosaic_0001>
module attributes {stable_mosaic.version = 11 : i64} {
  func.func @_dense_kernel(%arg0: i32, %arg1: i32, %arg2: i32, %arg3: memref<16x128xbf16, #tpu.memory_space<vmem>>, %arg4: memref<128x128xbf16, #tpu.memory_space<vmem>>, %arg5: memref<1x128xf32, #tpu.memory_space<vmem>>, %arg6: memref<16x128xbf16, #tpu.memory_space<vmem>>, %arg7: memref<16x128xf32, #tpu.memory_space<vmem>>) attributes {dimension_semantics = [#tpu.dimension_semantics<parallel>, #tpu.dimension_semantics<parallel>, #tpu.dimension_semantics<arbitrary>], iteration_bounds = array<i64: 1, 3, 1>, scalar_prefetch = 0 : i64, scratch_operands = 1 : i64, tpu.core_type = #tpu.core_type<tc>, window_params = [{transform_indices = @transform_0, window_bounds = array<i64: 16, 128>}, {transform_indices = @transform_1, window_bounds = array<i64: 128, 128>}, {transform_indices = @transform_2, window_bounds = array<i64: 1, 128>}, {transform_indices = @transform_3, window_bounds = array<i64: 16, 128>}]} {
    %c0_i32 = arith.constant 0 : i32
    %0 = arith.cmpi eq, %arg2, %c0_i32 : i32
    %1 = arith.extui %0 : i1 to i32
    %c0_i32_0 = arith.constant 0 : i32
    %2 = arith.cmpi ne, %1, %c0_i32_0 : i32
    scf.if %2 {
      %cst_10 = arith.constant 0.000000e+00 : f32
      %12 = vector.broadcast %cst_10 : f32 to vector<16x128xf32>
      %c0_11 = arith.constant 0 : index
      %c0_12 = arith.constant 0 : index
      %13 = vector.load %arg7[%c0_11, %c0_12] : memref<16x128xf32, #tpu.memory_space<vmem>>, vector<16x128xf32>
      tpu.vector_store %arg7[%c0_11, %c0_12], %12 {strides = array<i32>} : memref<16x128xf32, #tpu.memory_space<vmem>>, vector<16x128xf32>,
    } else {
    }
    %c0 = arith.constant 0 : index
    %c0_1 = arith.constant 0 : index
    %3 = vector.load %arg7[%c0, %c0_1] : memref<16x128xf32, #tpu.memory_space<vmem>>, vector<16x128xf32>
    %c0_2 = arith.constant 0 : index
    %c0_3 = arith.constant 0 : index
    %4 = vector.load %arg3[%c0_2, %c0_3] : memref<16x128xbf16, #tpu.memory_space<vmem>>, vector<16x128xbf16>
    %c0_4 = arith.constant 0 : index
    %c0_5 = arith.constant 0 : index
    %5 = vector.load %arg4[%c0_4, %c0_5] : memref<128x128xbf16, #tpu.memory_space<vmem>>, vector<128x128xbf16>
    %cst = arith.constant dense<0.000000e+00> : vector<16x128xf32>
    %6 = tpu.matmul %4, %5, %cst {dimension_numbers = #tpu.dot_dimension_numbers<[1], [0], [0], [1], [0, 0, 1, 1], [], []>} : vector<16x128xbf16>, vector<128x128xbf16>, vector<16x128xf32> -> vector<16x128xf32>
    %7 = arith.addf %3, %6 : vector<16x128xf32>
    %c0_6 = arith.constant 0 : index
    %c0_7 = arith.constant 0 : index
    %8 = vector.load %arg7[%c0_6, %c0_7] : memref<16x128xf32, #tpu.memory_space<vmem>>, vector<16x128xf32>
    tpu.vector_store %arg7[%c0_6, %c0_7], %7 {strides = array<i32>} : memref<16x128xf32, #tpu.memory_space<vmem>>, vector<16x128xf32>,
    %c0_i32_8 = arith.constant 0 : i32
    %9 = arith.cmpi eq, %arg2, %c0_i32_8 : i32
    %10 = arith.extui %9 : i1 to i32
    %c0_i32_9 = arith.constant 0 : i32
    %11 = arith.cmpi ne, %10, %c0_i32_9 : i32
    scf.if %11 {
      %c0_10 = arith.constant 0 : index
      %c0_11 = arith.constant 0 : index
      %12 = vector.load %arg7[%c0_10, %c0_11] : memref<16x128xf32, #tpu.memory_space<vmem>>, vector<16x128xf32>
      %c0_12 = arith.constant 0 : index
      %c0_13 = arith.constant 0 : index
      %13 = vector.load %arg5[%c0_12, %c0_13] : memref<1x128xf32, #tpu.memory_space<vmem>>, vector<1x128xf32>
      %14 = vector.broadcast %13 : vector<1x128xf32> to vector<16x128xf32>
      %15 = arith.addf %12, %14 : vector<16x128xf32>
      %16 = arith.truncf %15 : vector<16x128xf32> to vector<16x128xbf16>
      %c0_14 = arith.constant 0 : index
      %c0_15 = arith.constant 0 : index
      %17 = vector.load %arg6[%c0_14, %c0_15] : memref<16x128xbf16, #tpu.memory_space<vmem>>, vector<16x128xbf16>
      tpu.vector_store %arg6[%c0_14, %c0_15], %16 {strides = array<i32>} : memref<16x128xbf16, #tpu.memory_space<vmem>>, vector<16x128xbf16>,
    } else {
    }
    return
  }
  func.func @transform_0(%arg0: i32, %arg1: i32, %arg2: i32) -> (i32, i32) {
    %c0_i32 = arith.constant 0 : i32
    return %arg0, %arg2 : i32, i32
  }
  func.func @transform_1(%arg0: i32, %arg1: i32, %arg2: i32) -> (i32, i32) {
    %c0_i32 = arith.constant 0 : i32
    return %arg2, %arg1 : i32, i32
  }
  func.func @transform_2(%arg0: i32, %arg1: i32, %arg2: i32) -> (i32, i32) {
    %c0_i32 = arith.constant 0 : i32
    %c0_i32_0 = arith.constant 0 : i32
    return %c0_i32, %arg1 : i32, i32
  }
  func.func @transform_3(%arg0: i32, %arg1: i32, %arg2: i32) -> (i32, i32) {
    %c0_i32 = arith.constant 0 : i32
    return %arg0, %arg1 : i32, i32
  }
}

module attributes {stable_mosaic.version = 11 : i64} {
  func.func @_dense_res_ln_kernel(%arg0: i32, %arg1: i32, %arg2: memref<8x128xbf16, #tpu.memory_space<vmem>>, %arg3: memref<128x128xbf16, #tpu.memory_space<vmem>>, %arg4: memref<1x128xf32, #tpu.memory_space<vmem>>, %arg5: memref<8x128xbf16, #tpu.memory_space<vmem>>, %arg6: memref<1x128xf32, #tpu.memory_space<vmem>>, %arg7: memref<1x128xf32, #tpu.memory_space<vmem>>, %arg8: memref<8x128xbf16, #tpu.memory_space<vmem>>, %arg9: memref<8x128xf32, #tpu.memory_space<vmem>>) attributes {dimension_semantics = [#tpu.dimension_semantics<parallel>, #tpu.dimension_semantics<arbitrary>], iteration_bounds = array<i64: 2, 1>, scalar_prefetch = 0 : i64, scratch_operands = 1 : i64, tpu.core_type = #tpu.core_type<tc>, window_params = [{transform_indices = @transform_0, window_bounds = array<i64: 8, 128>}, {transform_indices = @transform_1, window_bounds = array<i64: 128, 128>}, {pipeline_mode = #tpu.pipeline_mode<synchronous>, transform_indices = @transform_2, window_bounds = array<i64: 1, 128>}, {transform_indices = @transform_3, window_bounds = array<i64: 8, 128>}, {pipeline_mode = #tpu.pipeline_mode<synchronous>, transform_indices = @transform_4, window_bounds = array<i64: 1, 128>}, {pipeline_mode = #tpu.pipeline_mode<synchronous>, transform_indices = @transform_5, window_bounds = array<i64: 1, 128>}, {transform_indices = @transform_6, window_bounds = array<i64: 8, 128>}]} {
    %c0_i32 = arith.constant 0 : i32
    %0 = arith.cmpi eq, %arg1, %c0_i32 : i32
    %1 = arith.extui %0 : i1 to i32
    %c0_i32_0 = arith.constant 0 : i32
    %2 = arith.cmpi ne, %1, %c0_i32_0 : i32
    scf.if %2 {
      %cst_10 = arith.constant 0.000000e+00 : f32
      %12 = vector.broadcast %cst_10 : f32 to vector<8x128xf32>
      %c0_11 = arith.constant 0 : index
      %c0_12 = arith.constant 0 : index
      %13 = vector.load %arg9[%c0_11, %c0_12] : memref<8x128xf32, #tpu.memory_space<vmem>>, vector<8x128xf32>
      tpu.vector_store %arg9[%c0_11, %c0_12], %12 {strides = array<i32>} : memref<8x128xf32, #tpu.memory_space<vmem>>, vector<8x128xf32>,
    } else {
    }
    %c0 = arith.constant 0 : index
    %c0_1 = arith.constant 0 : index
    %3 = vector.load %arg9[%c0, %c0_1] : memref<8x128xf32, #tpu.memory_space<vmem>>, vector<8x128xf32>
    %c0_2 = arith.constant 0 : index
    %c0_3 = arith.constant 0 : index
    %4 = vector.load %arg2[%c0_2, %c0_3] : memref<8x128xbf16, #tpu.memory_space<vmem>>, vector<8x128xbf16>
    %c0_4 = arith.constant 0 : index
    %c0_5 = arith.constant 0 : index
    %5 = vector.load %arg3[%c0_4, %c0_5] : memref<128x128xbf16, #tpu.memory_space<vmem>>, vector<128x128xbf16>
    %cst = arith.constant dense<0.000000e+00> : vector<8x128xf32>
    %6 = tpu.matmul %4, %5, %cst {dimension_numbers = #tpu.dot_dimension_numbers<[1], [0], [0], [1], [0, 0, 1, 1], [], []>} : vector<8x128xbf16>, vector<128x128xbf16>, vector<8x128xf32> -> vector<8x128xf32>
    %7 = arith.addf %3, %6 : vector<8x128xf32>
    %c0_6 = arith.constant 0 : index
    %c0_7 = arith.constant 0 : index
    %8 = vector.load %arg9[%c0_6, %c0_7] : memref<8x128xf32, #tpu.memory_space<vmem>>, vector<8x128xf32>
    tpu.vector_store %arg9[%c0_6, %c0_7], %7 {strides = array<i32>} : memref<8x128xf32, #tpu.memory_space<vmem>>, vector<8x128xf32>,
    %c0_i32_8 = arith.constant 0 : i32
    %9 = arith.cmpi eq, %arg1, %c0_i32_8 : i32
    %10 = arith.extui %9 : i1 to i32
    %c0_i32_9 = arith.constant 0 : i32
    %11 = arith.cmpi ne, %10, %c0_i32_9 : i32
    scf.if %11 {
      %c0_10 = arith.constant 0 : index
      %c0_11 = arith.constant 0 : index
      %12 = vector.load %arg9[%c0_10, %c0_11] : memref<8x128xf32, #tpu.memory_space<vmem>>, vector<8x128xf32>
      %c0_12 = arith.constant 0 : index
      %c0_13 = arith.constant 0 : index
      %13 = vector.load %arg4[%c0_12, %c0_13] : memref<1x128xf32, #tpu.memory_space<vmem>>, vector<1x128xf32>
      %14 = vector.broadcast %13 : vector<1x128xf32> to vector<8x128xf32>
      %15 = arith.addf %12, %14 : vector<8x128xf32>
      %c0_14 = arith.constant 0 : index
      %c0_15 = arith.constant 0 : index
      %16 = vector.load %arg5[%c0_14, %c0_15] : memref<8x128xbf16, #tpu.memory_space<vmem>>, vector<8x128xbf16>
      %17 = arith.extf %16 : vector<8x128xbf16> to vector<8x128xf32>
      %18 = arith.addf %15, %17 : vector<8x128xf32>
      %cst_16 = arith.constant dense<0.000000e+00> : vector<8xf32>
      %19 = vector.multi_reduction <add>, %18, %cst_16 [1] : vector<8x128xf32> to vector<8xf32>
      %20 = vector.shape_cast %19 : vector<8xf32> to vector<8x1xf32>
      %cst_17 = arith.constant 1.280000e+02 : f32
      %21 = vector.broadcast %cst_17 : f32 to vector<8x1xf32>
      %22 = arith.divf %20, %21 : vector<8x1xf32>
      %23 = vector.broadcast %22 : vector<8x1xf32> to vector<8x128xf32>
      %24 = arith.subf %18, %23 : vector<8x128xf32>
      %25 = arith.mulf %24, %24 : vector<8x128xf32>
      %cst_18 = arith.constant dense<0.000000e+00> : vector<8xf32>
      %26 = vector.multi_reduction <add>, %25, %cst_18 [1] : vector<8x128xf32> to vector<8xf32>
      %27 = vector.shape_cast %26 : vector<8xf32> to vector<8x1xf32>
      %cst_19 = arith.constant 1.280000e+02 : f32
      %28 = vector.broadcast %cst_19 : f32 to vector<8x1xf32>
      %29 = arith.divf %27, %28 : vector<8x1xf32>
      %cst_20 = arith.constant 9.99999974E-6 : f32
      %30 = vector.broadcast %cst_20 : f32 to vector<8x1xf32>
      %31 = arith.addf %29, %30 : vector<8x1xf32>
      %32 = math.rsqrt %31 : vector<8x1xf32>
      %33 = vector.broadcast %22 : vector<8x1xf32> to vector<8x128xf32>
      %34 = arith.subf %18, %33 : vector<8x128xf32>
      %35 = vector.broadcast %32 : vector<8x1xf32> to vector<8x128xf32>
      %36 = arith.mulf %34, %35 : vector<8x128xf32>
      %c0_21 = arith.constant 0 : index
      %c0_22 = arith.constant 0 : index
      %37 = vector.load %arg6[%c0_21, %c0_22] : memref<1x128xf32, #tpu.memory_space<vmem>>, vector<1x128xf32>
      %38 = vector.broadcast %37 : vector<1x128xf32> to vector<8x128xf32>
      %39 = arith.mulf %36, %38 : vector<8x128xf32>
      %c0_23 = arith.constant 0 : index
      %c0_24 = arith.constant 0 : index
      %40 = vector.load %arg7[%c0_23, %c0_24] : memref<1x128xf32, #tpu.memory_space<vmem>>, vector<1x128xf32>
      %41 = vector.broadcast %40 : vector<1x128xf32> to vector<8x128xf32>
      %42 = arith.addf %39, %41 : vector<8x128xf32>
      %43 = arith.truncf %42 : vector<8x128xf32> to vector<8x128xbf16>
      %c0_25 = arith.constant 0 : index
      %c0_26 = arith.constant 0 : index
      %44 = vector.load %arg8[%c0_25, %c0_26] : memref<8x128xbf16, #tpu.memory_space<vmem>>, vector<8x128xbf16>
      tpu.vector_store %arg8[%c0_25, %c0_26], %43 {strides = array<i32>} : memref<8x128xbf16, #tpu.memory_space<vmem>>, vector<8x128xbf16>,
    } else {
    }
    return
  }
  func.func @transform_0(%arg0: i32, %arg1: i32) -> (i32, i32) {
    %c0_i32 = arith.constant 0 : i32
    return %arg0, %arg1 : i32, i32
  }
  func.func @transform_1(%arg0: i32, %arg1: i32) -> (i32, i32) {
    %c0_i32 = arith.constant 0 : i32
    %c0_i32_0 = arith.constant 0 : i32
    return %arg1, %c0_i32 : i32, i32
  }
  func.func @transform_2(%arg0: i32, %arg1: i32) -> (i32, i32) {
    %c0_i32 = arith.constant 0 : i32
    %c0_i32_0 = arith.constant 0 : i32
    %c0_i32_1 = arith.constant 0 : i32
    return %c0_i32, %c0_i32_0 : i32, i32
  }
  func.func @transform_3(%arg0: i32, %arg1: i32) -> (i32, i32) {
    %c0_i32 = arith.constant 0 : i32
    %c0_i32_0 = arith.constant 0 : i32
    return %arg0, %c0_i32 : i32, i32
  }
  func.func @transform_4(%arg0: i32, %arg1: i32) -> (i32, i32) {
    %c0_i32 = arith.constant 0 : i32
    %c0_i32_0 = arith.constant 0 : i32
    %c0_i32_1 = arith.constant 0 : i32
    return %c0_i32, %c0_i32_0 : i32, i32
  }
  func.func @transform_5(%arg0: i32, %arg1: i32) -> (i32, i32) {
    %c0_i32 = arith.constant 0 : i32
    %c0_i32_0 = arith.constant 0 : i32
    %c0_i32_1 = arith.constant 0 : i32
    return %c0_i32, %c0_i32_0 : i32, i32
  }
  func.func @transform_6(%arg0: i32, %arg1: i32) -> (i32, i32) {
    %c0_i32 = arith.constant 0 : i32
    %c0_i32_0 = arith.constant 0 : i32
    return %arg0, %c0_i32 : i32, i32
  }
}

module attributes {stable_mosaic.version = 11 : i64} {
  func.func @_mha_kernel(%arg0: i32, %arg1: memref<1x8x128xbf16, #tpu.memory_space<vmem>>, %arg2: memref<1x8x128xbf16, #tpu.memory_space<vmem>>, %arg3: memref<1x8x128xbf16, #tpu.memory_space<vmem>>, %arg4: memref<1x8x128xbf16, #tpu.memory_space<vmem>>) attributes {dimension_semantics = [#tpu.dimension_semantics<parallel>], iteration_bounds = array<i64: 2>, scalar_prefetch = 0 : i64, scratch_operands = 0 : i64, tpu.core_type = #tpu.core_type<tc>, window_params = [{transform_indices = @transform_0, window_bounds = array<i64: 1, 8, 128>}, {transform_indices = @transform_1, window_bounds = array<i64: 1, 8, 128>}, {transform_indices = @transform_2, window_bounds = array<i64: 1, 8, 128>}, {transform_indices = @transform_3, window_bounds = array<i64: 1, 8, 128>}]} {
    %c0 = arith.constant 0 : index
    %c0_0 = arith.constant 0 : index
    %c0_1 = arith.constant 0 : index
    %0 = vector.load %arg1[%c0, %c0_0, %c0_1] : memref<1x8x128xbf16, #tpu.memory_space<vmem>>, vector<1x8x128xbf16>
    %1 = vector.shape_cast %0 : vector<1x8x128xbf16> to vector<8x128xbf16>
    %c0_2 = arith.constant 0 : index
    %c0_3 = arith.constant 0 : index
    %c0_4 = arith.constant 0 : index
    %2 = vector.load %arg2[%c0_2, %c0_3, %c0_4] : memref<1x8x128xbf16, #tpu.memory_space<vmem>>, vector<1x8x128xbf16>
    %3 = vector.shape_cast %2 : vector<1x8x128xbf16> to vector<8x128xbf16>
    %c0_5 = arith.constant 0 : index
    %c0_6 = arith.constant 0 : index
    %c0_7 = arith.constant 0 : index
    %4 = vector.load %arg3[%c0_5, %c0_6, %c0_7] : memref<1x8x128xbf16, #tpu.memory_space<vmem>>, vector<1x8x128xbf16>
    %5 = vector.shape_cast %4 : vector<1x8x128xbf16> to vector<8x128xbf16>
    %6 = vector.extract_strided_slice %1 {offsets = [0, 0], sizes = [8, 16], strides = [1, 1]} : vector<8x128xbf16> to vector<8x16xbf16>
    %7 = vector.extract_strided_slice %3 {offsets = [0, 0], sizes = [8, 16], strides = [1, 1]} : vector<8x128xbf16> to vector<8x16xbf16>
    %8 = vector.extract_strided_slice %5 {offsets = [0, 0], sizes = [8, 16], strides = [1, 1]} : vector<8x128xbf16> to vector<8x16xbf16>
    %cst = arith.constant dense<0.000000e+00> : vector<8x8xf32>
    %9 = tpu.matmul %6, %7, %cst {dimension_numbers = #tpu.dot_dimension_numbers<[1], [1], [0], [0], [0, 0, 1, 0], [], []>} : vector<8x16xbf16>, vector<8x16xbf16>, vector<8x8xf32> -> vector<8x8xf32>
    %cst_8 = arith.constant 2.500000e-01 : f32
    %10 = vector.broadcast %cst_8 : f32 to vector<8x8xf32>
    %11 = arith.mulf %9, %10 : vector<8x8xf32>
    %cst_9 = arith.constant dense<0xFF800000> : vector<8xf32>
    %12 = vector.multi_reduction <maximumf>, %11, %cst_9 [1] : vector<8x8xf32> to vector<8xf32>
    %13 = vector.shape_cast %12 : vector<8xf32> to vector<8x1xf32>
    %14 = vector.broadcast %13 : vector<8x1xf32> to vector<8x8xf32>
    %15 = arith.subf %11, %14 : vector<8x8xf32>
    %16 = math.exp %15 : vector<8x8xf32>
    %cst_10 = arith.constant dense<0.000000e+00> : vector<8xf32>
    %17 = vector.multi_reduction <add>, %16, %cst_10 [1] : vector<8x8xf32> to vector<8xf32>
    %18 = vector.shape_cast %17 : vector<8xf32> to vector<8x1xf32>
    %19 = tpu.reciprocal %18 {approx = true} : vector<8x1xf32> -> vector<8x1xf32>
    %20 = vector.broadcast %19 : vector<8x1xf32> to vector<8x8xf32>
    %21 = arith.mulf %16, %20 : vector<8x8xf32>
    %22 = arith.truncf %21 : vector<8x8xf32> to vector<8x8xbf16>
    %cst_11 = arith.constant dense<0.000000e+00> : vector<8x16xf32>
    %23 = tpu.matmul %22, %8, %cst_11 {dimension_numbers = #tpu.dot_dimension_numbers<[1], [0], [0], [1], [0, 0, 1, 1], [], []>} : vector<8x8xbf16>, vector<8x16xbf16>, vector<8x16xf32> -> vector<8x16xf32>
    %24 = vector.extract_strided_slice %1 {offsets = [0, 16], sizes = [8, 16], strides = [1, 1]} : vector<8x128xbf16> to vector<8x16xbf16>
    %25 = vector.extract_strided_slice %3 {offsets = [0, 16], sizes = [8, 16], strides = [1, 1]} : vector<8x128xbf16> to vector<8x16xbf16>
    %26 = vector.extract_strided_slice %5 {offsets = [0, 16], sizes = [8, 16], strides = [1, 1]} : vector<8x128xbf16> to vector<8x16xbf16>
    %cst_12 = arith.constant dense<0.000000e+00> : vector<8x8xf32>
    %27 = tpu.matmul %24, %25, %cst_12 {dimension_numbers = #tpu.dot_dimension_numbers<[1], [1], [0], [0], [0, 0, 1, 0], [], []>} : vector<8x16xbf16>, vector<8x16xbf16>, vector<8x8xf32> -> vector<8x8xf32>
    %cst_13 = arith.constant 2.500000e-01 : f32
    %28 = vector.broadcast %cst_13 : f32 to vector<8x8xf32>
    %29 = arith.mulf %27, %28 : vector<8x8xf32>
    %cst_14 = arith.constant dense<0xFF800000> : vector<8xf32>
    %30 = vector.multi_reduction <maximumf>, %29, %cst_14 [1] : vector<8x8xf32> to vector<8xf32>
    %31 = vector.shape_cast %30 : vector<8xf32> to vector<8x1xf32>
    %32 = vector.broadcast %31 : vector<8x1xf32> to vector<8x8xf32>
    %33 = arith.subf %29, %32 : vector<8x8xf32>
    %34 = math.exp %33 : vector<8x8xf32>
    %cst_15 = arith.constant dense<0.000000e+00> : vector<8xf32>
    %35 = vector.multi_reduction <add>, %34, %cst_15 [1] : vector<8x8xf32> to vector<8xf32>
    %36 = vector.shape_cast %35 : vector<8xf32> to vector<8x1xf32>
    %37 = tpu.reciprocal %36 {approx = true} : vector<8x1xf32> -> vector<8x1xf32>
    %38 = vector.broadcast %37 : vector<8x1xf32> to vector<8x8xf32>
    %39 = arith.mulf %34, %38 : vector<8x8xf32>
    %40 = arith.truncf %39 : vector<8x8xf32> to vector<8x8xbf16>
    %cst_16 = arith.constant dense<0.000000e+00> : vector<8x16xf32>
    %41 = tpu.matmul %40, %26, %cst_16 {dimension_numbers = #tpu.dot_dimension_numbers<[1], [0], [0], [1], [0, 0, 1, 1], [], []>} : vector<8x8xbf16>, vector<8x16xbf16>, vector<8x16xf32> -> vector<8x16xf32>
    %42 = vector.extract_strided_slice %1 {offsets = [0, 32], sizes = [8, 16], strides = [1, 1]} : vector<8x128xbf16> to vector<8x16xbf16>
    %43 = vector.extract_strided_slice %3 {offsets = [0, 32], sizes = [8, 16], strides = [1, 1]} : vector<8x128xbf16> to vector<8x16xbf16>
    %44 = vector.extract_strided_slice %5 {offsets = [0, 32], sizes = [8, 16], strides = [1, 1]} : vector<8x128xbf16> to vector<8x16xbf16>
    %cst_17 = arith.constant dense<0.000000e+00> : vector<8x8xf32>
    %45 = tpu.matmul %42, %43, %cst_17 {dimension_numbers = #tpu.dot_dimension_numbers<[1], [1], [0], [0], [0, 0, 1, 0], [], []>} : vector<8x16xbf16>, vector<8x16xbf16>, vector<8x8xf32> -> vector<8x8xf32>
    %cst_18 = arith.constant 2.500000e-01 : f32
    %46 = vector.broadcast %cst_18 : f32 to vector<8x8xf32>
    %47 = arith.mulf %45, %46 : vector<8x8xf32>
    %cst_19 = arith.constant dense<0xFF800000> : vector<8xf32>
    %48 = vector.multi_reduction <maximumf>, %47, %cst_19 [1] : vector<8x8xf32> to vector<8xf32>
    %49 = vector.shape_cast %48 : vector<8xf32> to vector<8x1xf32>
    %50 = vector.broadcast %49 : vector<8x1xf32> to vector<8x8xf32>
    %51 = arith.subf %47, %50 : vector<8x8xf32>
    %52 = math.exp %51 : vector<8x8xf32>
    %cst_20 = arith.constant dense<0.000000e+00> : vector<8xf32>
    %53 = vector.multi_reduction <add>, %52, %cst_20 [1] : vector<8x8xf32> to vector<8xf32>
    %54 = vector.shape_cast %53 : vector<8xf32> to vector<8x1xf32>
    %55 = tpu.reciprocal %54 {approx = true} : vector<8x1xf32> -> vector<8x1xf32>
    %56 = vector.broadcast %55 : vector<8x1xf32> to vector<8x8xf32>
    %57 = arith.mulf %52, %56 : vector<8x8xf32>
    %58 = arith.truncf %57 : vector<8x8xf32> to vector<8x8xbf16>
    %cst_21 = arith.constant dense<0.000000e+00> : vector<8x16xf32>
    %59 = tpu.matmul %58, %44, %cst_21 {dimension_numbers = #tpu.dot_dimension_numbers<[1], [0], [0], [1], [0, 0, 1, 1], [], []>} : vector<8x8xbf16>, vector<8x16xbf16>, vector<8x16xf32> -> vector<8x16xf32>
    %60 = vector.extract_strided_slice %1 {offsets = [0, 48], sizes = [8, 16], strides = [1, 1]} : vector<8x128xbf16> to vector<8x16xbf16>
    %61 = vector.extract_strided_slice %3 {offsets = [0, 48], sizes = [8, 16], strides = [1, 1]} : vector<8x128xbf16> to vector<8x16xbf16>
    %62 = vector.extract_strided_slice %5 {offsets = [0, 48], sizes = [8, 16], strides = [1, 1]} : vector<8x128xbf16> to vector<8x16xbf16>
    %cst_22 = arith.constant dense<0.000000e+00> : vector<8x8xf32>
    %63 = tpu.matmul %60, %61, %cst_22 {dimension_numbers = #tpu.dot_dimension_numbers<[1], [1], [0], [0], [0, 0, 1, 0], [], []>} : vector<8x16xbf16>, vector<8x16xbf16>, vector<8x8xf32> -> vector<8x8xf32>
    %cst_23 = arith.constant 2.500000e-01 : f32
    %64 = vector.broadcast %cst_23 : f32 to vector<8x8xf32>
    %65 = arith.mulf %63, %64 : vector<8x8xf32>
    %cst_24 = arith.constant dense<0xFF800000> : vector<8xf32>
    %66 = vector.multi_reduction <maximumf>, %65, %cst_24 [1] : vector<8x8xf32> to vector<8xf32>
    %67 = vector.shape_cast %66 : vector<8xf32> to vector<8x1xf32>
    %68 = vector.broadcast %67 : vector<8x1xf32> to vector<8x8xf32>
    %69 = arith.subf %65, %68 : vector<8x8xf32>
    %70 = math.exp %69 : vector<8x8xf32>
    %cst_25 = arith.constant dense<0.000000e+00> : vector<8xf32>
    %71 = vector.multi_reduction <add>, %70, %cst_25 [1] : vector<8x8xf32> to vector<8xf32>
    %72 = vector.shape_cast %71 : vector<8xf32> to vector<8x1xf32>
    %73 = tpu.reciprocal %72 {approx = true} : vector<8x1xf32> -> vector<8x1xf32>
    %74 = vector.broadcast %73 : vector<8x1xf32> to vector<8x8xf32>
    %75 = arith.mulf %70, %74 : vector<8x8xf32>
    %76 = arith.truncf %75 : vector<8x8xf32> to vector<8x8xbf16>
    %cst_26 = arith.constant dense<0.000000e+00> : vector<8x16xf32>
    %77 = tpu.matmul %76, %62, %cst_26 {dimension_numbers = #tpu.dot_dimension_numbers<[1], [0], [0], [1], [0, 0, 1, 1], [], []>} : vector<8x8xbf16>, vector<8x16xbf16>, vector<8x16xf32> -> vector<8x16xf32>
    %78 = vector.extract_strided_slice %1 {offsets = [0, 64], sizes = [8, 16], strides = [1, 1]} : vector<8x128xbf16> to vector<8x16xbf16>
    %79 = vector.extract_strided_slice %3 {offsets = [0, 64], sizes = [8, 16], strides = [1, 1]} : vector<8x128xbf16> to vector<8x16xbf16>
    %80 = vector.extract_strided_slice %5 {offsets = [0, 64], sizes = [8, 16], strides = [1, 1]} : vector<8x128xbf16> to vector<8x16xbf16>
    %cst_27 = arith.constant dense<0.000000e+00> : vector<8x8xf32>
    %81 = tpu.matmul %78, %79, %cst_27 {dimension_numbers = #tpu.dot_dimension_numbers<[1], [1], [0], [0], [0, 0, 1, 0], [], []>} : vector<8x16xbf16>, vector<8x16xbf16>, vector<8x8xf32> -> vector<8x8xf32>
    %cst_28 = arith.constant 2.500000e-01 : f32
    %82 = vector.broadcast %cst_28 : f32 to vector<8x8xf32>
    %83 = arith.mulf %81, %82 : vector<8x8xf32>
    %cst_29 = arith.constant dense<0xFF800000> : vector<8xf32>
    %84 = vector.multi_reduction <maximumf>, %83, %cst_29 [1] : vector<8x8xf32> to vector<8xf32>
    %85 = vector.shape_cast %84 : vector<8xf32> to vector<8x1xf32>
    %86 = vector.broadcast %85 : vector<8x1xf32> to vector<8x8xf32>
    %87 = arith.subf %83, %86 : vector<8x8xf32>
    %88 = math.exp %87 : vector<8x8xf32>
    %cst_30 = arith.constant dense<0.000000e+00> : vector<8xf32>
    %89 = vector.multi_reduction <add>, %88, %cst_30 [1] : vector<8x8xf32> to vector<8xf32>
    %90 = vector.shape_cast %89 : vector<8xf32> to vector<8x1xf32>
    %91 = tpu.reciprocal %90 {approx = true} : vector<8x1xf32> -> vector<8x1xf32>
    %92 = vector.broadcast %91 : vector<8x1xf32> to vector<8x8xf32>
    %93 = arith.mulf %88, %92 : vector<8x8xf32>
    %94 = arith.truncf %93 : vector<8x8xf32> to vector<8x8xbf16>
    %cst_31 = arith.constant dense<0.000000e+00> : vector<8x16xf32>
    %95 = tpu.matmul %94, %80, %cst_31 {dimension_numbers = #tpu.dot_dimension_numbers<[1], [0], [0], [1], [0, 0, 1, 1], [], []>} : vector<8x8xbf16>, vector<8x16xbf16>, vector<8x16xf32> -> vector<8x16xf32>
    %96 = vector.extract_strided_slice %1 {offsets = [0, 80], sizes = [8, 16], strides = [1, 1]} : vector<8x128xbf16> to vector<8x16xbf16>
    %97 = vector.extract_strided_slice %3 {offsets = [0, 80], sizes = [8, 16], strides = [1, 1]} : vector<8x128xbf16> to vector<8x16xbf16>
    %98 = vector.extract_strided_slice %5 {offsets = [0, 80], sizes = [8, 16], strides = [1, 1]} : vector<8x128xbf16> to vector<8x16xbf16>
    %cst_32 = arith.constant dense<0.000000e+00> : vector<8x8xf32>
    %99 = tpu.matmul %96, %97, %cst_32 {dimension_numbers = #tpu.dot_dimension_numbers<[1], [1], [0], [0], [0, 0, 1, 0], [], []>} : vector<8x16xbf16>, vector<8x16xbf16>, vector<8x8xf32> -> vector<8x8xf32>
    %cst_33 = arith.constant 2.500000e-01 : f32
    %100 = vector.broadcast %cst_33 : f32 to vector<8x8xf32>
    %101 = arith.mulf %99, %100 : vector<8x8xf32>
    %cst_34 = arith.constant dense<0xFF800000> : vector<8xf32>
    %102 = vector.multi_reduction <maximumf>, %101, %cst_34 [1] : vector<8x8xf32> to vector<8xf32>
    %103 = vector.shape_cast %102 : vector<8xf32> to vector<8x1xf32>
    %104 = vector.broadcast %103 : vector<8x1xf32> to vector<8x8xf32>
    %105 = arith.subf %101, %104 : vector<8x8xf32>
    %106 = math.exp %105 : vector<8x8xf32>
    %cst_35 = arith.constant dense<0.000000e+00> : vector<8xf32>
    %107 = vector.multi_reduction <add>, %106, %cst_35 [1] : vector<8x8xf32> to vector<8xf32>
    %108 = vector.shape_cast %107 : vector<8xf32> to vector<8x1xf32>
    %109 = tpu.reciprocal %108 {approx = true} : vector<8x1xf32> -> vector<8x1xf32>
    %110 = vector.broadcast %109 : vector<8x1xf32> to vector<8x8xf32>
    %111 = arith.mulf %106, %110 : vector<8x8xf32>
    %112 = arith.truncf %111 : vector<8x8xf32> to vector<8x8xbf16>
    %cst_36 = arith.constant dense<0.000000e+00> : vector<8x16xf32>
    %113 = tpu.matmul %112, %98, %cst_36 {dimension_numbers = #tpu.dot_dimension_numbers<[1], [0], [0], [1], [0, 0, 1, 1], [], []>} : vector<8x8xbf16>, vector<8x16xbf16>, vector<8x16xf32> -> vector<8x16xf32>
    %114 = vector.extract_strided_slice %1 {offsets = [0, 96], sizes = [8, 16], strides = [1, 1]} : vector<8x128xbf16> to vector<8x16xbf16>
    %115 = vector.extract_strided_slice %3 {offsets = [0, 96], sizes = [8, 16], strides = [1, 1]} : vector<8x128xbf16> to vector<8x16xbf16>
    %116 = vector.extract_strided_slice %5 {offsets = [0, 96], sizes = [8, 16], strides = [1, 1]} : vector<8x128xbf16> to vector<8x16xbf16>
    %cst_37 = arith.constant dense<0.000000e+00> : vector<8x8xf32>
    %117 = tpu.matmul %114, %115, %cst_37 {dimension_numbers = #tpu.dot_dimension_numbers<[1], [1], [0], [0], [0, 0, 1, 0], [], []>} : vector<8x16xbf16>, vector<8x16xbf16>, vector<8x8xf32> -> vector<8x8xf32>
    %cst_38 = arith.constant 2.500000e-01 : f32
    %118 = vector.broadcast %cst_38 : f32 to vector<8x8xf32>
    %119 = arith.mulf %117, %118 : vector<8x8xf32>
    %cst_39 = arith.constant dense<0xFF800000> : vector<8xf32>
    %120 = vector.multi_reduction <maximumf>, %119, %cst_39 [1] : vector<8x8xf32> to vector<8xf32>
    %121 = vector.shape_cast %120 : vector<8xf32> to vector<8x1xf32>
    %122 = vector.broadcast %121 : vector<8x1xf32> to vector<8x8xf32>
    %123 = arith.subf %119, %122 : vector<8x8xf32>
    %124 = math.exp %123 : vector<8x8xf32>
    %cst_40 = arith.constant dense<0.000000e+00> : vector<8xf32>
    %125 = vector.multi_reduction <add>, %124, %cst_40 [1] : vector<8x8xf32> to vector<8xf32>
    %126 = vector.shape_cast %125 : vector<8xf32> to vector<8x1xf32>
    %127 = tpu.reciprocal %126 {approx = true} : vector<8x1xf32> -> vector<8x1xf32>
    %128 = vector.broadcast %127 : vector<8x1xf32> to vector<8x8xf32>
    %129 = arith.mulf %124, %128 : vector<8x8xf32>
    %130 = arith.truncf %129 : vector<8x8xf32> to vector<8x8xbf16>
    %cst_41 = arith.constant dense<0.000000e+00> : vector<8x16xf32>
    %131 = tpu.matmul %130, %116, %cst_41 {dimension_numbers = #tpu.dot_dimension_numbers<[1], [0], [0], [1], [0, 0, 1, 1], [], []>} : vector<8x8xbf16>, vector<8x16xbf16>, vector<8x16xf32> -> vector<8x16xf32>
    %132 = vector.extract_strided_slice %1 {offsets = [0, 112], sizes = [8, 16], strides = [1, 1]} : vector<8x128xbf16> to vector<8x16xbf16>
    %133 = vector.extract_strided_slice %3 {offsets = [0, 112], sizes = [8, 16], strides = [1, 1]} : vector<8x128xbf16> to vector<8x16xbf16>
    %134 = vector.extract_strided_slice %5 {offsets = [0, 112], sizes = [8, 16], strides = [1, 1]} : vector<8x128xbf16> to vector<8x16xbf16>
    %cst_42 = arith.constant dense<0.000000e+00> : vector<8x8xf32>
    %135 = tpu.matmul %132, %133, %cst_42 {dimension_numbers = #tpu.dot_dimension_numbers<[1], [1], [0], [0], [0, 0, 1, 0], [], []>} : vector<8x16xbf16>, vector<8x16xbf16>, vector<8x8xf32> -> vector<8x8xf32>
    %cst_43 = arith.constant 2.500000e-01 : f32
    %136 = vector.broadcast %cst_43 : f32 to vector<8x8xf32>
    %137 = arith.mulf %135, %136 : vector<8x8xf32>
    %cst_44 = arith.constant dense<0xFF800000> : vector<8xf32>
    %138 = vector.multi_reduction <maximumf>, %137, %cst_44 [1] : vector<8x8xf32> to vector<8xf32>
    %139 = vector.shape_cast %138 : vector<8xf32> to vector<8x1xf32>
    %140 = vector.broadcast %139 : vector<8x1xf32> to vector<8x8xf32>
    %141 = arith.subf %137, %140 : vector<8x8xf32>
    %142 = math.exp %141 : vector<8x8xf32>
    %cst_45 = arith.constant dense<0.000000e+00> : vector<8xf32>
    %143 = vector.multi_reduction <add>, %142, %cst_45 [1] : vector<8x8xf32> to vector<8xf32>
    %144 = vector.shape_cast %143 : vector<8xf32> to vector<8x1xf32>
    %145 = tpu.reciprocal %144 {approx = true} : vector<8x1xf32> -> vector<8x1xf32>
    %146 = vector.broadcast %145 : vector<8x1xf32> to vector<8x8xf32>
    %147 = arith.mulf %142, %146 : vector<8x8xf32>
    %148 = arith.truncf %147 : vector<8x8xf32> to vector<8x8xbf16>
    %cst_46 = arith.constant dense<0.000000e+00> : vector<8x16xf32>
    %149 = tpu.matmul %148, %134, %cst_46 {dimension_numbers = #tpu.dot_dimension_numbers<[1], [0], [0], [1], [0, 0, 1, 1], [], []>} : vector<8x8xbf16>, vector<8x16xbf16>, vector<8x16xf32> -> vector<8x16xf32>
    %150 = tpu.concatenate %23, %41, %59, %77, %95, %113, %131, %149 in 1 : vector<8x16xf32>, vector<8x16xf32>, vector<8x16xf32>, vector<8x16xf32>, vector<8x16xf32>, vector<8x16xf32>, vector<8x16xf32>, vector<8x16xf32> -> vector<8x128xf32>
    %151 = arith.truncf %150 : vector<8x128xf32> to vector<8x128xbf16>
    %c0_47 = arith.constant 0 : index
    %c0_48 = arith.constant 0 : index
    %c0_49 = arith.constant 0 : index
    %152 = vector.load %arg4[%c0_47, %c0_48, %c0_49] : memref<1x8x128xbf16, #tpu.memory_space<vmem>>, vector<1x8x128xbf16>
    %153 = vector.shape_cast %152 : vector<1x8x128xbf16> to vector<8x128xbf16>
    %154 = vector.shape_cast %151 : vector<8x128xbf16> to vector<1x8x128xbf16>
    tpu.vector_store %arg4[%c0_47, %c0_48, %c0_49], %154 {strides = array<i32>} : memref<1x8x128xbf16, #tpu.memory_space<vmem>>, vector<1x8x128xbf16>,
    return
  }
  func.func @transform_0(%arg0: i32) -> (i32, i32, i32) {
    %c0_i32 = arith.constant 0 : i32
    %c0_i32_0 = arith.constant 0 : i32
    %c0_i32_1 = arith.constant 0 : i32
    return %arg0, %c0_i32, %c0_i32_0 : i32, i32, i32
  }
  func.func @transform_1(%arg0: i32) -> (i32, i32, i32) {
    %c0_i32 = arith.constant 0 : i32
    %c0_i32_0 = arith.constant 0 : i32
    %c0_i32_1 = arith.constant 0 : i32
    return %arg0, %c0_i32, %c0_i32_0 : i32, i32, i32
  }
  func.func @transform_2(%arg0: i32) -> (i32, i32, i32) {
    %c0_i32 = arith.constant 0 : i32
    %c0_i32_0 = arith.constant 0 : i32
    %c0_i32_1 = arith.constant 0 : i32
    return %arg0, %c0_i32, %c0_i32_0 : i32, i32, i32
  }
  func.func @transform_3(%arg0: i32) -> (i32, i32, i32) {
    %c0_i32 = arith.constant 0 : i32
    %c0_i32_0 = arith.constant 0 : i32
    %c0_i32_1 = arith.constant 0 : i32
    return %arg0, %c0_i32, %c0_i32_0 : i32, i32, i32
  }
}

module attributes {stable_mosaic.version = 11 : i64} {
  func.func @_dense_kernel(%arg0: i32, %arg1: i32, %arg2: i32, %arg3: memref<16x128xbf16, #tpu.memory_space<vmem>>, %arg4: memref<128x256xbf16, #tpu.memory_space<vmem>>, %arg5: memref<1x256xf32, #tpu.memory_space<vmem>>, %arg6: memref<16x256xbf16, #tpu.memory_space<vmem>>, %arg7: memref<16x256xf32, #tpu.memory_space<vmem>>) attributes {dimension_semantics = [#tpu.dimension_semantics<parallel>, #tpu.dimension_semantics<parallel>, #tpu.dimension_semantics<arbitrary>], iteration_bounds = array<i64: 1, 8, 1>, scalar_prefetch = 0 : i64, scratch_operands = 1 : i64, tpu.core_type = #tpu.core_type<tc>, window_params = [{transform_indices = @transform_0, window_bounds = array<i64: 16, 128>}, {transform_indices = @transform_1, window_bounds = array<i64: 128, 256>}, {transform_indices = @transform_2, window_bounds = array<i64: 1, 256>}, {transform_indices = @transform_3, window_bounds = array<i64: 16, 256>}]} {
    %c0_i32 = arith.constant 0 : i32
    %0 = arith.cmpi eq, %arg2, %c0_i32 : i32
    %1 = arith.extui %0 : i1 to i32
    %c0_i32_0 = arith.constant 0 : i32
    %2 = arith.cmpi ne, %1, %c0_i32_0 : i32
    scf.if %2 {
      %cst_10 = arith.constant 0.000000e+00 : f32
      %12 = vector.broadcast %cst_10 : f32 to vector<16x256xf32>
      %c0_11 = arith.constant 0 : index
      %c0_12 = arith.constant 0 : index
      %13 = vector.load %arg7[%c0_11, %c0_12] : memref<16x256xf32, #tpu.memory_space<vmem>>, vector<16x256xf32>
      tpu.vector_store %arg7[%c0_11, %c0_12], %12 {strides = array<i32>} : memref<16x256xf32, #tpu.memory_space<vmem>>, vector<16x256xf32>,
    } else {
    }
    %c0 = arith.constant 0 : index
    %c0_1 = arith.constant 0 : index
    %3 = vector.load %arg7[%c0, %c0_1] : memref<16x256xf32, #tpu.memory_space<vmem>>, vector<16x256xf32>
    %c0_2 = arith.constant 0 : index
    %c0_3 = arith.constant 0 : index
    %4 = vector.load %arg3[%c0_2, %c0_3] : memref<16x128xbf16, #tpu.memory_space<vmem>>, vector<16x128xbf16>
    %c0_4 = arith.constant 0 : index
    %c0_5 = arith.constant 0 : index
    %5 = vector.load %arg4[%c0_4, %c0_5] : memref<128x256xbf16, #tpu.memory_space<vmem>>, vector<128x256xbf16>
    %cst = arith.constant dense<0.000000e+00> : vector<16x256xf32>
    %6 = tpu.matmul %4, %5, %cst {dimension_numbers = #tpu.dot_dimension_numbers<[1], [0], [0], [1], [0, 0, 1, 1], [], []>} : vector<16x128xbf16>, vector<128x256xbf16>, vector<16x256xf32> -> vector<16x256xf32>
    %7 = arith.addf %3, %6 : vector<16x256xf32>
    %c0_6 = arith.constant 0 : index
    %c0_7 = arith.constant 0 : index
    %8 = vector.load %arg7[%c0_6, %c0_7] : memref<16x256xf32, #tpu.memory_space<vmem>>, vector<16x256xf32>
    tpu.vector_store %arg7[%c0_6, %c0_7], %7 {strides = array<i32>} : memref<16x256xf32, #tpu.memory_space<vmem>>, vector<16x256xf32>,
    %c0_i32_8 = arith.constant 0 : i32
    %9 = arith.cmpi eq, %arg2, %c0_i32_8 : i32
    %10 = arith.extui %9 : i1 to i32
    %c0_i32_9 = arith.constant 0 : i32
    %11 = arith.cmpi ne, %10, %c0_i32_9 : i32
    scf.if %11 {
      %c0_10 = arith.constant 0 : index
      %c0_11 = arith.constant 0 : index
      %12 = vector.load %arg7[%c0_10, %c0_11] : memref<16x256xf32, #tpu.memory_space<vmem>>, vector<16x256xf32>
      %c0_12 = arith.constant 0 : index
      %c0_13 = arith.constant 0 : index
      %13 = vector.load %arg5[%c0_12, %c0_13] : memref<1x256xf32, #tpu.memory_space<vmem>>, vector<1x256xf32>
      %14 = vector.broadcast %13 : vector<1x256xf32> to vector<16x256xf32>
      %15 = arith.addf %12, %14 : vector<16x256xf32>
      %cst_14 = arith.constant 0.000000e+00 : f32
      %16 = vector.broadcast %cst_14 : f32 to vector<16x256xf32>
      %17 = arith.maximumf %15, %16 : vector<16x256xf32>
      %18 = arith.truncf %17 : vector<16x256xf32> to vector<16x256xbf16>
      %c0_15 = arith.constant 0 : index
      %c0_16 = arith.constant 0 : index
      %19 = vector.load %arg6[%c0_15, %c0_16] : memref<16x256xbf16, #tpu.memory_space<vmem>>, vector<16x256xbf16>
      tpu.vector_store %arg6[%c0_15, %c0_16], %18 {strides = array<i32>} : memref<16x256xbf16, #tpu.memory_space<vmem>>, vector<16x256xbf16>,
    } else {
    }
    return
  }
  func.func @transform_0(%arg0: i32, %arg1: i32, %arg2: i32) -> (i32, i32) {
    %c0_i32 = arith.constant 0 : i32
    return %arg0, %arg2 : i32, i32
  }
  func.func @transform_1(%arg0: i32, %arg1: i32, %arg2: i32) -> (i32, i32) {
    %c0_i32 = arith.constant 0 : i32
    return %arg2, %arg1 : i32, i32
  }
  func.func @transform_2(%arg0: i32, %arg1: i32, %arg2: i32) -> (i32, i32) {
    %c0_i32 = arith.constant 0 : i32
    %c0_i32_0 = arith.constant 0 : i32
    return %c0_i32, %arg1 : i32, i32
  }
  func.func @transform_3(%arg0: i32, %arg1: i32, %arg2: i32) -> (i32, i32) {
    %c0_i32 = arith.constant 0 : i32
    return %arg0, %arg1 : i32, i32
  }
}

module attributes {stable_mosaic.version = 11 : i64} {
  func.func @_pool_cls_kernel(%arg0: memref<2x8x128xbf16, #tpu.memory_space<vmem>>, %arg1: memref<128x128xbf16, #tpu.memory_space<vmem>>, %arg2: memref<1x128xf32, #tpu.memory_space<vmem>>, %arg3: memref<2x128xf32, #tpu.memory_space<vmem>>) attributes {dimension_semantics = [], scalar_prefetch = 0 : i64, scratch_operands = 0 : i64, tpu.core_type = #tpu.core_type<tc>} {
    %c0 = arith.constant 0 : index
    %c0_0 = arith.constant 0 : index
    %c0_1 = arith.constant 0 : index
    %0 = vector.load %arg0[%c0, %c0_0, %c0_1] : memref<2x8x128xbf16, #tpu.memory_space<vmem>>, vector<2x8x128xbf16>
    %1 = arith.extf %0 : vector<2x8x128xbf16> to vector<2x8x128xf32>
    %cst = arith.constant dense<0.000000e+00> : vector<2x128xf32>
    %2 = vector.multi_reduction <add>, %1, %cst [1] : vector<2x8x128xf32> to vector<2x128xf32>
    %cst_2 = arith.constant 1.250000e-01 : f32
    %3 = vector.broadcast %cst_2 : f32 to vector<2x128xf32>
    %4 = arith.mulf %2, %3 : vector<2x128xf32>
    %5 = arith.truncf %4 : vector<2x128xf32> to vector<2x128xbf16>
    %c0_3 = arith.constant 0 : index
    %c0_4 = arith.constant 0 : index
    %6 = vector.load %arg1[%c0_3, %c0_4] : memref<128x128xbf16, #tpu.memory_space<vmem>>, vector<128x128xbf16>
    %cst_5 = arith.constant dense<0.000000e+00> : vector<2x128xf32>
    %7 = tpu.matmul %5, %6, %cst_5 {dimension_numbers = #tpu.dot_dimension_numbers<[1], [0], [0], [1], [0, 0, 1, 1], [], []>} : vector<2x128xbf16>, vector<128x128xbf16>, vector<2x128xf32> -> vector<2x128xf32>
    %c0_6 = arith.constant 0 : index
    %c0_7 = arith.constant 0 : index
    %8 = vector.load %arg2[%c0_6, %c0_7] : memref<1x128xf32, #tpu.memory_space<vmem>>, vector<1x128xf32>
    %9 = vector.broadcast %8 : vector<1x128xf32> to vector<2x128xf32>
    %10 = arith.addf %7, %9 : vector<2x128xf32>
    %c0_8 = arith.constant 0 : index
    %c0_9 = arith.constant 0 : index
    %11 = vector.load %arg3[%c0_8, %c0_9] : memref<2x128xf32, #tpu.memory_space<vmem>>, vector<2x128xf32>
    tpu.vector_store %arg3[%c0_8, %c0_9], %10 {strides = array<i32>} : memref<2x128xf32, #tpu.memory_space<vmem>>, vector<2x128xf32>,
    return
  }
}

module attributes {stable_mosaic.version = 11 : i64} {
  func.func @_dense_res_ln_kernel(%arg0: i32, %arg1: i32, %arg2: memref<8x256xbf16, #tpu.memory_space<vmem>>, %arg3: memref<256x128xbf16, #tpu.memory_space<vmem>>, %arg4: memref<1x128xf32, #tpu.memory_space<vmem>>, %arg5: memref<8x128xbf16, #tpu.memory_space<vmem>>, %arg6: memref<1x128xf32, #tpu.memory_space<vmem>>, %arg7: memref<1x128xf32, #tpu.memory_space<vmem>>, %arg8: memref<8x128xbf16, #tpu.memory_space<vmem>>, %arg9: memref<8x128xf32, #tpu.memory_space<vmem>>) attributes {dimension_semantics = [#tpu.dimension_semantics<parallel>, #tpu.dimension_semantics<arbitrary>], iteration_bounds = array<i64: 2, 8>, scalar_prefetch = 0 : i64, scratch_operands = 1 : i64, tpu.core_type = #tpu.core_type<tc>, window_params = [{transform_indices = @transform_0, window_bounds = array<i64: 8, 256>}, {transform_indices = @transform_1, window_bounds = array<i64: 256, 128>}, {pipeline_mode = #tpu.pipeline_mode<synchronous>, transform_indices = @transform_2, window_bounds = array<i64: 1, 128>}, {transform_indices = @transform_3, window_bounds = array<i64: 8, 128>}, {pipeline_mode = #tpu.pipeline_mode<synchronous>, transform_indices = @transform_4, window_bounds = array<i64: 1, 128>}, {pipeline_mode = #tpu.pipeline_mode<synchronous>, transform_indices = @transform_5, window_bounds = array<i64: 1, 128>}, {transform_indices = @transform_6, window_bounds = array<i64: 8, 128>}]} {
    %c0_i32 = arith.constant 0 : i32
    %0 = arith.cmpi eq, %arg1, %c0_i32 : i32
    %1 = arith.extui %0 : i1 to i32
    %c0_i32_0 = arith.constant 0 : i32
    %2 = arith.cmpi ne, %1, %c0_i32_0 : i32
    scf.if %2 {
      %cst_9 = arith.constant 0.000000e+00 : f32
      %12 = vector.broadcast %cst_9 : f32 to vector<8x128xf32>
      %c0_10 = arith.constant 0 : index
      %c0_11 = arith.constant 0 : index
      %13 = vector.load %arg9[%c0_10, %c0_11] : memref<8x128xf32, #tpu.memory_space<vmem>>, vector<8x128xf32>
      tpu.vector_store %arg9[%c0_10, %c0_11], %12 {strides = array<i32>} : memref<8x128xf32, #tpu.memory_space<vmem>>, vector<8x128xf32>,
    } else {
    }
    %c0 = arith.constant 0 : index
    %c0_1 = arith.constant 0 : index
    %3 = vector.load %arg9[%c0, %c0_1] : memref<8x128xf32, #tpu.memory_space<vmem>>, vector<8x128xf32>
    %c0_2 = arith.constant 0 : index
    %c0_3 = arith.constant 0 : index
    %4 = vector.load %arg2[%c0_2, %c0_3] : memref<8x256xbf16, #tpu.memory_space<vmem>>, vector<8x256xbf16>
    %c0_4 = arith.constant 0 : index
    %c0_5 = arith.constant 0 : index
    %5 = vector.load %arg3[%c0_4, %c0_5] : memref<256x128xbf16, #tpu.memory_space<vmem>>, vector<256x128xbf16>
    %cst = arith.constant dense<0.000000e+00> : vector<8x128xf32>
    %6 = tpu.matmul %4, %5, %cst {dimension_numbers = #tpu.dot_dimension_numbers<[1], [0], [0], [1], [0, 0, 1, 1], [], []>} : vector<8x256xbf16>, vector<256x128xbf16>, vector<8x128xf32> -> vector<8x128xf32>
    %7 = arith.addf %3, %6 : vector<8x128xf32>
    %c0_6 = arith.constant 0 : index
    %c0_7 = arith.constant 0 : index
    %8 = vector.load %arg9[%c0_6, %c0_7] : memref<8x128xf32, #tpu.memory_space<vmem>>, vector<8x128xf32>
    tpu.vector_store %arg9[%c0_6, %c0_7], %7 {strides = array<i32>} : memref<8x128xf32, #tpu.memory_space<vmem>>, vector<8x128xf32>,
    %c7_i32 = arith.constant 7 : i32
    %9 = arith.cmpi eq, %arg1, %c7_i32 : i32
    %10 = arith.extui %9 : i1 to i32
    %c0_i32_8 = arith.constant 0 : i32
    %11 = arith.cmpi ne, %10, %c0_i32_8 : i32
    scf.if %11 {
      %c0_9 = arith.constant 0 : index
      %c0_10 = arith.constant 0 : index
      %12 = vector.load %arg9[%c0_9, %c0_10] : memref<8x128xf32, #tpu.memory_space<vmem>>, vector<8x128xf32>
      %c0_11 = arith.constant 0 : index
      %c0_12 = arith.constant 0 : index
      %13 = vector.load %arg4[%c0_11, %c0_12] : memref<1x128xf32, #tpu.memory_space<vmem>>, vector<1x128xf32>
      %14 = vector.broadcast %13 : vector<1x128xf32> to vector<8x128xf32>
      %15 = arith.addf %12, %14 : vector<8x128xf32>
      %c0_13 = arith.constant 0 : index
      %c0_14 = arith.constant 0 : index
      %16 = vector.load %arg5[%c0_13, %c0_14] : memref<8x128xbf16, #tpu.memory_space<vmem>>, vector<8x128xbf16>
      %17 = arith.extf %16 : vector<8x128xbf16> to vector<8x128xf32>
      %18 = arith.addf %15, %17 : vector<8x128xf32>
      %cst_15 = arith.constant dense<0.000000e+00> : vector<8xf32>
      %19 = vector.multi_reduction <add>, %18, %cst_15 [1] : vector<8x128xf32> to vector<8xf32>
      %20 = vector.shape_cast %19 : vector<8xf32> to vector<8x1xf32>
      %cst_16 = arith.constant 1.280000e+02 : f32
      %21 = vector.broadcast %cst_16 : f32 to vector<8x1xf32>
      %22 = arith.divf %20, %21 : vector<8x1xf32>
      %23 = vector.broadcast %22 : vector<8x1xf32> to vector<8x128xf32>
      %24 = arith.subf %18, %23 : vector<8x128xf32>
      %25 = arith.mulf %24, %24 : vector<8x128xf32>
      %cst_17 = arith.constant dense<0.000000e+00> : vector<8xf32>
      %26 = vector.multi_reduction <add>, %25, %cst_17 [1] : vector<8x128xf32> to vector<8xf32>
      %27 = vector.shape_cast %26 : vector<8xf32> to vector<8x1xf32>
      %cst_18 = arith.constant 1.280000e+02 : f32
      %28 = vector.broadcast %cst_18 : f32 to vector<8x1xf32>
      %29 = arith.divf %27, %28 : vector<8x1xf32>
      %cst_19 = arith.constant 9.99999974E-6 : f32
      %30 = vector.broadcast %cst_19 : f32 to vector<8x1xf32>
      %31 = arith.addf %29, %30 : vector<8x1xf32>
      %32 = math.rsqrt %31 : vector<8x1xf32>
      %33 = vector.broadcast %22 : vector<8x1xf32> to vector<8x128xf32>
      %34 = arith.subf %18, %33 : vector<8x128xf32>
      %35 = vector.broadcast %32 : vector<8x1xf32> to vector<8x128xf32>
      %36 = arith.mulf %34, %35 : vector<8x128xf32>
      %c0_20 = arith.constant 0 : index
      %c0_21 = arith.constant 0 : index
      %37 = vector.load %arg6[%c0_20, %c0_21] : memref<1x128xf32, #tpu.memory_space<vmem>>, vector<1x128xf32>
      %38 = vector.broadcast %37 : vector<1x128xf32> to vector<8x128xf32>
      %39 = arith.mulf %36, %38 : vector<8x128xf32>
      %c0_22 = arith.constant 0 : index
      %c0_23 = arith.constant 0 : index
      %40 = vector.load %arg7[%c0_22, %c0_23] : memref<1x128xf32, #tpu.memory_space<vmem>>, vector<1x128xf32>
      %41 = vector.broadcast %40 : vector<1x128xf32> to vector<8x128xf32>
      %42 = arith.addf %39, %41 : vector<8x128xf32>
      %43 = arith.truncf %42 : vector<8x128xf32> to vector<8x128xbf16>
      %c0_24 = arith.constant 0 : index
      %c0_25 = arith.constant 0 : index
      %44 = vector.load %arg8[%c0_24, %c0_25] : memref<8x128xbf16, #tpu.memory_space<vmem>>, vector<8x128xbf16>
      tpu.vector_store %arg8[%c0_24, %c0_25], %43 {strides = array<i32>} : memref<8x128xbf16, #tpu.memory_space<vmem>>, vector<8x128xbf16>,
    } else {
    }
    return
  }
  func.func @transform_0(%arg0: i32, %arg1: i32) -> (i32, i32) {
    %c0_i32 = arith.constant 0 : i32
    return %arg0, %arg1 : i32, i32
  }
  func.func @transform_1(%arg0: i32, %arg1: i32) -> (i32, i32) {
    %c0_i32 = arith.constant 0 : i32
    %c0_i32_0 = arith.constant 0 : i32
    return %arg1, %c0_i32 : i32, i32
  }
  func.func @transform_2(%arg0: i32, %arg1: i32) -> (i32, i32) {
    %c0_i32 = arith.constant 0 : i32
    %c0_i32_0 = arith.constant 0 : i32
    %c0_i32_1 = arith.constant 0 : i32
    return %c0_i32, %c0_i32_0 : i32, i32
  }
  func.func @transform_3(%arg0: i32, %arg1: i32) -> (i32, i32) {
    %c0_i32 = arith.constant 0 : i32
    %c0_i32_0 = arith.constant 0 : i32
    return %arg0, %c0_i32 : i32, i32
  }
  func.func @transform_4(%arg0: i32, %arg1: i32) -> (i32, i32) {
    %c0_i32 = arith.constant 0 : i32
    %c0_i32_0 = arith.constant 0 : i32
    %c0_i32_1 = arith.constant 0 : i32
    return %c0_i32, %c0_i32_0 : i32, i32
  }
  func.func @transform_5(%arg0: i32, %arg1: i32) -> (i32, i32) {
    %c0_i32 = arith.constant 0 : i32
    %c0_i32_0 = arith.constant 0 : i32
    %c0_i32_1 = arith.constant 0 : i32
    return %c0_i32, %c0_i32_0 : i32, i32
  }
  func.func @transform_6(%arg0: i32, %arg1: i32) -> (i32, i32) {
    %c0_i32 = arith.constant 0 : i32
    %c0_i32_0 = arith.constant 0 : i32
    return %arg0, %c0_i32 : i32, i32
  }
}

</mosaic_0001>

<llo_original>
// kernel: _lambda_.13
$region0: #{_lambda_.13}
  #allocation0 [shape = 'u32[]', space=smem, size = 0x4, offset = 0x4, fixed_abs, tag = 'smem constant byte address 0x4 - core index']
  #allocation1 [shape = 'u32[72,128]{1,0:T(1,128)}', space=vmem, size = 0x9000, scoped, tag = 'internal scratch']
  #allocation2 [shape = 'f32[8,128]{1,0:T(8,128)}', space=vmem, size = 0x1000, scoped, tag = 'scratch operand']
  %s0 = inlined_call_operand.vmem [shape: bf16[16,128], index: 0, kind: input, shape index: {}]
  %s1 = inlined_call_operand.vmem [shape: bf16[128,128], index: 1, kind: input, shape index: {}]
  %s2 = inlined_call_operand.vmem [shape: f32[1,128], index: 2, kind: input, shape index: {}]
  %s3 = inlined_call_operand.vmem [shape: bf16[16,128], index: 3, kind: input, shape index: {}]
  %s4 = inlined_call_operand.vmem [shape: f32[1,128], index: 4, kind: input, shape index: {}]
  %s5 = inlined_call_operand.vmem [shape: f32[1,128], index: 5, kind: input, shape index: {}]
  %s6 = inlined_call_operand.vmem [shape: bf16[16,128], index: 6, kind: output, shape index: {}]
  %s7 = sld [smem:[#allocation0]]
  $region65: #{_lambda_.13} parent=0
    _
  %s9 = ssub.s32 1, %s7
  %s10 = scalar_select 0, %s9, %s7
  loop: start=0, step=1, limit=4
  $region2: #{_lambda_.13} parent=0 // loop_pre_header
    _
  $region3: #{_lambda_.13} parent=0 // loop_header
    %s12 = sphi 0, %s16
    %p13 = scmp.ge.s32.totalorder %s12, 4
    %s19 = sphi 0, %s31
    %s20 = sphi 0, %s27
    %s21 = sphi 0, %s19
    %s22 = sphi 0, %s20
    %s23 = sphi 0, %s21
    %s24 = sphi 0, %s22
    %s36 = sphi 0, %s38
    %s39 = sphi 0, %s36
    %s40 = sphi 0, %s39
    %s56 = sphi 0, %s40
    %s62 = sphi 0, %s64
    %s65 = sphi 0, %s62
    %s66 = sphi 0, %s65
    %s82 = sphi 0, %s66
    %s86 = sphi 0, %s86
    %s88 = sphi 0, %s86
    %s89 = sphi 0, %s88
    %s103 = sphi 0, %s89
    %s109 = sphi 0, %s111
    %s112 = sphi 0, %s109
    %s113 = sphi 0, %s112
    %s129 = sphi 0, %s113
    %s133 = sphi 0, %s133
    %s135 = sphi 0, %s133
    %s136 = sphi 0, %s135
    %s150 = sphi 0, %s136
    %s154 = sphi 0, %s154
    %s156 = sphi 0, %s154
    %s157 = sphi 0, %s156
    %s171 = sphi 0, %s157
    %s177 = sphi 0, %s179
    %s180 = sphi 0, %s177
    %s181 = sphi 0, %s180
    %s197 = sphi 0, %s181
  $region4: #{_lambda_.13} parent=0 // loop_header_branch
    %15 = sbr.rel (%p13) target = $region8
  $region5: #{_lambda_.13} parent=0 // loop_body
    %s17 = ssub.s32 %s12, 1
    %s18 = ssub.s32 %s12, 2
    %s25 = sadd.s32 1, %s20
    %p26 = scmp.ge.s32.totalorder %s25, 1
    %s27 = scalar_select %p26, 0, %s25
    %s28 = sadd.s32 1, %s19
    %s29 = scalar_select %p26, %s28, %s19
    %p30 = scmp.ge.s32.totalorder %s29, 2
    %s31 = scalar_select %p30, 0, %s29
    %s32 = ssub.s32 %s19, %s31
    %s33 = ssub.s32 %s20, %s27
    %s34 = sor.u32 %s32, %s33
    %p35 = scmp.eq.s32.totalorder %s34, 0
    %s37 = sadd.s32 %s36, 1
    %s38 = scalar_select %p35, %s36, %s37
    %p41 = pneg %p35
    %p42 = scmp.eq.s32.totalorder %s12, 1
    %p43 = por %p41, %p42
    %p44 = scmp.ne.s32.totalorder %s36, %s39
    %p45 = scmp.eq.s32.totalorder %s12, 0
    %p46 = por %p44, %p45
    %p47 = scmp.ne.s32.totalorder %s36, %s39
    %p48 = scmp.eq.s32.totalorder %s17, 1
    %p49 = por %p47, %p48
    %p50 = scmp.ne.s32.totalorder %s39, %s40
    %p51 = scmp.eq.s32.totalorder %s17, 0
    %p52 = por %p50, %p51
    %p53 = scmp.ne.s32.totalorder %s39, %s40
    %p54 = scmp.eq.s32.totalorder %s18, 1
    %p55 = por %p53, %p54
    %p57 = scmp.ne.s32.totalorder %s40, %s56
    %p58 = scmp.eq.s32.totalorder %s18, 0
    %p59 = por %p57, %p58
    %s60 = ssub.s32 %s20, %s27
    %p61 = scmp.eq.s32.totalorder %s60, 0
    %s63 = sadd.s32 %s62, 1
    %s64 = scalar_select %p61, %s62, %s63
    %p67 = pneg %p61
    %p68 = scmp.eq.s32.totalorder %s12, 1
    %p69 = por %p67, %p68
    %p70 = scmp.ne.s32.totalorder %s62, %s65
    %p71 = scmp.eq.s32.totalorder %s12, 0
    %p72 = por %p70, %p71
    %p73 = scmp.ne.s32.totalorder %s62, %s65
    %p74 = scmp.eq.s32.totalorder %s17, 1
    %p75 = por %p73, %p74
    %p76 = scmp.ne.s32.totalorder %s65, %s66
    %p77 = scmp.eq.s32.totalorder %s17, 0
    %p78 = por %p76, %p77
    %p79 = scmp.ne.s32.totalorder %s65, %s66
    %p80 = scmp.eq.s32.totalorder %s18, 1
    %p81 = por %p79, %p80
    %p83 = scmp.ne.s32.totalorder %s66, %s82
    %p84 = scmp.eq.s32.totalorder %s18, 0
    %p85 = por %p83, %p84
    %s87 = sadd.s32 %s86, 1
    %p90 = scmp.eq.s32.totalorder %s12, 1
    %p91 = scmp.ne.s32.totalorder %s86, %s88
    %p92 = scmp.eq.s32.totalorder %s12, 0
    %p93 = por %p91, %p92
    %p94 = scmp.ne.s32.totalorder %s86, %s88
    %p95 = scmp.eq.s32.totalorder %s17, 1
    %p96 = por %p94, %p95
    %p97 = scmp.ne.s32.totalorder %s88, %s89
    %p98 = scmp.eq.s32.totalorder %s17, 0
    %p99 = por %p97, %p98
    %p100 = scmp.ne.s32.totalorder %s88, %s89
    %p101 = scmp.eq.s32.totalorder %s18, 1
    %p102 = por %p100, %p101
    %p104 = scmp.ne.s32.totalorder %s89, %s103
    %p105 = scmp.eq.s32.totalorder %s18, 0
    %p106 = por %p104, %p105
    %s107 = ssub.s32 %s19, %s31
    %p108 = scmp.eq.s32.totalorder %s107, 0
    %s110 = sadd.s32 %s109, 1
    %s111 = scalar_select %p108, %s109, %s110
    %p114 = pneg %p108
    %p115 = scmp.eq.s32.totalorder %s12, 1
    %p116 = por %p114, %p115
    %p117 = scmp.ne.s32.totalorder %s109, %s112
    %p118 = scmp.eq.s32.totalorder %s12, 0
    %p119 = por %p117, %p118
    %p120 = scmp.ne.s32.totalorder %s109, %s112
    %p121 = scmp.eq.s32.totalorder %s17, 1
    %p122 = por %p120, %p121
    %p123 = scmp.ne.s32.totalorder %s112, %s113
    %p124 = scmp.eq.s32.totalorder %s17, 0
    %p125 = por %p123, %p124
    %p126 = scmp.ne.s32.totalorder %s112, %s113
    %p127 = scmp.eq.s32.totalorder %s18, 1
    %p128 = por %p126, %p127
    %p130 = scmp.ne.s32.totalorder %s113, %s129
    %p131 = scmp.eq.s32.totalorder %s18, 0
    %p132 = por %p130, %p131
    %s134 = sadd.s32 %s133, 1
    %p137 = scmp.eq.s32.totalorder %s12, 1
    %p138 = scmp.ne.s32.totalorder %s133, %s135
    %p139 = scmp.eq.s32.totalorder %s12, 0
    %p140 = por %p138, %p139
    %p141 = scmp.ne.s32.totalorder %s133, %s135
    %p142 = scmp.eq.s32.totalorder %s17, 1
    %p143 = por %p141, %p142
    %p144 = scmp.ne.s32.totalorder %s135, %s136
    %p145 = scmp.eq.s32.totalorder %s17, 0
    %p146 = por %p144, %p145
    %p147 = scmp.ne.s32.totalorder %s135, %s136
    %p148 = scmp.eq.s32.totalorder %s18, 1
    %p149 = por %p147, %p148
    %p151 = scmp.ne.s32.totalorder %s136, %s150
    %p152 = scmp.eq.s32.totalorder %s18, 0
    %p153 = por %p151, %p152
    %s155 = sadd.s32 %s154, 1
    %p158 = scmp.eq.s32.totalorder %s12, 1
    %p159 = scmp.ne.s32.totalorder %s154, %s156
    %p160 = scmp.eq.s32.totalorder %s12, 0
    %p161 = por %p159, %p160
    %p162 = scmp.ne.s32.totalorder %s154, %s156
    %p163 = scmp.eq.s32.totalorder %s17, 1
    %p164 = por %p162, %p163
    %p165 = scmp.ne.s32.totalorder %s156, %s157
    %p166 = scmp.eq.s32.totalorder %s17, 0
    %p167 = por %p165, %p166
    %p168 = scmp.ne.s32.totalorder %s156, %s157
    %p169 = scmp.eq.s32.totalorder %s18, 1
    %p170 = por %p168, %p169
    %p172 = scmp.ne.s32.totalorder %s157, %s171
    %p173 = scmp.eq.s32.totalorder %s18, 0
    %p174 = por %p172, %p173
    %s175 = ssub.s32 %s19, %s31
    %p176 = scmp.eq.s32.totalorder %s175, 0
    %s178 = sadd.s32 %s177, 1
    %s179 = scalar_select %p176, %s177, %s178
    %p182 = pneg %p176
    %p183 = scmp.eq.s32.totalorder %s12, 1
    %p184 = por %p182, %p183
    %p185 = scmp.ne.s32.totalorder %s177, %s180
    %p186 = scmp.eq.s32.totalorder %s12, 0
    %p187 = por %p185, %p186
    %p188 = scmp.ne.s32.totalorder %s177, %s180
    %p189 = scmp.eq.s32.totalorder %s17, 1
    %p190 = por %p188, %p189
    %p191 = scmp.ne.s32.totalorder %s180, %s181
    %p192 = scmp.eq.s32.totalorder %s17, 0
    %p193 = por %p191, %p192
    %p194 = scmp.ne.s32.totalorder %s180, %s181
    %p195 = scmp.eq.s32.totalorder %s18, 1
    %p196 = por %p194, %p195
    %p198 = scmp.ne.s32.totalorder %s181, %s197
    %p199 = scmp.eq.s32.totalorder %s18, 0
    %p200 = por %p198, %p199
    %p201 = scmp.le.s32.totalorder 1, %s12
    %p202 = scmp.lt.s32.totalorder %s12, 3
    %p203 = pnand %p201, %p202
    %p204 = pneg %p203
    // Predicated region
    $region9: #{_lambda_.13} parent=5 // pred_check
      _
    $region10: #{_lambda_.13} parent=5 // pred_check_branch
      %206 = sbr.rel (%p203) target = $region12
    $region11: #{_lambda_.13} parent=5 // pred_region
      %s207 = ssub.s32 %s12, 1
      // Predicated region
      $region13: #{_lambda_.13} parent=11 // pred_check
        %p208 = pneg %p78
      $region14: #{_lambda_.13} parent=11 // pred_check_branch
        %210 = sbr.rel (%p208) target = $region16
      $region15: #{_lambda_.13} parent=11 // pred_region
        %s211 = smul.u32 16, %s22
        %p212 = scmp.lt.s32.totalorder %s211, 15
        %s213 = scalar_select %p212, %s211, 15
        %s214 = smul.addr %s213, 4
        %s215 = scalar_lea.vmem %s1, %s214
        %s216 = smul.u32 16, %s22
      $region16: #{_lambda_.13} parent=11 // pred_fallthru
        _
      // Predicated region
      $region17: #{_lambda_.13} parent=11 // pred_check
        %p217 = pneg %p99
      $region18: #{_lambda_.13} parent=11 // pred_check_branch
        %219 = sbr.rel (%p217) target = $region20
      $region19: #{_lambda_.13} parent=11 // pred_region
        _
      $region20: #{_lambda_.13} parent=11 // pred_fallthru
        _
      // Predicated region
      $region21: #{_lambda_.13} parent=11 // pred_check
        %p220 = pneg %p146
      $region22: #{_lambda_.13} parent=11 // pred_check_branch
        %222 = sbr.rel (%p220) target = $region24
      $region23: #{_lambda_.13} parent=11 // pred_region
        _
      $region24: #{_lambda_.13} parent=11 // pred_fallthru
        _
      // Predicated region
      $region25: #{_lambda_.13} parent=11 // pred_check
        %p223 = pneg %p167
      $region26: #{_lambda_.13} parent=11 // pred_check_branch
        %225 = sbr.rel (%p223) target = $region28
      $region27: #{_lambda_.13} parent=11 // pred_region
        _
      $region28: #{_lambda_.13} parent=11 // pred_fallthru
        _
    $region12: #{_lambda_.13} parent=5 // pred_fallthru
      _
    %p226 = scmp.lt.s32.totalorder %s12, 2
    // Predicated region
    $region29: #{_lambda_.13} parent=5 // pred_check
      %p227 = pneg %p226
    $region30: #{_lambda_.13} parent=5 // pred_check_branch
      %229 = sbr.rel (%p227) target = $region32
    $region31: #{_lambda_.13} parent=5 // pred_region
      // Predicated region
      $region33: #{_lambda_.13} parent=31 // pred_check
        %p230 = pneg %p46
      $region34: #{_lambda_.13} parent=31 // pred_check_branch
        %232 = sbr.rel (%p230) target = $region36
      $region35: #{_lambda_.13} parent=31 // pred_region
        %p233 = scmp.lt.s32.totalorder %s19, 1
        %s234 = scalar_select %p233, %s19, 1
        %p235 = scmp.lt.s32.totalorder %s20, 0
        %s236 = scalar_select %p235, %s20, 0
        %s237 = sadd.s32 %s236, %s234
        %s238 = smul.addr %s237, 4
        %s239 = scalar_lea.vmem %s0, %s238
      $region36: #{_lambda_.13} parent=31 // pred_fallthru
        _
      // Predicated region
      $region37: #{_lambda_.13} parent=31 // pred_check
        %p240 = pneg %p119
      $region38: #{_lambda_.13} parent=31 // pred_check_branch
        %242 = sbr.rel (%p240) target = $region40
      $region39: #{_lambda_.13} parent=31 // pred_region
        %p243 = scmp.lt.s32.totalorder %s19, 1
        %s244 = scalar_select %p243, %s19, 1
        %s245 = smul.addr %s244, 4
        %s246 = scalar_lea.vmem %s3, %s245
      $region40: #{_lambda_.13} parent=31 // pred_fallthru
        _
    $region32: #{_lambda_.13} parent=5 // pred_fallthru
      _
    %p247 = scmp.le.s32.totalorder 1, %s12
    %p248 = scmp.lt.s32.totalorder %s12, 3
    %p249 = pnand %p247, %p248
    %p250 = pneg %p249
    // Predicated region
    $region41: #{_lambda_.13} parent=5 // pred_check
      _
    $region42: #{_lambda_.13} parent=5 // pred_check_branch
      %252 = sbr.rel (%p249) target = $region44
    $region43: #{_lambda_.13} parent=5 // pred_region
      %s253 = ssub.s32 %s12, 1
      %p254 = scmp.lt.s32.totalorder %s21, 1
      %s255 = scalar_select %p254, %s21, 1
      %p256 = scmp.lt.s32.totalorder %s22, 0
      %s257 = scalar_select %p256, %s22, 0
      %s258 = sadd.s32 %s257, %s255
      %s259 = smul.addr %s258, 4
      %s260 = scalar_lea.vmem %s0, %s259
      %p261 = pneg %p52
      %p262 = pneg %p49
      %s263 = smul.u32 16, %s22
      %p264 = scmp.lt.s32.totalorder %s263, 15
      %s265 = scalar_select %p264, %s263, 15
      %s266 = smul.addr %s265, 4
      %s267 = scalar_lea.vmem %s1, %s266
      %p268 = pneg %p78
      %p269 = pneg %p75
      %p270 = pneg %p99
      %p271 = pneg %p96
      %p272 = scmp.lt.s32.totalorder %s21, 1
      %s273 = scalar_select %p272, %s21, 1
      %s274 = smul.addr %s273, 4
      %s275 = scalar_lea.vmem %s3, %s274
      %p276 = pneg %p125
      %p277 = pneg %p122
      %p278 = pneg %p146
      %p279 = pneg %p143
      %p280 = pneg %p167
      %p281 = pneg %p164
      %p282 = pneg %p193
      %p283 = pneg %p190
      %p284 = scmp.lt.s32.totalorder %s21, 1
      %s285 = scalar_select %p284, %s21, 1
      %s286 = smul.addr %s285, 4
      %s287 = scalar_lea.vmem %s6, %s286
      %p288 = scmp.lt.s32.totalorder %s21, 1
      %s289 = scalar_select %p288, %s21, 1
      %p290 = scmp.lt.s32.totalorder %s22, 0
      %s291 = scalar_select %p290, %s22, 0
      %s292 = sadd.s32 %s291, %s289
      %s293 = smul.addr %s292, 4
      %s294 = scalar_lea.vmem %s0, %s293
      %s295 = smul.u32 16, %s22
      %p296 = scmp.lt.s32.totalorder %s295, 15
      %s297 = scalar_select %p296, %s295, 15
      %s298 = smul.addr %s297, 4
      %s299 = scalar_lea.vmem %s1, %s298
      %s300 = smul.u32 16, %s22
      %p301 = scmp.lt.s32.totalorder %s21, 1
      %s302 = scalar_select %p301, %s21, 1
      %s303 = smul.addr %s302, 4
      %s304 = scalar_lea.vmem %s3, %s303
      %p305 = scmp.lt.s32.totalorder %s21, 1
      %s306 = scalar_select %p305, %s21, 1
      %s307 = smul.addr %s306, 4
      %s308 = scalar_lea.vmem %s6, %s307
      %p309 = scmp.eq.s32.totalorder %s22, 0
      // Predicated region
      $region45: #{_lambda_.13} parent=43 // pred_check
        %p310 = pneg %p309
      $region46: #{_lambda_.13} parent=43 // pred_check_branch
        %312 = sbr.rel (%p310) target = $region48
      $region47: #{_lambda_.13} parent=43 // pred_region
        %313 = vst [vmem:[#allocation2] sm:$0xff] 0.0
      $region48: #{_lambda_.13} parent=43 // pred_fallthru
        _
      %v314 = vld [vmem:[#allocation2] sm:$0xff]
      %v315 = vld [vmem:[%s294] sm:$0xf]
      %v316 = vld [vmem:[%s299] sm:$0xf]
      %v317 = vld [vmem:[%s299 + $0x4] sm:$0xf]
      %v318 = vld [vmem:[%s299 + $0x8] sm:$0xf]
      %v319 = vld [vmem:[%s299 + $0xc] sm:$0xf]
      %v320 = vld [vmem:[%s299 + $0x10] sm:$0xf]
      %v321 = vld [vmem:[%s299 + $0x14] sm:$0xf]
      %v322 = vld [vmem:[%s299 + $0x18] sm:$0xf]
      %v323 = vld [vmem:[%s299 + $0x1c] sm:$0xf]
      %v324 = vld [vmem:[%s299 + $0x20] sm:$0xf]
      %v325 = vld [vmem:[%s299 + $0x24] sm:$0xf]
      %v326 = vld [vmem:[%s299 + $0x28] sm:$0xf]
      %v327 = vld [vmem:[%s299 + $0x2c] sm:$0xf]
      %v328 = vld [vmem:[%s299 + $0x30] sm:$0xf]
      %v329 = vld [vmem:[%s299 + $0x34] sm:$0xf]
      %v330 = vld [vmem:[%s299 + $0x38] sm:$0xf]
      %v331 = vld [vmem:[%s299 + $0x3c] sm:$0xf]
      %v348 = vunpack.c.l.b16 %v316
      %v349 = vunpack.c.l.b16 %v317
      %v350 = vunpack.c.l.b16 %v318
      %v351 = vunpack.c.l.b16 %v319
      %v352 = vunpack.c.l.b16 %v320
      %v353 = vunpack.c.l.b16 %v321
      %v354 = vunpack.c.l.b16 %v322
      %v355 = vunpack.c.l.b16 %v323
      %v356 = vunpack.c.l.b16 %v324
      %v357 = vunpack.c.l.b16 %v325
      %v358 = vunpack.c.l.b16 %v326
      %v359 = vunpack.c.l.b16 %v327
      %v360 = vunpack.c.l.b16 %v328
      %v361 = vunpack.c.l.b16 %v329
      %v362 = vunpack.c.l.b16 %v330
      %v363 = vunpack.c.l.b16 %v331
      %v364 = vpack.c.b16 %v349, %v348
      %v365 = vpack.c.b16 %v351, %v350
      %v366 = vpack.c.b16 %v353, %v352
      %v367 = vpack.c.b16 %v355, %v354
      %v368 = vpack.c.b16 %v357, %v356
      %v369 = vpack.c.b16 %v359, %v358
      %v370 = vpack.c.b16 %v361, %v360
      %v371 = vpack.c.b16 %v363, %v362
      %380 = vmatpush.bf16.msra.mxu0 %v371
      %381 = vmatpush.bf16.msra.mxu0 %v370
      %382 = vmatpush.bf16.msra.mxu0 %v369
      %383 = vmatpush.bf16.msra.mxu0 %v368
      %384 = vmatpush.bf16.msra.mxu0 %v367
      %385 = vmatpush.bf16.msra.mxu0 %v366
      %386 = vmatpush.bf16.msra.mxu0 %v365
      %387 = vmatpush.bf16.msra.mxu0 %v364
      %388 = vmatmul.bf16.gmra.mxu0 %v315
      %v389 = vpop.f32.mrf.mxu0
      %v390 = vadd.f32 0.0, %v389
      %v391 = vpop.f32.mrf.mxu0
      %392 = vdwg.mxu0
      %v393 = vadd.f32 %v314, %v390
      %394 = vst [vmem:[#allocation2] sm:$0xff] %v393
      // Predicated region
      $region49: #{_lambda_.13} parent=43 // pred_check
        %p395 = pneg %p309
      $region50: #{_lambda_.13} parent=43 // pred_check_branch
        %397 = sbr.rel (%p395) target = $region52
      $region51: #{_lambda_.13} parent=43 // pred_region
        %v398 = vld [vmem:[#allocation2] sm:$0xff]
        %v399 = vld [vmem:[%s2] sm:$0x1]
        %v401 = vperm.slane %v399, 0
        %v403 = vadd.f32 %v398, %v401
        %v404 = vld [vmem:[%s304] sm:$0xf]
        %v405 = vunpack.c.l.bf16 %v404
        %v406 = vadd.f32 %v403, %v405
        %407 = vadd.xlane.f32.xlu0 %v406
        %v408 = vpop.xlane.xlu0 %407
        %v409 = vrcp.pop 128.0
        %v410 = vmul.f32 128.0, %v409
        %v411 = vsub.f32 1.0, %v410
        %v412 = vmul.f32 %v409, %v411
        %v413 = vadd.f32 %v409, %v412
        %vm414 = vweird.f32 %v409
        %v415 = vsel %vm414, %v409, %v413
        %v416 = vmul.f32 %v408, %v415
        %v417 = vsub.f32 %v406, %v416
        %v418 = vmul.f32 %v417, %v417
        %419 = vadd.xlane.f32.xlu0 %v418
        %v420 = vpop.xlane.xlu0 %419
        %v421 = vmul.f32 %v420, %v415
        %v422 = vadd.f32 %v421, 1e-05
        %v423 = vrsqrt.pop %v422
        %v424 = vmul.f32 %v423, %v422
        %v425 = vmul.f32 %v424, %v423
        %v426 = vmul.f32 0.5, %v425
        %v427 = vsub.f32 1.5, %v426
        %v428 = vmul.f32 %v423, %v427
        %vm429 = vweird.f32 %v422
        %vm430 = vweird.f32 %v423
        %vm431 = vmor %vm429, %vm430
        %v432 = vsel %vm431, %v423, %v428
        %v433 = vmul.f32 %v417, %v432
        %v434 = vld [vmem:[%s4] sm:$0x1]
        %v436 = vperm.slane %v434, 0
        %v438 = vmul.f32 %v433, %v436
        %v439 = vld [vmem:[%s5] sm:$0x1]
        %v441 = vperm.slane %v439, 0
        %v443 = vadd.f32 %v438, %v441
        %v444 = vpack.c.bf16 %v443, %v443
        %445 = vst [vmem:[%s308] sm:$0xf] %v444
      $region52: #{_lambda_.13} parent=43 // pred_fallthru
        _
      %p446 = scmp.lt.s32.totalorder %s21, 1
      %s447 = scalar_select %p446, %s21, 1
      %s448 = smul.addr %s447, 4
      %s449 = scalar_lea.vmem %s6, %s448
      // Predicated region
      $region53: #{_lambda_.13} parent=43 // pred_check
        %p450 = pneg %p190
      $region54: #{_lambda_.13} parent=43 // pred_check_branch
        %452 = sbr.rel (%p450) target = $region56
      $region55: #{_lambda_.13} parent=43 // pred_region
        _
      $region56: #{_lambda_.13} parent=43 // pred_fallthru
        _
    $region44: #{_lambda_.13} parent=5 // pred_fallthru
      _
    %p453 = scmp.le.s32.totalorder 2, %s12
    // Predicated region
    $region57: #{_lambda_.13} parent=5 // pred_check
      %p454 = pneg %p453
    $region58: #{_lambda_.13} parent=5 // pred_check_branch
      %456 = sbr.rel (%p454) target = $region60
    $region59: #{_lambda_.13} parent=5 // pred_region
      %s457 = ssub.s32 %s12, 2
      // Predicated region
      $region61: #{_lambda_.13} parent=59 // pred_check
        %p458 = pneg %p196
      $region62: #{_lambda_.13} parent=59 // pred_check_branch
        %460 = sbr.rel (%p458) target = $region64
      $region63: #{_lambda_.13} parent=59 // pred_region
        %p461 = scmp.lt.s32.totalorder %s23, 1
        %s462 = scalar_select %p461, %s23, 1
        %s463 = smul.addr %s462, 4
        %s464 = scalar_lea.vmem %s6, %s463
      $region64: #{_lambda_.13} parent=59 // pred_fallthru
        _
    $region60: #{_lambda_.13} parent=5 // pred_fallthru
      _
  $region6: #{_lambda_.13} parent=0 // loop_footer
    %s16 = sadd.s32 1, %s12
  $region7: #{_lambda_.13} parent=0 // loop_footer_branch
    %11 = sbr.rel target = $region3
  $region8: #{_lambda_.13} parent=0 // loop_exit
    _

// kernel: _lambda_.11
$region0: #{_lambda_.11}
  #allocation0 [shape = 'u32[]', space=smem, size = 0x4, offset = 0x4, fixed_abs, tag = 'smem constant byte address 0x4 - core index']
  #allocation1 [shape = 'u32[72,128]{1,0:T(1,128)}', space=vmem, size = 0x9000, scoped, tag = 'internal scratch']
  #allocation2 [shape = 'f32[16,128]{1,0:T(8,128)}', space=vmem, size = 0x2000, scoped, tag = 'scratch operand']
  %s0 = inlined_call_operand.vmem [shape: bf16[16,128], index: 0, kind: input, shape index: {}]
  %s1 = inlined_call_operand.hbm [shape: bf16[128,384], index: 1, kind: input, shape index: {}]
  %s2 = inlined_call_operand.vmem [shape: f32[1,384], index: 2, kind: input, shape index: {}]
  %s3 = inlined_call_operand.vmem [shape: bf16[16,384], index: 3, kind: output, shape index: {}]
  %s4 = sld [smem:[#allocation0]]
  $region94: #{_lambda_.11} parent=0
    _
  %s6 = ssub.s32 1, %s4
  %s7 = scalar_select 0, %s6, %s4
  $region1: #{_lambda_.11} parent=0
    #allocation3 [shape = 'u8[65536]{0}', space=vmem, size = 0x10000, scoped, tag = 'input window, operand 1']
    #allocation4 [shape = 's32[2]{0}', space=sflag, size = 0x8, scoped, tag = 'scoped memory for _lambda_.11']
    #allocation5 [shape = 'u8[8192]{0}', space=vmem, size = 0x2000, scoped, tag = 'output window, operand 0']
    %8 = vsyncpa [#allocation4], 0
    %s9 = scalar_lea.sflag [#allocation4], 1
    %10 = vsyncpa %s9, 0
    loop: start=0, step=1, limit=5
    $region2: #{_lambda_.11} parent=1 // loop_pre_header
      _
    $region3: #{_lambda_.11} parent=1 // loop_header
      %s12 = sphi 0, %s16
      %p13 = scmp.ge.s32.totalorder %s12, 5
      %s19 = sphi 0, %s38
      %s20 = sphi 0, %s34
      %s21 = sphi 0, %s30
      %s22 = sphi 0, %s19
      %s23 = sphi 0, %s20
      %s24 = sphi 0, %s21
      %s25 = sphi 0, %s22
      %s26 = sphi 0, %s23
      %s27 = sphi 0, %s24
      %s43 = sphi 0, %s45
      %s46 = sphi 0, %s43
      %s47 = sphi 0, %s46
      %s63 = sphi 0, %s47
      %s71 = sphi 0, %s73
      %s74 = sphi 0, %s71
      %s75 = sphi 0, %s74
      %s91 = sphi 0, %s75
      %s97 = sphi 0, %s99
      %s100 = sphi 0, %s97
      %s101 = sphi 0, %s100
      %s117 = sphi 0, %s101
      %s125 = sphi 0, %s127
      %s128 = sphi 0, %s125
      %s129 = sphi 0, %s128
      %s145 = sphi 0, %s129
    $region4: #{_lambda_.11} parent=1 // loop_header_branch
      %15 = sbr.rel (%p13) target = $region8
    $region5: #{_lambda_.11} parent=1 // loop_body
      %s17 = ssub.s32 %s12, 1
      %s18 = ssub.s32 %s12, 2
      %s28 = sadd.s32 1, %s21
      %p29 = scmp.ge.s32.totalorder %s28, 1
      %s30 = scalar_select %p29, 0, %s28
      %s31 = sadd.s32 1, %s20
      %s32 = scalar_select %p29, %s31, %s20
      %p33 = scmp.ge.s32.totalorder %s32, 3
      %s34 = scalar_select %p33, 0, %s32
      %s35 = sadd.s32 1, %s19
      %s36 = scalar_select %p33, %s35, %s19
      %p37 = scmp.ge.s32.totalorder %s36, 1
      %s38 = scalar_select %p37, 0, %s36
      %s39 = ssub.s32 %s19, %s38
      %s40 = ssub.s32 %s21, %s30
      %s41 = sor.u32 %s39, %s40
      %p42 = scmp.eq.s32.totalorder %s41, 0
      %s44 = sadd.s32 %s43, 1
      %s45 = scalar_select %p42, %s43, %s44
      %p48 = pneg %p42
      %p49 = scmp.eq.s32.totalorder %s12, 2
      %p50 = por %p48, %p49
      %p51 = scmp.ne.s32.totalorder %s43, %s46
      %p52 = scmp.eq.s32.totalorder %s12, 0
      %p53 = por %p51, %p52
      %p54 = scmp.ne.s32.totalorder %s43, %s46
      %p55 = scmp.eq.s32.totalorder %s17, 2
      %p56 = por %p54, %p55
      %p57 = scmp.ne.s32.totalorder %s46, %s47
      %p58 = scmp.eq.s32.totalorder %s17, 0
      %p59 = por %p57, %p58
      %p60 = scmp.ne.s32.totalorder %s46, %s47
      %p61 = scmp.eq.s32.totalorder %s18, 2
      %p62 = por %p60, %p61
      %p64 = scmp.ne.s32.totalorder %s47, %s63
      %p65 = scmp.eq.s32.totalorder %s18, 0
      %p66 = por %p64, %p65
      %s67 = ssub.s32 %s21, %s30
      %s68 = ssub.s32 %s20, %s34
      %s69 = sor.u32 %s67, %s68
      %p70 = scmp.eq.s32.totalorder %s69, 0
      %s72 = sadd.s32 %s71, 1
      %s73 = scalar_select %p70, %s71, %s72
      %p76 = pneg %p70
      %p77 = scmp.eq.s32.totalorder %s12, 2
      %p78 = por %p76, %p77
      %p79 = scmp.ne.s32.totalorder %s71, %s74
      %p80 = scmp.eq.s32.totalorder %s12, 0
      %p81 = por %p79, %p80
      %p82 = scmp.ne.s32.totalorder %s71, %s74
      %p83 = scmp.eq.s32.totalorder %s17, 2
      %p84 = por %p82, %p83
      %p85 = scmp.ne.s32.totalorder %s74, %s75
      %p86 = scmp.eq.s32.totalorder %s17, 0
      %p87 = por %p85, %p86
      %p88 = scmp.ne.s32.totalorder %s74, %s75
      %p89 = scmp.eq.s32.totalorder %s18, 2
      %p90 = por %p88, %p89
      %p92 = scmp.ne.s32.totalorder %s75, %s91
      %p93 = scmp.eq.s32.totalorder %s18, 0
      %p94 = por %p92, %p93
      %s95 = ssub.s32 %s20, %s34
      %p96 = scmp.eq.s32.totalorder %s95, 0
      %s98 = sadd.s32 %s97, 1
      %s99 = scalar_select %p96, %s97, %s98
      %p102 = pneg %p96
      %p103 = scmp.eq.s32.totalorder %s12, 2
      %p104 = por %p102, %p103
      %p105 = scmp.ne.s32.totalorder %s97, %s100
      %p106 = scmp.eq.s32.totalorder %s12, 0
      %p107 = por %p105, %p106
      %p108 = scmp.ne.s32.totalorder %s97, %s100
      %p109 = scmp.eq.s32.totalorder %s17, 2
      %p110 = por %p108, %p109
      %p111 = scmp.ne.s32.totalorder %s100, %s101
      %p112 = scmp.eq.s32.totalorder %s17, 0
      %p113 = por %p111, %p112
      %p114 = scmp.ne.s32.totalorder %s100, %s101
      %p115 = scmp.eq.s32.totalorder %s18, 2
      %p116 = por %p114, %p115
      %p118 = scmp.ne.s32.totalorder %s101, %s117
      %p119 = scmp.eq.s32.totalorder %s18, 0
      %p120 = por %p118, %p119
      %s121 = ssub.s32 %s19, %s38
      %s122 = ssub.s32 %s20, %s34
      %s123 = sor.u32 %s121, %s122
      %p124 = scmp.eq.s32.totalorder %s123, 0
      %s126 = sadd.s32 %s125, 1
      %s127 = scalar_select %p124, %s125, %s126
      %p130 = pneg %p124
      %p131 = scmp.eq.s32.totalorder %s12, 2
      %p132 = por %p130, %p131
      %p133 = scmp.ne.s32.totalorder %s125, %s128
      %p134 = scmp.eq.s32.totalorder %s12, 0
      %p135 = por %p133, %p134
      %p136 = scmp.ne.s32.totalorder %s125, %s128
      %p137 = scmp.eq.s32.totalorder %s17, 2
      %p138 = por %p136, %p137
      %p139 = scmp.ne.s32.totalorder %s128, %s129
      %p140 = scmp.eq.s32.totalorder %s17, 0
      %p141 = por %p139, %p140
      %p142 = scmp.ne.s32.totalorder %s128, %s129
      %p143 = scmp.eq.s32.totalorder %s18, 2
      %p144 = por %p142, %p143
      %p146 = scmp.ne.s32.totalorder %s129, %s145
      %p147 = scmp.eq.s32.totalorder %s18, 0
      %p148 = por %p146, %p147
      %p149 = scmp.le.s32.totalorder 1, %s12
      %p150 = scmp.lt.s32.totalorder %s12, 4
      %p151 = pnand %p149, %p150
      %p152 = pneg %p151
      // Predicated region
      $region9: #{_lambda_.11} parent=5 // pred_check
        _
      $region10: #{_lambda_.11} parent=5 // pred_check_branch
        %154 = sbr.rel (%p151) target = $region12
      $region11: #{_lambda_.11} parent=5 // pred_region
        %s155 = ssub.s32 %s12, 1
        // Predicated region
        $region13: #{_lambda_.11} parent=11 // pred_check
          %p156 = pneg %p59
        $region14: #{_lambda_.11} parent=11 // pred_check_branch
          %158 = sbr.rel (%p156) target = $region16
        $region15: #{_lambda_.11} parent=11 // pred_region
          %s159 = smul.u32 2, %s22
          %p160 = scmp.lt.s32.totalorder %s159, 1
          %s161 = scalar_select %p160, %s159, 1
          %p162 = scmp.lt.s32.totalorder %s24, 0
          %s163 = scalar_select %p162, %s24, 0
          %s164 = sadd.s32 %s163, %s161
          %s165 = smul.addr %s164, 4
          %s166 = scalar_lea.vmem %s0, %s165
          %s167 = smul.u32 2, %s22
        $region16: #{_lambda_.11} parent=11 // pred_fallthru
          _
      $region12: #{_lambda_.11} parent=5 // pred_fallthru
        _
      %p168 = scmp.lt.s32.totalorder %s12, 3
      // Predicated region
      $region17: #{_lambda_.11} parent=5 // pred_check
        %p169 = pneg %p168
      $region18: #{_lambda_.11} parent=5 // pred_check_branch
        %171 = sbr.rel (%p169) target = $region20
      $region19: #{_lambda_.11} parent=5 // pred_region
        // Predicated region
        $region21: #{_lambda_.11} parent=19 // pred_check
          %p172 = pneg %p81
        $region22: #{_lambda_.11} parent=19 // pred_check_branch
          %174 = sbr.rel (%p172) target = $region24
        $region23: #{_lambda_.11} parent=19 // pred_region
          %s175 = sand.u32 %s71, 1
          %s176 = scalar_lea.sflag [#allocation4], %s175
          %s177 = sand.u32 %s71, 1
          %s178 = smul.addr %s177, 64
          %s179 = scalar_lea.vmem [#allocation3], %s178
          %s180 = smul.u32 16, %s21
          %182 = vsyncadd %s176, 0
          %s183 = smul.addr %s180, 3
          %s184 = sadd.s32 %s20, %s183
          %s185 = smul.addr %s184, 4
          %s186 = scalar_lea.hbm %s1, %s185
          %s187 = sshll.u32 %s186, 4
          %s188 = int_to_ptr.hbm [resolvable:$true] %s187
          %s189 = sshll.u32 %s179, 4
          %s190 = int_to_ptr.vmem [resolvable:$true] %s189
          %195 = dma.hbm_to_vmem [thread:$0]  %s188, 1024, %s190, %s176, 192, 64, 4
        $region24: #{_lambda_.11} parent=19 // pred_fallthru
          _
        // Predicated region
        $region25: #{_lambda_.11} parent=19 // pred_check
          %p196 = pneg %p107
        $region26: #{_lambda_.11} parent=19 // pred_check_branch
          %198 = sbr.rel (%p196) target = $region28
        $region27: #{_lambda_.11} parent=19 // pred_region
          %p199 = scmp.lt.s32.totalorder %s20, 2
          %s200 = scalar_select %p199, %s20, 2
          %s201 = scalar_lea.vmem %s2, %s200
        $region28: #{_lambda_.11} parent=19 // pred_fallthru
          _
      $region20: #{_lambda_.11} parent=5 // pred_fallthru
        _
      %p202 = scmp.le.s32.totalorder 1, %s12
      %p203 = scmp.lt.s32.totalorder %s12, 4
      %p204 = pnand %p202, %p203
      %p205 = pneg %p204
      // Predicated region
      $region29: #{_lambda_.11} parent=5 // pred_check
        _
      $region30: #{_lambda_.11} parent=5 // pred_check_branch
        %207 = sbr.rel (%p204) target = $region32
      $region31: #{_lambda_.11} parent=5 // pred_region
        %s208 = ssub.s32 %s12, 1
        %s209 = sand.u32 %s74, 1
        %s210 = scalar_lea.sflag [#allocation4], %s209
        %s211 = sand.u32 %s74, 1
        %s212 = smul.addr %s211, 64
        %s213 = scalar_lea.vmem [#allocation3], %s212
        // Predicated region
        $region33: #{_lambda_.11} parent=31 // pred_check
          %p214 = pneg %p87
        $region34: #{_lambda_.11} parent=31 // pred_check_branch
          %216 = sbr.rel (%p214) target = $region36
        $region35: #{_lambda_.11} parent=31 // pred_region
          %218 = dma.done %s210, 1024
        $region36: #{_lambda_.11} parent=31 // pred_fallthru
          _
        %s219 = smul.u32 2, %s22
        %p220 = scmp.lt.s32.totalorder %s219, 1
        %s221 = scalar_select %p220, %s219, 1
        %p222 = scmp.lt.s32.totalorder %s24, 0
        %s223 = scalar_select %p222, %s24, 0
        %s224 = sadd.s32 %s223, %s221
        %s225 = smul.addr %s224, 4
        %s226 = scalar_lea.vmem %s0, %s225
        %p227 = pneg %p59
        %p228 = pneg %p56
        %s229 = sand.u32 %s74, 1
        %s230 = scalar_lea.sflag [#allocation4], %s229
        %s231 = sand.u32 %s74, 1
        %s232 = smul.addr %s231, 64
        %s233 = scalar_lea.vmem [#allocation3], %s232
        %p234 = pneg %p87
        %p235 = pneg %p84
        %p236 = scmp.lt.s32.totalorder %s23, 2
        %s237 = scalar_select %p236, %s23, 2
        %s238 = scalar_lea.vmem %s2, %s237
        %p239 = pneg %p113
        %p240 = pneg %p110
        %p241 = pneg %p141
        %p242 = pneg %p138
        %s243 = sand.u32 %s128, 1
        %s244 = sand.u32 %s128, 1
        %s245 = smul.addr %s244, 8
        %s246 = scalar_lea.vmem [#allocation5], %s245
        %s247 = smul.u32 2, %s22
        %p248 = scmp.lt.s32.totalorder %s247, 1
        %s249 = scalar_select %p248, %s247, 1
        %p250 = scmp.lt.s32.totalorder %s24, 0
        %s251 = scalar_select %p250, %s24, 0
        %s252 = sadd.s32 %s251, %s249
        %s253 = smul.addr %s252, 4
        %s254 = scalar_lea.vmem %s0, %s253
        %s255 = smul.u32 2, %s22
        %s256 = smul.u32 16, %s24
        %p257 = scmp.lt.s32.totalorder %s23, 2
        %s258 = scalar_select %p257, %s23, 2
        %s259 = scalar_lea.vmem %s2, %s258
        %s260 = smul.u32 2, %s22
        %p261 = scmp.eq.s32.totalorder %s24, 0
        // Predicated region
        $region37: #{_lambda_.11} parent=31 // pred_check
          %p262 = pneg %p261
        $region38: #{_lambda_.11} parent=31 // pred_check_branch
          %264 = sbr.rel (%p262) target = $region40
        $region39: #{_lambda_.11} parent=31 // pred_region
          %265 = vst [vmem:[#allocation2] sm:$0xff] 0.0
          %266 = vst [vmem:[#allocation2 + $0x8] sm:$0xff] 0.0
        $region40: #{_lambda_.11} parent=31 // pred_fallthru
          _
        %v267 = vld [vmem:[#allocation2] sm:$0xff]
        %v268 = vld [vmem:[#allocation2 + $0x8] sm:$0xff]
        %v269 = vld [vmem:[%s254] sm:$0xf]
        %v270 = vld [vmem:[%s254 + $0x4] sm:$0xf]
        %v271 = vld [vmem:[%s213] sm:$0xf]
        %v272 = vld [vmem:[%s213 + $0x4] sm:$0xf]
        %v273 = vld [vmem:[%s213 + $0x8] sm:$0xf]
        %v274 = vld [vmem:[%s213 + $0xc] sm:$0xf]
        %v275 = vld [vmem:[%s213 + $0x10] sm:$0xf]
        %v276 = vld [vmem:[%s213 + $0x14] sm:$0xf]
        %v277 = vld [vmem:[%s213 + $0x18] sm:$0xf]
        %v278 = vld [vmem:[%s213 + $0x1c] sm:$0xf]
        %v279 = vld [vmem:[%s213 + $0x20] sm:$0xf]
        %v280 = vld [vmem:[%s213 + $0x24] sm:$0xf]
        %v281 = vld [vmem:[%s213 + $0x28] sm:$0xf]
        %v282 = vld [vmem:[%s213 + $0x2c] sm:$0xf]
        %v283 = vld [vmem:[%s213 + $0x30] sm:$0xf]
        %v284 = vld [vmem:[%s213 + $0x34] sm:$0xf]
        %v285 = vld [vmem:[%s213 + $0x38] sm:$0xf]
        %v286 = vld [vmem:[%s213 + $0x3c] sm:$0xf]
        %v289 = vunpack.c.l.b16 %v269
        %v290 = vunpack.c.l.b16 %v270
        %v291 = vpack.c.b16 %v290, %v289
        %v309 = vunpack.c.l.b16 %v271
        %v310 = vunpack.c.l.b16 %v272
        %v311 = vunpack.c.l.b16 %v273
        %v312 = vunpack.c.l.b16 %v274
        %v313 = vunpack.c.l.b16 %v275
        %v314 = vunpack.c.l.b16 %v276
        %v315 = vunpack.c.l.b16 %v277
        %v316 = vunpack.c.l.b16 %v278
        %v317 = vunpack.c.l.b16 %v279
        %v318 = vunpack.c.l.b16 %v280
        %v319 = vunpack.c.l.b16 %v281
        %v320 = vunpack.c.l.b16 %v282
        %v321 = vunpack.c.l.b16 %v283
        %v322 = vunpack.c.l.b16 %v284
        %v323 = vunpack.c.l.b16 %v285
        %v324 = vunpack.c.l.b16 %v286
        %v325 = vpack.c.b16 %v310, %v309
        %v326 = vpack.c.b16 %v312, %v311
        %v327 = vpack.c.b16 %v314, %v313
        %v328 = vpack.c.b16 %v316, %v315
        %v329 = vpack.c.b16 %v318, %v317
        %v330 = vpack.c.b16 %v320, %v319
        %v331 = vpack.c.b16 %v322, %v321
        %v332 = vpack.c.b16 %v324, %v323
        %341 = vmatpush.bf16.msra.mxu0 %v332
        %342 = vmatpush.bf16.msra.mxu0 %v331
        %343 = vmatpush.bf16.msra.mxu0 %v330
        %344 = vmatpush.bf16.msra.mxu0 %v329
        %345 = vmatpush.bf16.msra.mxu0 %v328
        %346 = vmatpush.bf16.msra.mxu0 %v327
        %347 = vmatpush.bf16.msra.mxu0 %v326
        %348 = vmatpush.bf16.msra.mxu0 %v325
        %349 = vmatmul.bf16.gmra.mxu0 %v291
        %v350 = vpop.f32.mrf.mxu0
        %v351 = vadd.f32 0.0, %v350
        %v352 = vpop.f32.mrf.mxu0
        %v353 = vadd.f32 0.0, %v352
        %354 = vdwg.mxu0
        %v355 = vadd.f32 %v267, %v351
        %v356 = vadd.f32 %v268, %v353
        %357 = vst [vmem:[#allocation2] sm:$0xff] %v355
        %358 = vst [vmem:[#allocation2 + $0x8] sm:$0xff] %v356
        // Predicated region
        $region41: #{_lambda_.11} parent=31 // pred_check
          %p359 = pneg %p261
        $region42: #{_lambda_.11} parent=31 // pred_check_branch
          %361 = sbr.rel (%p359) target = $region44
        $region43: #{_lambda_.11} parent=31 // pred_region
          %v362 = vld [vmem:[#allocation2] sm:$0xff]
          %v363 = vld [vmem:[#allocation2 + $0x8] sm:$0xff]
          %v364 = vld [vmem:[%s259] sm:$0x1]
          %v366 = vperm.slane %v364, 0
          %v368 = vadd.f32 %v362, %v366
          %v369 = vadd.f32 %v363, %v366
          %v370 = vpack.c.bf16 %v368, %v368
          %v371 = vpack.c.bf16 %v369, %v369
          %372 = vst [vmem:[%s246] sm:$0xf] %v370
          %373 = vst [vmem:[%s246 + $0x4] sm:$0xf] %v371
        $region44: #{_lambda_.11} parent=31 // pred_fallthru
          _
        %s374 = sand.u32 %s128, 1
        %s375 = sand.u32 %s128, 1
        %s376 = smul.addr %s375, 8
        %s377 = scalar_lea.vmem [#allocation5], %s376
        // Predicated region
        $region45: #{_lambda_.11} parent=31 // pred_check
          %p378 = pneg %p138
        $region46: #{_lambda_.11} parent=31 // pred_check_branch
          %380 = sbr.rel (%p378) target = $region48
        $region47: #{_lambda_.11} parent=31 // pred_region
          %s381 = smul.u32 2, %s22
          %s382 = smul.addr %s381, 3
          %s383 = sadd.s32 %s23, %s382
          %s384 = smul.addr %s383, 4
          %s385 = scalar_lea.vmem %s3, %s384
          // Predicated region
          $region49: #{_lambda_.11} parent=47 // pred_check
            _
          $region50: #{_lambda_.11} parent=47 // pred_check_branch
            %387 = sbr.rel (0) target = $region52
          $region51: #{_lambda_.11} parent=47 // pred_region
            // Predicated region
            $region53: #{_lambda_.11} parent=51 // pred_check
              _
            $region54: #{_lambda_.11} parent=51 // pred_check_branch
              %389 = sbr.rel target = $region56
            $region55: #{_lambda_.11} parent=51 // pred_region
              // Predicated region
              $region68: #{_lambda_.11} parent=55 // pred_check
                _
              $region69: #{_lambda_.11} parent=55 // pred_check_branch
                %407 = sbr.rel (0) target = $region71
              $region70: #{_lambda_.11} parent=55 // pred_region
                loop: start=0, step=1, limit=1
                $region72: #{_lambda_.11} parent=70 // loop_pre_header
                  _
                $region73: #{_lambda_.11} parent=70 // loop_header
                  %s409 = sphi 0, %s413
                  %p410 = scmp.ge.s32.totalorder %s409, 1
                  %s414 = sphi %s377, %s377
                  %s415 = sphi %s385, %s385
                $region74: #{_lambda_.11} parent=70 // loop_header_branch
                  %412 = sbr.rel (%p410) target = $region78
                $region75: #{_lambda_.11} parent=70 // loop_body
                  _
                $region76: #{_lambda_.11} parent=70 // loop_footer
                  %s413 = sadd.s32 1, %s409
                $region77: #{_lambda_.11} parent=70 // loop_footer_branch
                  %408 = sbr.rel target = $region73
                $region78: #{_lambda_.11} parent=70 // loop_exit
                  _
                %s417 = ssub.s32 16, 1
                loop: start=0, step=1, limit=1
                $region79: #{_lambda_.11} parent=70 // loop_pre_header
                  _
                $region80: #{_lambda_.11} parent=70 // loop_header
                  %s419 = sphi 0, %s423
                  %p420 = scmp.ge.s32.totalorder %s419, 1
                  %s424 = sphi %s377, %s377
                  %s425 = sphi %s385, %s385
                $region81: #{_lambda_.11} parent=70 // loop_header_branch
                  %422 = sbr.rel (%p420) target = $region85
                $region82: #{_lambda_.11} parent=70 // loop_body
                  %v426 = vld [vmem:[%s424] sm:%s417]
                  %427 = vst [vmem:[%s425] sm:%s417] %v426
                  %v428 = vld [vmem:[%s424 + $0x4] sm:%s417]
                  %429 = vst [vmem:[%s425 + $0xc] sm:%s417] %v428
                $region83: #{_lambda_.11} parent=70 // loop_footer
                  %s423 = sadd.s32 1, %s419
                $region84: #{_lambda_.11} parent=70 // loop_footer_branch
                  %418 = sbr.rel target = $region80
                $region85: #{_lambda_.11} parent=70 // loop_exit
                  _
              $region71: #{_lambda_.11} parent=55 // pred_fallthru
                _
            $region56: #{_lambda_.11} parent=51 // pred_fallthru
              _
            // Predicated region
            $region57: #{_lambda_.11} parent=51 // pred_check
              _
            $region58: #{_lambda_.11} parent=51 // pred_check_branch
              %391 = sbr.rel (0) target = $region60
            $region59: #{_lambda_.11} parent=51 // pred_region
              %s393 = ssub.s32 16, 1
              loop: start=0, step=1, limit=1
              $region61: #{_lambda_.11} parent=59 // loop_pre_header
                _
              $region62: #{_lambda_.11} parent=59 // loop_header
                %s395 = sphi 0, %s399
                %p396 = scmp.ge.s32.totalorder %s395, 1
                %s400 = sphi %s377, %s377
                %s401 = sphi %s385, %s385
              $region63: #{_lambda_.11} parent=59 // loop_header_branch
                %398 = sbr.rel (%p396) target = $region67
              $region64: #{_lambda_.11} parent=59 // loop_body
                %v402 = vld [vmem:[%s400] sm:%s393]
                %403 = vst [vmem:[%s401] sm:%s393] %v402
                %v404 = vld [vmem:[%s400 + $0x4] sm:%s393]
                %405 = vst [vmem:[%s401 + $0xc] sm:%s393] %v404
              $region65: #{_lambda_.11} parent=59 // loop_footer
                %s399 = sadd.s32 1, %s395
              $region66: #{_lambda_.11} parent=59 // loop_footer_branch
                %394 = sbr.rel target = $region62
              $region67: #{_lambda_.11} parent=59 // loop_exit
                _
            $region60: #{_lambda_.11} parent=51 // pred_fallthru
              _
          $region52: #{_lambda_.11} parent=47 // pred_fallthru
            _
          %430 = vnop
        $region48: #{_lambda_.11} parent=31 // pred_fallthru
          _
      $region32: #{_lambda_.11} parent=5 // pred_fallthru
        _
      %p431 = scmp.le.s32.totalorder 2, %s12
      // Predicated region
      $region86: #{_lambda_.11} parent=5 // pred_check
        %p432 = pneg %p431
      $region87: #{_lambda_.11} parent=5 // pred_check_branch
        %434 = sbr.rel (%p432) target = $region89
      $region88: #{_lambda_.11} parent=5 // pred_region
        %s435 = ssub.s32 %s12, 2
        // Predicated region
        $region90: #{_lambda_.11} parent=88 // pred_check
          %p436 = pneg %p144
        $region91: #{_lambda_.11} parent=88 // pred_check_branch
          %438 = sbr.rel (%p436) target = $region93
        $region92: #{_lambda_.11} parent=88 // pred_region
          %s439 = sand.u32 %s129, 1
          %s440 = sand.u32 %s129, 1
          %s441 = smul.addr %s440, 8
          %s442 = scalar_lea.vmem [#allocation5], %s441
        $region93: #{_lambda_.11} parent=88 // pred_fallthru
          _
      $region89: #{_lambda_.11} parent=5 // pred_fallthru
        _
    $region6: #{_lambda_.11} parent=1 // loop_footer
      %s16 = sadd.s32 1, %s12
    $region7: #{_lambda_.11} parent=1 // loop_footer_branch
      %11 = sbr.rel target = $region3
    $region8: #{_lambda_.11} parent=1 // loop_exit
      _
    %443 = vsyncpa [#allocation4], 1
    %s444 = scalar_lea.sflag [#allocation4], 1
    %445 = vsyncpa %s444, 1

// kernel: _lambda_.12
$region0: #{_lambda_.12}
  #allocation0 [shape = 'u32[]', space=smem, size = 0x4, offset = 0x4, fixed_abs, tag = 'smem constant byte address 0x4 - core index']
  #allocation1 [shape = 'u32[72,128]{1,0:T(1,128)}', space=vmem, size = 0x9000, scoped, tag = 'internal scratch']
  %s0 = inlined_call_operand.vmem [shape: bf16[2,8,128], index: 0, kind: input, shape index: {}]
  %s1 = inlined_call_operand.vmem [shape: bf16[2,8,128], index: 1, kind: input, shape index: {}]
  %s2 = inlined_call_operand.vmem [shape: bf16[2,8,128], index: 2, kind: input, shape index: {}]
  %s3 = inlined_call_operand.vmem [shape: bf16[2,8,128], index: 3, kind: output, shape index: {}]
  %s4 = sld [smem:[#allocation0]]
  $region45: #{_lambda_.12} parent=0
    _
  %s6 = ssub.s32 1, %s4
  %s7 = scalar_select 0, %s6, %s4
  loop: start=0, step=1, limit=4
  $region2: #{_lambda_.12} parent=0 // loop_pre_header
    _
  $region3: #{_lambda_.12} parent=0 // loop_header
    %s9 = sphi 0, %s13
    %p10 = scmp.ge.s32.totalorder %s9, 4
    %s19 = sphi 0, %s21
    %s22 = sphi 0, %s19
    %s23 = sphi 0, %s22
    %s39 = sphi 0, %s23
    %s45 = sphi 0, %s47
    %s48 = sphi 0, %s45
    %s49 = sphi 0, %s48
    %s65 = sphi 0, %s49
    %s71 = sphi 0, %s73
    %s74 = sphi 0, %s71
    %s75 = sphi 0, %s74
    %s91 = sphi 0, %s75
    %s97 = sphi 0, %s99
    %s100 = sphi 0, %s97
    %s101 = sphi 0, %s100
    %s117 = sphi 0, %s101
  $region4: #{_lambda_.12} parent=0 // loop_header_branch
    %12 = sbr.rel (%p10) target = $region8
  $region5: #{_lambda_.12} parent=0 // loop_body
    %s14 = ssub.s32 %s9, 1
    %s15 = ssub.s32 %s9, 2
    %s16 = sadd.s32 %s9, 1
    %s17 = ssub.s32 %s9, %s16
    %p18 = scmp.eq.s32.totalorder %s17, 0
    %s20 = sadd.s32 %s19, 1
    %s21 = scalar_select %p18, %s19, %s20
    %p24 = pneg %p18
    %p25 = scmp.eq.s32.totalorder %s9, 1
    %p26 = por %p24, %p25
    %p27 = scmp.ne.s32.totalorder %s19, %s22
    %p28 = scmp.eq.s32.totalorder %s9, 0
    %p29 = por %p27, %p28
    %p30 = scmp.ne.s32.totalorder %s19, %s22
    %p31 = scmp.eq.s32.totalorder %s14, 1
    %p32 = por %p30, %p31
    %p33 = scmp.ne.s32.totalorder %s22, %s23
    %p34 = scmp.eq.s32.totalorder %s14, 0
    %p35 = por %p33, %p34
    %p36 = scmp.ne.s32.totalorder %s22, %s23
    %p37 = scmp.eq.s32.totalorder %s15, 1
    %p38 = por %p36, %p37
    %p40 = scmp.ne.s32.totalorder %s23, %s39
    %p41 = scmp.eq.s32.totalorder %s15, 0
    %p42 = por %p40, %p41
    %s43 = ssub.s32 %s9, %s16
    %p44 = scmp.eq.s32.totalorder %s43, 0
    %s46 = sadd.s32 %s45, 1
    %s47 = scalar_select %p44, %s45, %s46
    %p50 = pneg %p44
    %p51 = scmp.eq.s32.totalorder %s9, 1
    %p52 = por %p50, %p51
    %p53 = scmp.ne.s32.totalorder %s45, %s48
    %p54 = scmp.eq.s32.totalorder %s9, 0
    %p55 = por %p53, %p54
    %p56 = scmp.ne.s32.totalorder %s45, %s48
    %p57 = scmp.eq.s32.totalorder %s14, 1
    %p58 = por %p56, %p57
    %p59 = scmp.ne.s32.totalorder %s48, %s49
    %p60 = scmp.eq.s32.totalorder %s14, 0
    %p61 = por %p59, %p60
    %p62 = scmp.ne.s32.totalorder %s48, %s49
    %p63 = scmp.eq.s32.totalorder %s15, 1
    %p64 = por %p62, %p63
    %p66 = scmp.ne.s32.totalorder %s49, %s65
    %p67 = scmp.eq.s32.totalorder %s15, 0
    %p68 = por %p66, %p67
    %s69 = ssub.s32 %s9, %s16
    %p70 = scmp.eq.s32.totalorder %s69, 0
    %s72 = sadd.s32 %s71, 1
    %s73 = scalar_select %p70, %s71, %s72
    %p76 = pneg %p70
    %p77 = scmp.eq.s32.totalorder %s9, 1
    %p78 = por %p76, %p77
    %p79 = scmp.ne.s32.totalorder %s71, %s74
    %p80 = scmp.eq.s32.totalorder %s9, 0
    %p81 = por %p79, %p80
    %p82 = scmp.ne.s32.totalorder %s71, %s74
    %p83 = scmp.eq.s32.totalorder %s14, 1
    %p84 = por %p82, %p83
    %p85 = scmp.ne.s32.totalorder %s74, %s75
    %p86 = scmp.eq.s32.totalorder %s14, 0
    %p87 = por %p85, %p86
    %p88 = scmp.ne.s32.totalorder %s74, %s75
    %p89 = scmp.eq.s32.totalorder %s15, 1
    %p90 = por %p88, %p89
    %p92 = scmp.ne.s32.totalorder %s75, %s91
    %p93 = scmp.eq.s32.totalorder %s15, 0
    %p94 = por %p92, %p93
    %s95 = ssub.s32 %s9, %s16
    %p96 = scmp.eq.s32.totalorder %s95, 0
    %s98 = sadd.s32 %s97, 1
    %s99 = scalar_select %p96, %s97, %s98
    %p102 = pneg %p96
    %p103 = scmp.eq.s32.totalorder %s9, 1
    %p104 = por %p102, %p103
    %p105 = scmp.ne.s32.totalorder %s97, %s100
    %p106 = scmp.eq.s32.totalorder %s9, 0
    %p107 = por %p105, %p106
    %p108 = scmp.ne.s32.totalorder %s97, %s100
    %p109 = scmp.eq.s32.totalorder %s14, 1
    %p110 = por %p108, %p109
    %p111 = scmp.ne.s32.totalorder %s100, %s101
    %p112 = scmp.eq.s32.totalorder %s14, 0
    %p113 = por %p111, %p112
    %p114 = scmp.ne.s32.totalorder %s100, %s101
    %p115 = scmp.eq.s32.totalorder %s15, 1
    %p116 = por %p114, %p115
    %p118 = scmp.ne.s32.totalorder %s101, %s117
    %p119 = scmp.eq.s32.totalorder %s15, 0
    %p120 = por %p118, %p119
    %p121 = scmp.le.s32.totalorder 1, %s9
    %p122 = scmp.lt.s32.totalorder %s9, 3
    %p123 = pnand %p121, %p122
    %p124 = pneg %p123
    // Predicated region
    $region9: #{_lambda_.12} parent=5 // pred_check
      _
    $region10: #{_lambda_.12} parent=5 // pred_check_branch
      %126 = sbr.rel (%p123) target = $region12
    $region11: #{_lambda_.12} parent=5 // pred_region
      %s127 = ssub.s32 %s9, 1
    $region12: #{_lambda_.12} parent=5 // pred_fallthru
      _
    %p128 = scmp.lt.s32.totalorder %s9, 2
    // Predicated region
    $region13: #{_lambda_.12} parent=5 // pred_check
      %p129 = pneg %p128
    $region14: #{_lambda_.12} parent=5 // pred_check_branch
      %131 = sbr.rel (%p129) target = $region16
    $region15: #{_lambda_.12} parent=5 // pred_region
      // Predicated region
      $region17: #{_lambda_.12} parent=15 // pred_check
        %p132 = pneg %p29
      $region18: #{_lambda_.12} parent=15 // pred_check_branch
        %134 = sbr.rel (%p132) target = $region20
      $region19: #{_lambda_.12} parent=15 // pred_region
        %p135 = scmp.lt.s32.totalorder %s9, 1
        %s136 = scalar_select %p135, %s9, 1
        %s137 = smul.addr %s136, 4
        %s138 = scalar_lea.vmem %s0, %s137
      $region20: #{_lambda_.12} parent=15 // pred_fallthru
        _
      // Predicated region
      $region21: #{_lambda_.12} parent=15 // pred_check
        %p139 = pneg %p55
      $region22: #{_lambda_.12} parent=15 // pred_check_branch
        %141 = sbr.rel (%p139) target = $region24
      $region23: #{_lambda_.12} parent=15 // pred_region
        %p142 = scmp.lt.s32.totalorder %s9, 1
        %s143 = scalar_select %p142, %s9, 1
        %s144 = smul.addr %s143, 4
        %s145 = scalar_lea.vmem %s1, %s144
      $region24: #{_lambda_.12} parent=15 // pred_fallthru
        _
      // Predicated region
      $region25: #{_lambda_.12} parent=15 // pred_check
        %p146 = pneg %p81
      $region26: #{_lambda_.12} parent=15 // pred_check_branch
        %148 = sbr.rel (%p146) target = $region28
      $region27: #{_lambda_.12} parent=15 // pred_region
        %p149 = scmp.lt.s32.totalorder %s9, 1
        %s150 = scalar_select %p149, %s9, 1
        %s151 = smul.addr %s150, 4
        %s152 = scalar_lea.vmem %s2, %s151
      $region28: #{_lambda_.12} parent=15 // pred_fallthru
        _
    $region16: #{_lambda_.12} parent=5 // pred_fallthru
      _
    %p153 = scmp.le.s32.totalorder 1, %s9
    %p154 = scmp.lt.s32.totalorder %s9, 3
    %p155 = pnand %p153, %p154
    %p156 = pneg %p155
    // Predicated region
    $region29: #{_lambda_.12} parent=5 // pred_check
      _
    $region30: #{_lambda_.12} parent=5 // pred_check_branch
      %158 = sbr.rel (%p155) target = $region32
    $region31: #{_lambda_.12} parent=5 // pred_region
      %s159 = ssub.s32 %s9, 1
      %p160 = scmp.lt.s32.totalorder %s14, 1
      %s161 = scalar_select %p160, %s14, 1
      %s162 = smul.addr %s161, 4
      %s163 = scalar_lea.vmem %s0, %s162
      %p164 = pneg %p35
      %p165 = pneg %p32
      %p166 = scmp.lt.s32.totalorder %s14, 1
      %s167 = scalar_select %p166, %s14, 1
      %s168 = smul.addr %s167, 4
      %s169 = scalar_lea.vmem %s1, %s168
      %p170 = pneg %p61
      %p171 = pneg %p58
      %p172 = scmp.lt.s32.totalorder %s14, 1
      %s173 = scalar_select %p172, %s14, 1
      %s174 = smul.addr %s173, 4
      %s175 = scalar_lea.vmem %s2, %s174
      %p176 = pneg %p87
      %p177 = pneg %p84
      %p178 = pneg %p113
      %p179 = pneg %p110
      %p180 = scmp.lt.s32.totalorder %s14, 1
      %s181 = scalar_select %p180, %s14, 1
      %s182 = smul.addr %s181, 4
      %s183 = scalar_lea.vmem %s3, %s182
      %p184 = scmp.lt.s32.totalorder %s14, 1
      %s185 = scalar_select %p184, %s14, 1
      %s186 = smul.addr %s185, 4
      %s187 = scalar_lea.vmem %s0, %s186
      %p188 = scmp.lt.s32.totalorder %s14, 1
      %s189 = scalar_select %p188, %s14, 1
      %s190 = smul.addr %s189, 4
      %s191 = scalar_lea.vmem %s1, %s190
      %p192 = scmp.lt.s32.totalorder %s14, 1
      %s193 = scalar_select %p192, %s14, 1
      %s194 = smul.addr %s193, 4
      %s195 = scalar_lea.vmem %s2, %s194
      %p196 = scmp.lt.s32.totalorder %s14, 1
      %s197 = scalar_select %p196, %s14, 1
      %s198 = smul.addr %s197, 4
      %s199 = scalar_lea.vmem %s3, %s198
      %v201 = vld [vmem:[%s187] sm:$0xf]
      %v202 = vld [vmem:[%s191] sm:$0xf]
      %v203 = vld [vmem:[%s195] sm:$0xf]
      %vm204 = vcmask 130048
      %v206 = vsel %vm204, %v201, 0
      %v209 = vsel %vm204, %v202, 0
      %211 = vmatpush.bf16.xpose.msra.mxu0 0
      %212 = vmatpush.bf16.xpose.msra.mxu0 0
      %213 = vmatpush.bf16.xpose.msra.mxu0 0
      %214 = vmatpush.bf16.xpose.msra.mxu0 0
      %215 = vmatpush.bf16.xpose.msra.mxu0 0
      %216 = vmatpush.bf16.xpose.msra.mxu0 0
      %217 = vmatpush.bf16.xpose.msra.mxu0 0
      %218 = vmatpush.bf16.xpose.msra.mxu0 %v209
      %219 = vmatmul.bf16.gmra.mxu0 %v206
      %v220 = vpop.f32.mrf.mxu0
      %v221 = vadd.f32 0.0, %v220
      %v222 = vpop.f32.mrf.mxu0
      %223 = vdwg.mxu0
      %v224 = vmul.f32 %v221, 0.25
      %vm225 = vcmask 64512
      %v226 = vsel %vm225, %v224, -inf
      %227 = vmax.xlane.f32.xlu0 %v226
      %v228 = vpop.xlane.xlu0 %227
      %v229 = vsub.f32 %v224, %v228
      %v230 = vmul.f32 %v229, 1.442695
      %v231 = vpow.pop %v230
      %v232 = vsel %vm225, %v231, 0.0
      %233 = vadd.xlane.f32.xlu0 %v232
      %v234 = vpop.xlane.xlu0 %233
      %v235 = vrcp.pop %v234
      %v236 = vmul.f32 %v231, %v235
      %v237 = vpack.c.bf16 %v236, %v236
      %v239 = vsel %vm225, %v237, 0
      %vm241 = vcmask 1043456
      %v243 = vsel %vm241, %v203, 0
      %245 = vmatpush.bf16.msra.mxu0 0
      %246 = vmatpush.bf16.msra.mxu0 0
      %247 = vmatpush.bf16.msra.mxu0 0
      %248 = vmatpush.bf16.msra.mxu0 0
      %249 = vmatpush.bf16.msra.mxu0 0
      %250 = vmatpush.bf16.msra.mxu0 0
      %251 = vmatpush.bf16.msra.mxu0 0
      %252 = vmatpush.bf16.msra.mxu0 %v243
      %253 = vmatmul.bf16.gmra.mxu0 %v239
      %v254 = vpop.f32.mrf.mxu0
      %v255 = vadd.f32 0.0, %v254
      %v256 = vpop.f32.mrf.mxu0
      %257 = vdwg.mxu0
      %v259 = vunpack.c.l.b16 %v201
      %v260 = vpack.c.b16 %v259, %v259
      %261 = vrot.lane.b32.xlu0 %v260, 112
      %v262 = vpop.permute.xlu0 %261
      %v264 = vunpack.c.l.b16 %v202
      %v265 = vpack.c.b16 %v264, %v264
      %266 = vrot.lane.b32.xlu0 %v265, 112
      %v267 = vpop.permute.xlu0 %266
      %v269 = vsel %vm204, %v262, 0
      %v272 = vsel %vm204, %v267, 0
      %274 = vmatpush.bf16.xpose.msra.mxu0 0
      %275 = vmatpush.bf16.xpose.msra.mxu0 0
      %276 = vmatpush.bf16.xpose.msra.mxu0 0
      %277 = vmatpush.bf16.xpose.msra.mxu0 0
      %278 = vmatpush.bf16.xpose.msra.mxu0 0
      %279 = vmatpush.bf16.xpose.msra.mxu0 0
      %280 = vmatpush.bf16.xpose.msra.mxu0 0
      %281 = vmatpush.bf16.xpose.msra.mxu0 %v272
      %282 = vmatmul.bf16.gmra.mxu0 %v269
      %v283 = vpop.f32.mrf.mxu0
      %v284 = vadd.f32 0.0, %v283
      %v285 = vpop.f32.mrf.mxu0
      %286 = vdwg.mxu0
      %v287 = vmul.f32 %v284, 0.25
      %v288 = vsel %vm225, %v287, -inf
      %289 = vmax.xlane.f32.xlu0 %v288
      %v290 = vpop.xlane.xlu0 %289
      %v291 = vsub.f32 %v287, %v290
      %v292 = vmul.f32 %v291, 1.442695
      %v293 = vpow.pop %v292
      %v294 = vsel %vm225, %v293, 0.0
      %295 = vadd.xlane.f32.xlu0 %v294
      %v296 = vpop.xlane.xlu0 %295
      %v297 = vrcp.pop %v296
      %v298 = vmul.f32 %v293, %v297
      %v299 = vpack.c.bf16 %v298, %v298
      %v301 = vunpack.c.l.b16 %v203
      %v302 = vpack.c.b16 %v301, %v301
      %303 = vrot.lane.b32.xlu0 %v302, 112
      %v304 = vpop.permute.xlu0 %303
      %v306 = vsel %vm225, %v299, 0
      %v309 = vsel %vm241, %v304, 0
      %311 = vmatpush.bf16.msra.mxu0 0
      %312 = vmatpush.bf16.msra.mxu0 0
      %313 = vmatpush.bf16.msra.mxu0 0
      %314 = vmatpush.bf16.msra.mxu0 0
      %315 = vmatpush.bf16.msra.mxu0 0
      %316 = vmatpush.bf16.msra.mxu0 0
      %317 = vmatpush.bf16.msra.mxu0 0
      %318 = vmatpush.bf16.msra.mxu0 %v309
      %319 = vmatmul.bf16.gmra.mxu0 %v306
      %v320 = vpop.f32.mrf.mxu0
      %v321 = vadd.f32 0.0, %v320
      %v322 = vpop.f32.mrf.mxu0
      %323 = vdwg.mxu0
      %324 = vrot.lane.b32.xlu0 %v260, 96
      %v325 = vpop.permute.xlu0 %324
      %326 = vrot.lane.b32.xlu0 %v265, 96
      %v327 = vpop.permute.xlu0 %326
      %v329 = vsel %vm204, %v325, 0
      %v332 = vsel %vm204, %v327, 0
      %334 = vmatpush.bf16.xpose.msra.mxu0 0
      %335 = vmatpush.bf16.xpose.msra.mxu0 0
      %336 = vmatpush.bf16.xpose.msra.mxu0 0
      %337 = vmatpush.bf16.xpose.msra.mxu0 0
      %338 = vmatpush.bf16.xpose.msra.mxu0 0
      %339 = vmatpush.bf16.xpose.msra.mxu0 0
      %340 = vmatpush.bf16.xpose.msra.mxu0 0
      %341 = vmatpush.bf16.xpose.msra.mxu0 %v332
      %342 = vmatmul.bf16.gmra.mxu0 %v329
      %v343 = vpop.f32.mrf.mxu0
      %v344 = vadd.f32 0.0, %v343
      %v345 = vpop.f32.mrf.mxu0
      %346 = vdwg.mxu0
      %v347 = vmul.f32 %v344, 0.25
      %v348 = vsel %vm225, %v347, -inf
      %349 = vmax.xlane.f32.xlu0 %v348
      %v350 = vpop.xlane.xlu0 %349
      %v351 = vsub.f32 %v347, %v350
      %v352 = vmul.f32 %v351, 1.442695
      %v353 = vpow.pop %v352
      %v354 = vsel %vm225, %v353, 0.0
      %355 = vadd.xlane.f32.xlu0 %v354
      %v356 = vpop.xlane.xlu0 %355
      %v357 = vrcp.pop %v356
      %v358 = vmul.f32 %v353, %v357
      %v359 = vpack.c.bf16 %v358, %v358
      %360 = vrot.lane.b32.xlu0 %v302, 96
      %v361 = vpop.permute.xlu0 %360
      %v363 = vsel %vm225, %v359, 0
      %v366 = vsel %vm241, %v361, 0
      %368 = vmatpush.bf16.msra.mxu0 0
      %369 = vmatpush.bf16.msra.mxu0 0
      %370 = vmatpush.bf16.msra.mxu0 0
      %371 = vmatpush.bf16.msra.mxu0 0
      %372 = vmatpush.bf16.msra.mxu0 0
      %373 = vmatpush.bf16.msra.mxu0 0
      %374 = vmatpush.bf16.msra.mxu0 0
      %375 = vmatpush.bf16.msra.mxu0 %v366
      %376 = vmatmul.bf16.gmra.mxu0 %v363
      %v377 = vpop.f32.mrf.mxu0
      %v378 = vadd.f32 0.0, %v377
      %v379 = vpop.f32.mrf.mxu0
      %380 = vdwg.mxu0
      %381 = vrot.lane.b32.xlu0 %v260, 80
      %v382 = vpop.permute.xlu0 %381
      %383 = vrot.lane.b32.xlu0 %v265, 80
      %v384 = vpop.permute.xlu0 %383
      %v386 = vsel %vm204, %v382, 0
      %v389 = vsel %vm204, %v384, 0
      %391 = vmatpush.bf16.xpose.msra.mxu0 0
      %392 = vmatpush.bf16.xpose.msra.mxu0 0
      %393 = vmatpush.bf16.xpose.msra.mxu0 0
      %394 = vmatpush.bf16.xpose.msra.mxu0 0
      %395 = vmatpush.bf16.xpose.msra.mxu0 0
      %396 = vmatpush.bf16.xpose.msra.mxu0 0
      %397 = vmatpush.bf16.xpose.msra.mxu0 0
      %398 = vmatpush.bf16.xpose.msra.mxu0 %v389
      %399 = vmatmul.bf16.gmra.mxu0 %v386
      %v400 = vpop.f32.mrf.mxu0
      %v401 = vadd.f32 0.0, %v400
      %v402 = vpop.f32.mrf.mxu0
      %403 = vdwg.mxu0
      %v404 = vmul.f32 %v401, 0.25
      %v405 = vsel %vm225, %v404, -inf
      %406 = vmax.xlane.f32.xlu0 %v405
      %v407 = vpop.xlane.xlu0 %406
      %v408 = vsub.f32 %v404, %v407
      %v409 = vmul.f32 %v408, 1.442695
      %v410 = vpow.pop %v409
      %v411 = vsel %vm225, %v410, 0.0
      %412 = vadd.xlane.f32.xlu0 %v411
      %v413 = vpop.xlane.xlu0 %412
      %v414 = vrcp.pop %v413
      %v415 = vmul.f32 %v410, %v414
      %v416 = vpack.c.bf16 %v415, %v415
      %417 = vrot.lane.b32.xlu0 %v302, 80
      %v418 = vpop.permute.xlu0 %417
      %v420 = vsel %vm225, %v416, 0
      %v423 = vsel %vm241, %v418, 0
      %425 = vmatpush.bf16.msra.mxu0 0
      %426 = vmatpush.bf16.msra.mxu0 0
      %427 = vmatpush.bf16.msra.mxu0 0
      %428 = vmatpush.bf16.msra.mxu0 0
      %429 = vmatpush.bf16.msra.mxu0 0
      %430 = vmatpush.bf16.msra.mxu0 0
      %431 = vmatpush.bf16.msra.mxu0 0
      %432 = vmatpush.bf16.msra.mxu0 %v423
      %433 = vmatmul.bf16.gmra.mxu0 %v420
      %v434 = vpop.f32.mrf.mxu0
      %v435 = vadd.f32 0.0, %v434
      %v436 = vpop.f32.mrf.mxu0
      %437 = vdwg.mxu0
      %438 = vrot.lane.b32.xlu0 %v260, 64
      %v439 = vpop.permute.xlu0 %438
      %440 = vrot.lane.b32.xlu0 %v265, 64
      %v441 = vpop.permute.xlu0 %440
      %v443 = vsel %vm204, %v439, 0
      %v446 = vsel %vm204, %v441, 0
      %448 = vmatpush.bf16.xpose.msra.mxu0 0
      %449 = vmatpush.bf16.xpose.msra.mxu0 0
      %450 = vmatpush.bf16.xpose.msra.mxu0 0
      %451 = vmatpush.bf16.xpose.msra.mxu0 0
      %452 = vmatpush.bf16.xpose.msra.mxu0 0
      %453 = vmatpush.bf16.xpose.msra.mxu0 0
      %454 = vmatpush.bf16.xpose.msra.mxu0 0
      %455 = vmatpush.bf16.xpose.msra.mxu0 %v446
      %456 = vmatmul.bf16.gmra.mxu0 %v443
      %v457 = vpop.f32.mrf.mxu0
      %v458 = vadd.f32 0.0, %v457
      %v459 = vpop.f32.mrf.mxu0
      %460 = vdwg.mxu0
      %v461 = vmul.f32 %v458, 0.25
      %v462 = vsel %vm225, %v461, -inf
      %463 = vmax.xlane.f32.xlu0 %v462
      %v464 = vpop.xlane.xlu0 %463
      %v465 = vsub.f32 %v461, %v464
      %v466 = vmul.f32 %v465, 1.442695
      %v467 = vpow.pop %v466
      %v468 = vsel %vm225, %v467, 0.0
      %469 = vadd.xlane.f32.xlu0 %v468
      %v470 = vpop.xlane.xlu0 %469
      %v471 = vrcp.pop %v470
      %v472 = vmul.f32 %v467, %v471
      %v473 = vpack.c.bf16 %v472, %v472
      %474 = vrot.lane.b32.xlu0 %v302, 64
      %v475 = vpop.permute.xlu0 %474
      %v477 = vsel %vm225, %v473, 0
      %v480 = vsel %vm241, %v475, 0
      %482 = vmatpush.bf16.msra.mxu0 0
      %483 = vmatpush.bf16.msra.mxu0 0
      %484 = vmatpush.bf16.msra.mxu0 0
      %485 = vmatpush.bf16.msra.mxu0 0
      %486 = vmatpush.bf16.msra.mxu0 0
      %487 = vmatpush.bf16.msra.mxu0 0
      %488 = vmatpush.bf16.msra.mxu0 0
      %489 = vmatpush.bf16.msra.mxu0 %v480
      %490 = vmatmul.bf16.gmra.mxu0 %v477
      %v491 = vpop.f32.mrf.mxu0
      %v492 = vadd.f32 0.0, %v491
      %v493 = vpop.f32.mrf.mxu0
      %494 = vdwg.mxu0
      %495 = vrot.lane.b32.xlu0 %v260, 48
      %v496 = vpop.permute.xlu0 %495
      %497 = vrot.lane.b32.xlu0 %v265, 48
      %v498 = vpop.permute.xlu0 %497
      %v500 = vsel %vm204, %v496, 0
      %v503 = vsel %vm204, %v498, 0
      %505 = vmatpush.bf16.xpose.msra.mxu0 0
      %506 = vmatpush.bf16.xpose.msra.mxu0 0
      %507 = vmatpush.bf16.xpose.msra.mxu0 0
      %508 = vmatpush.bf16.xpose.msra.mxu0 0
      %509 = vmatpush.bf16.xpose.msra.mxu0 0
      %510 = vmatpush.bf16.xpose.msra.mxu0 0
      %511 = vmatpush.bf16.xpose.msra.mxu0 0
      %512 = vmatpush.bf16.xpose.msra.mxu0 %v503
      %513 = vmatmul.bf16.gmra.mxu0 %v500
      %v514 = vpop.f32.mrf.mxu0
      %v515 = vadd.f32 0.0, %v514
      %v516 = vpop.f32.mrf.mxu0
      %517 = vdwg.mxu0
      %v518 = vmul.f32 %v515, 0.25
      %v519 = vsel %vm225, %v518, -inf
      %520 = vmax.xlane.f32.xlu0 %v519
      %v521 = vpop.xlane.xlu0 %520
      %v522 = vsub.f32 %v518, %v521
      %v523 = vmul.f32 %v522, 1.442695
      %v524 = vpow.pop %v523
      %v525 = vsel %vm225, %v524, 0.0
      %526 = vadd.xlane.f32.xlu0 %v525
      %v527 = vpop.xlane.xlu0 %526
      %v528 = vrcp.pop %v527
      %v529 = vmul.f32 %v524, %v528
      %v530 = vpack.c.bf16 %v529, %v529
      %531 = vrot.lane.b32.xlu0 %v302, 48
      %v532 = vpop.permute.xlu0 %531
      %v534 = vsel %vm225, %v530, 0
      %v537 = vsel %vm241, %v532, 0
      %539 = vmatpush.bf16.msra.mxu0 0
      %540 = vmatpush.bf16.msra.mxu0 0
      %541 = vmatpush.bf16.msra.mxu0 0
      %542 = vmatpush.bf16.msra.mxu0 0
      %543 = vmatpush.bf16.msra.mxu0 0
      %544 = vmatpush.bf16.msra.mxu0 0
      %545 = vmatpush.bf16.msra.mxu0 0
      %546 = vmatpush.bf16.msra.mxu0 %v537
      %547 = vmatmul.bf16.gmra.mxu0 %v534
      %v548 = vpop.f32.mrf.mxu0
      %v549 = vadd.f32 0.0, %v548
      %v550 = vpop.f32.mrf.mxu0
      %551 = vdwg.mxu0
      %552 = vrot.lane.b32.xlu0 %v260, 32
      %v553 = vpop.permute.xlu0 %552
      %554 = vrot.lane.b32.xlu0 %v265, 32
      %v555 = vpop.permute.xlu0 %554
      %v557 = vsel %vm204, %v553, 0
      %v560 = vsel %vm204, %v555, 0
      %562 = vmatpush.bf16.xpose.msra.mxu0 0
      %563 = vmatpush.bf16.xpose.msra.mxu0 0
      %564 = vmatpush.bf16.xpose.msra.mxu0 0
      %565 = vmatpush.bf16.xpose.msra.mxu0 0
      %566 = vmatpush.bf16.xpose.msra.mxu0 0
      %567 = vmatpush.bf16.xpose.msra.mxu0 0
      %568 = vmatpush.bf16.xpose.msra.mxu0 0
      %569 = vmatpush.bf16.xpose.msra.mxu0 %v560
      %570 = vmatmul.bf16.gmra.mxu0 %v557
      %v571 = vpop.f32.mrf.mxu0
      %v572 = vadd.f32 0.0, %v571
      %v573 = vpop.f32.mrf.mxu0
      %574 = vdwg.mxu0
      %v575 = vmul.f32 %v572, 0.25
      %v576 = vsel %vm225, %v575, -inf
      %577 = vmax.xlane.f32.xlu0 %v576
      %v578 = vpop.xlane.xlu0 %577
      %v579 = vsub.f32 %v575, %v578
      %v580 = vmul.f32 %v579, 1.442695
      %v581 = vpow.pop %v580
      %v582 = vsel %vm225, %v581, 0.0
      %583 = vadd.xlane.f32.xlu0 %v582
      %v584 = vpop.xlane.xlu0 %583
      %v585 = vrcp.pop %v584
      %v586 = vmul.f32 %v581, %v585
      %v587 = vpack.c.bf16 %v586, %v586
      %588 = vrot.lane.b32.xlu0 %v302, 32
      %v589 = vpop.permute.xlu0 %588
      %v591 = vsel %vm225, %v587, 0
      %v594 = vsel %vm241, %v589, 0
      %596 = vmatpush.bf16.msra.mxu0 0
      %597 = vmatpush.bf16.msra.mxu0 0
      %598 = vmatpush.bf16.msra.mxu0 0
      %599 = vmatpush.bf16.msra.mxu0 0
      %600 = vmatpush.bf16.msra.mxu0 0
      %601 = vmatpush.bf16.msra.mxu0 0
      %602 = vmatpush.bf16.msra.mxu0 0
      %603 = vmatpush.bf16.msra.mxu0 %v594
      %604 = vmatmul.bf16.gmra.mxu0 %v591
      %v605 = vpop.f32.mrf.mxu0
      %v606 = vadd.f32 0.0, %v605
      %v607 = vpop.f32.mrf.mxu0
      %608 = vdwg.mxu0
      %609 = vrot.lane.b32.xlu0 %v260, 16
      %v610 = vpop.permute.xlu0 %609
      %611 = vrot.lane.b32.xlu0 %v265, 16
      %v612 = vpop.permute.xlu0 %611
      %v614 = vsel %vm204, %v610, 0
      %v617 = vsel %vm204, %v612, 0
      %619 = vmatpush.bf16.xpose.msra.mxu0 0
      %620 = vmatpush.bf16.xpose.msra.mxu0 0
      %621 = vmatpush.bf16.xpose.msra.mxu0 0
      %622 = vmatpush.bf16.xpose.msra.mxu0 0
      %623 = vmatpush.bf16.xpose.msra.mxu0 0
      %624 = vmatpush.bf16.xpose.msra.mxu0 0
      %625 = vmatpush.bf16.xpose.msra.mxu0 0
      %626 = vmatpush.bf16.xpose.msra.mxu0 %v617
      %627 = vmatmul.bf16.gmra.mxu0 %v614
      %v628 = vpop.f32.mrf.mxu0
      %v629 = vadd.f32 0.0, %v628
      %v630 = vpop.f32.mrf.mxu0
      %631 = vdwg.mxu0
      %v632 = vmul.f32 %v629, 0.25
      %v633 = vsel %vm225, %v632, -inf
      %634 = vmax.xlane.f32.xlu0 %v633
      %v635 = vpop.xlane.xlu0 %634
      %v636 = vsub.f32 %v632, %v635
      %v637 = vmul.f32 %v636, 1.442695
      %v638 = vpow.pop %v637
      %v639 = vsel %vm225, %v638, 0.0
      %640 = vadd.xlane.f32.xlu0 %v639
      %v641 = vpop.xlane.xlu0 %640
      %v642 = vrcp.pop %v641
      %v643 = vmul.f32 %v638, %v642
      %v644 = vpack.c.bf16 %v643, %v643
      %645 = vrot.lane.b32.xlu0 %v302, 16
      %v646 = vpop.permute.xlu0 %645
      %v648 = vsel %vm225, %v644, 0
      %v651 = vsel %vm241, %v646, 0
      %653 = vmatpush.bf16.msra.mxu0 0
      %654 = vmatpush.bf16.msra.mxu0 0
      %655 = vmatpush.bf16.msra.mxu0 0
      %656 = vmatpush.bf16.msra.mxu0 0
      %657 = vmatpush.bf16.msra.mxu0 0
      %658 = vmatpush.bf16.msra.mxu0 0
      %659 = vmatpush.bf16.msra.mxu0 0
      %660 = vmatpush.bf16.msra.mxu0 %v651
      %661 = vmatmul.bf16.gmra.mxu0 %v648
      %v662 = vpop.f32.mrf.mxu0
      %v663 = vadd.f32 0.0, %v662
      %v664 = vpop.f32.mrf.mxu0
      %665 = vdwg.mxu0
      %667 = vrot.lane.b32.xlu0 %v321, 16
      %v668 = vpop.permute.xlu0 %667
      %671 = vrot.lane.b32.xlu0 %v378, 32
      %v672 = vpop.permute.xlu0 %671
      %675 = vrot.lane.b32.xlu0 %v435, 48
      %v676 = vpop.permute.xlu0 %675
      %679 = vrot.lane.b32.xlu0 %v492, 64
      %v680 = vpop.permute.xlu0 %679
      %683 = vrot.lane.b32.xlu0 %v549, 80
      %v684 = vpop.permute.xlu0 %683
      %687 = vrot.lane.b32.xlu0 %v606, 96
      %v688 = vpop.permute.xlu0 %687
      %691 = vrot.lane.b32.xlu0 %v663, 112
      %v692 = vpop.permute.xlu0 %691
      %v694 = vsel %vm204, %v255, %v668
      %vm695 = vcmask 261120
      %v696 = vsel %vm695, %v694, %v672
      %vm697 = vcmask 392192
      %v698 = vsel %vm697, %v696, %v676
      %vm699 = vcmask 523264
      %v700 = vsel %vm699, %v698, %v680
      %vm701 = vcmask 654336
      %v702 = vsel %vm701, %v700, %v684
      %vm703 = vcmask 785408
      %v704 = vsel %vm703, %v702, %v688
      %vm705 = vcmask 916480
      %v706 = vsel %vm705, %v704, %v692
      %v707 = vpack.c.bf16 %v706, %v706
      %708 = vst [vmem:[%s199] sm:$0xf] %v707
      %p709 = scmp.lt.s32.totalorder %s14, 1
      %s710 = scalar_select %p709, %s14, 1
      %s711 = smul.addr %s710, 4
      %s712 = scalar_lea.vmem %s3, %s711
      // Predicated region
      $region33: #{_lambda_.12} parent=31 // pred_check
        %p713 = pneg %p110
      $region34: #{_lambda_.12} parent=31 // pred_check_branch
        %715 = sbr.rel (%p713) target = $region36
      $region35: #{_lambda_.12} parent=31 // pred_region
        _
      $region36: #{_lambda_.12} parent=31 // pred_fallthru
        _
    $region32: #{_lambda_.12} parent=5 // pred_fallthru
      _
    %p716 = scmp.le.s32.totalorder 2, %s9
    // Predicated region
    $region37: #{_lambda_.12} parent=5 // pred_check
      %p717 = pneg %p716
    $region38: #{_lambda_.12} parent=5 // pred_check_branch
      %719 = sbr.rel (%p717) target = $region40
    $region39: #{_lambda_.12} parent=5 // pred_region
      %s720 = ssub.s32 %s9, 2
      // Predicated region
      $region41: #{_lambda_.12} parent=39 // pred_check
        %p721 = pneg %p116
      $region42: #{_lambda_.12} parent=39 // pred_check_branch
        %723 = sbr.rel (%p721) target = $region44
      $region43: #{_lambda_.12} parent=39 // pred_region
        %p724 = scmp.lt.s32.totalorder %s15, 1
        %s725 = scalar_select %p724, %s15, 1
        %s726 = smul.addr %s725, 4
        %s727 = scalar_lea.vmem %s3, %s726
      $region44: #{_lambda_.12} parent=39 // pred_fallthru
        _
    $region40: #{_lambda_.12} parent=5 // pred_fallthru
      _
  $region6: #{_lambda_.12} parent=0 // loop_footer
    %s13 = sadd.s32 1, %s9
  $region7: #{_lambda_.12} parent=0 // loop_footer_branch
    %8 = sbr.rel target = $region3
  $region8: #{_lambda_.12} parent=0 // loop_exit
    _

// kernel: _lambda_.14
$region0: #{_lambda_.14}
  #allocation0 [shape = 'u32[]', space=smem, size = 0x4, offset = 0x4, fixed_abs, tag = 'smem constant byte address 0x4 - core index']
  #allocation1 [shape = 'u32[72,128]{1,0:T(1,128)}', space=vmem, size = 0x9000, scoped, tag = 'internal scratch']
  #allocation2 [shape = 'f32[16,256]{1,0:T(8,128)}', space=vmem, size = 0x4000, scoped, tag = 'scratch operand']
  %s0 = inlined_call_operand.vmem [shape: bf16[16,128], index: 0, kind: input, shape index: {}]
  %s1 = inlined_call_operand.hbm [shape: bf16[128,2048], index: 1, kind: input, shape index: {}]
  %s2 = inlined_call_operand.vmem [shape: f32[1,2048], index: 2, kind: input, shape index: {}]
  %s3 = inlined_call_operand.vmem [shape: bf16[16,2048], index: 3, kind: output, shape index: {}]
  %s4 = sld [smem:[#allocation0]]
  $region91: #{_lambda_.14} parent=0
    _
  %s6 = ssub.s32 1, %s4
  %s7 = scalar_select 0, %s6, %s4
  $region1: #{_lambda_.14} parent=0
    #allocation3 [shape = 'u8[131072]{0}', space=vmem, size = 0x20000, scoped, tag = 'input window, operand 1']
    #allocation4 [shape = 's32[2]{0}', space=sflag, size = 0x8, scoped, tag = 'scoped memory for _lambda_.14']
    #allocation5 [shape = 'u8[16384]{0}', space=vmem, size = 0x4000, scoped, tag = 'output window, operand 0']
    %8 = vsyncpa [#allocation4], 0
    %s9 = scalar_lea.sflag [#allocation4], 1
    %10 = vsyncpa %s9, 0
    loop: start=0, step=1, limit=10
    $region2: #{_lambda_.14} parent=1 // loop_pre_header
      _
    $region3: #{_lambda_.14} parent=1 // loop_header
      %s12 = sphi 0, %s16
      %p13 = scmp.ge.s32.totalorder %s12, 10
      %s19 = sphi 0, %s38
      %s20 = sphi 0, %s34
      %s21 = sphi 0, %s30
      %s22 = sphi 0, %s19
      %s23 = sphi 0, %s20
      %s24 = sphi 0, %s21
      %s25 = sphi 0, %s22
      %s26 = sphi 0, %s23
      %s27 = sphi 0, %s24
      %s43 = sphi 0, %s45
      %s46 = sphi 0, %s43
      %s47 = sphi 0, %s46
      %s63 = sphi 0, %s47
      %s71 = sphi 0, %s73
      %s74 = sphi 0, %s71
      %s75 = sphi 0, %s74
      %s91 = sphi 0, %s75
      %s97 = sphi 0, %s99
      %s100 = sphi 0, %s97
      %s101 = sphi 0, %s100
      %s117 = sphi 0, %s101
      %s125 = sphi 0, %s127
      %s128 = sphi 0, %s125
      %s129 = sphi 0, %s128
      %s145 = sphi 0, %s129
    $region4: #{_lambda_.14} parent=1 // loop_header_branch
      %15 = sbr.rel (%p13) target = $region8
    $region5: #{_lambda_.14} parent=1 // loop_body
      %s17 = ssub.s32 %s12, 1
      %s18 = ssub.s32 %s12, 2
      %s28 = sadd.s32 1, %s21
      %p29 = scmp.ge.s32.totalorder %s28, 1
      %s30 = scalar_select %p29, 0, %s28
      %s31 = sadd.s32 1, %s20
      %s32 = scalar_select %p29, %s31, %s20
      %p33 = scmp.ge.s32.totalorder %s32, 8
      %s34 = scalar_select %p33, 0, %s32
      %s35 = sadd.s32 1, %s19
      %s36 = scalar_select %p33, %s35, %s19
      %p37 = scmp.ge.s32.totalorder %s36, 1
      %s38 = scalar_select %p37, 0, %s36
      %s39 = ssub.s32 %s19, %s38
      %s40 = ssub.s32 %s21, %s30
      %s41 = sor.u32 %s39, %s40
      %p42 = scmp.eq.s32.totalorder %s41, 0
      %s44 = sadd.s32 %s43, 1
      %s45 = scalar_select %p42, %s43, %s44
      %p48 = pneg %p42
      %p49 = scmp.eq.s32.totalorder %s12, 7
      %p50 = por %p48, %p49
      %p51 = scmp.ne.s32.totalorder %s43, %s46
      %p52 = scmp.eq.s32.totalorder %s12, 0
      %p53 = por %p51, %p52
      %p54 = scmp.ne.s32.totalorder %s43, %s46
      %p55 = scmp.eq.s32.totalorder %s17, 7
      %p56 = por %p54, %p55
      %p57 = scmp.ne.s32.totalorder %s46, %s47
      %p58 = scmp.eq.s32.totalorder %s17, 0
      %p59 = por %p57, %p58
      %p60 = scmp.ne.s32.totalorder %s46, %s47
      %p61 = scmp.eq.s32.totalorder %s18, 7
      %p62 = por %p60, %p61
      %p64 = scmp.ne.s32.totalorder %s47, %s63
      %p65 = scmp.eq.s32.totalorder %s18, 0
      %p66 = por %p64, %p65
      %s67 = ssub.s32 %s21, %s30
      %s68 = ssub.s32 %s20, %s34
      %s69 = sor.u32 %s67, %s68
      %p70 = scmp.eq.s32.totalorder %s69, 0
      %s72 = sadd.s32 %s71, 1
      %s73 = scalar_select %p70, %s71, %s72
      %p76 = pneg %p70
      %p77 = scmp.eq.s32.totalorder %s12, 7
      %p78 = por %p76, %p77
      %p79 = scmp.ne.s32.totalorder %s71, %s74
      %p80 = scmp.eq.s32.totalorder %s12, 0
      %p81 = por %p79, %p80
      %p82 = scmp.ne.s32.totalorder %s71, %s74
      %p83 = scmp.eq.s32.totalorder %s17, 7
      %p84 = por %p82, %p83
      %p85 = scmp.ne.s32.totalorder %s74, %s75
      %p86 = scmp.eq.s32.totalorder %s17, 0
      %p87 = por %p85, %p86
      %p88 = scmp.ne.s32.totalorder %s74, %s75
      %p89 = scmp.eq.s32.totalorder %s18, 7
      %p90 = por %p88, %p89
      %p92 = scmp.ne.s32.totalorder %s75, %s91
      %p93 = scmp.eq.s32.totalorder %s18, 0
      %p94 = por %p92, %p93
      %s95 = ssub.s32 %s20, %s34
      %p96 = scmp.eq.s32.totalorder %s95, 0
      %s98 = sadd.s32 %s97, 1
      %s99 = scalar_select %p96, %s97, %s98
      %p102 = pneg %p96
      %p103 = scmp.eq.s32.totalorder %s12, 7
      %p104 = por %p102, %p103
      %p105 = scmp.ne.s32.totalorder %s97, %s100
      %p106 = scmp.eq.s32.totalorder %s12, 0
      %p107 = por %p105, %p106
      %p108 = scmp.ne.s32.totalorder %s97, %s100
      %p109 = scmp.eq.s32.totalorder %s17, 7
      %p110 = por %p108, %p109
      %p111 = scmp.ne.s32.totalorder %s100, %s101
      %p112 = scmp.eq.s32.totalorder %s17, 0
      %p113 = por %p111, %p112
      %p114 = scmp.ne.s32.totalorder %s100, %s101
      %p115 = scmp.eq.s32.totalorder %s18, 7
      %p116 = por %p114, %p115
      %p118 = scmp.ne.s32.totalorder %s101, %s117
      %p119 = scmp.eq.s32.totalorder %s18, 0
      %p120 = por %p118, %p119
      %s121 = ssub.s32 %s19, %s38
      %s122 = ssub.s32 %s20, %s34
      %s123 = sor.u32 %s121, %s122
      %p124 = scmp.eq.s32.totalorder %s123, 0
      %s126 = sadd.s32 %s125, 1
      %s127 = scalar_select %p124, %s125, %s126
      %p130 = pneg %p124
      %p131 = scmp.eq.s32.totalorder %s12, 7
      %p132 = por %p130, %p131
      %p133 = scmp.ne.s32.totalorder %s125, %s128
      %p134 = scmp.eq.s32.totalorder %s12, 0
      %p135 = por %p133, %p134
      %p136 = scmp.ne.s32.totalorder %s125, %s128
      %p137 = scmp.eq.s32.totalorder %s17, 7
      %p138 = por %p136, %p137
      %p139 = scmp.ne.s32.totalorder %s128, %s129
      %p140 = scmp.eq.s32.totalorder %s17, 0
      %p141 = por %p139, %p140
      %p142 = scmp.ne.s32.totalorder %s128, %s129
      %p143 = scmp.eq.s32.totalorder %s18, 7
      %p144 = por %p142, %p143
      %p146 = scmp.ne.s32.totalorder %s129, %s145
      %p147 = scmp.eq.s32.totalorder %s18, 0
      %p148 = por %p146, %p147
      %p149 = scmp.le.s32.totalorder 1, %s12
      %p150 = scmp.lt.s32.totalorder %s12, 9
      %p151 = pnand %p149, %p150
      %p152 = pneg %p151
      // Predicated region
      $region9: #{_lambda_.14} parent=5 // pred_check
        _
      $region10: #{_lambda_.14} parent=5 // pred_check_branch
        %154 = sbr.rel (%p151) target = $region12
      $region11: #{_lambda_.14} parent=5 // pred_region
        %s155 = ssub.s32 %s12, 1
        // Predicated region
        $region13: #{_lambda_.14} parent=11 // pred_check
          %p156 = pneg %p59
        $region14: #{_lambda_.14} parent=11 // pred_check_branch
          %158 = sbr.rel (%p156) target = $region16
        $region15: #{_lambda_.14} parent=11 // pred_region
          %s159 = smul.u32 2, %s22
          %p160 = scmp.lt.s32.totalorder %s159, 1
          %s161 = scalar_select %p160, %s159, 1
          %p162 = scmp.lt.s32.totalorder %s24, 0
          %s163 = scalar_select %p162, %s24, 0
          %s164 = sadd.s32 %s163, %s161
          %s165 = smul.addr %s164, 4
          %s166 = scalar_lea.vmem %s0, %s165
          %s167 = smul.u32 2, %s22
        $region16: #{_lambda_.14} parent=11 // pred_fallthru
          _
      $region12: #{_lambda_.14} parent=5 // pred_fallthru
        _
      %p168 = scmp.lt.s32.totalorder %s12, 8
      // Predicated region
      $region17: #{_lambda_.14} parent=5 // pred_check
        %p169 = pneg %p168
      $region18: #{_lambda_.14} parent=5 // pred_check_branch
        %171 = sbr.rel (%p169) target = $region20
      $region19: #{_lambda_.14} parent=5 // pred_region
        // Predicated region
        $region21: #{_lambda_.14} parent=19 // pred_check
          %p172 = pneg %p81
        $region22: #{_lambda_.14} parent=19 // pred_check_branch
          %174 = sbr.rel (%p172) target = $region24
        $region23: #{_lambda_.14} parent=19 // pred_region
          %s175 = sand.u32 %s71, 1
          %s176 = scalar_lea.sflag [#allocation4], %s175
          %s177 = sand.u32 %s71, 1
          %s178 = smul.addr %s177, 128
          %s179 = scalar_lea.vmem [#allocation3], %s178
          %s180 = smul.u32 16, %s21
          %s181 = smul.u32 2, %s20
          %183 = vsyncadd %s176, 0
          %s184 = smul.addr %s180, 16
          %s185 = sadd.s32 %s181, %s184
          %s186 = smul.addr %s185, 4
          %s187 = scalar_lea.hbm %s1, %s186
          %s188 = sshll.u32 %s187, 4
          %s189 = int_to_ptr.hbm [resolvable:$true] %s188
          %s190 = sshll.u32 %s179, 4
          %s191 = int_to_ptr.vmem [resolvable:$true] %s190
          %196 = dma.hbm_to_vmem [thread:$0]  %s189, 2048, %s191, %s176, 1024, 128, 8
        $region24: #{_lambda_.14} parent=19 // pred_fallthru
          _
        // Predicated region
        $region25: #{_lambda_.14} parent=19 // pred_check
          %p197 = pneg %p107
        $region26: #{_lambda_.14} parent=19 // pred_check_branch
          %199 = sbr.rel (%p197) target = $region28
        $region27: #{_lambda_.14} parent=19 // pred_region
          %s200 = smul.u32 2, %s20
          %p201 = scmp.lt.s32.totalorder %s200, 15
          %s202 = scalar_select %p201, %s200, 15
          %s203 = scalar_lea.vmem %s2, %s202
          %s204 = smul.u32 2, %s20
        $region28: #{_lambda_.14} parent=19 // pred_fallthru
          _
      $region20: #{_lambda_.14} parent=5 // pred_fallthru
        _
      %p205 = scmp.le.s32.totalorder 1, %s12
      %p206 = scmp.lt.s32.totalorder %s12, 9
      %p207 = pnand %p205, %p206
      %p208 = pneg %p207
      // Predicated region
      $region29: #{_lambda_.14} parent=5 // pred_check
        _
      $region30: #{_lambda_.14} parent=5 // pred_check_branch
        %210 = sbr.rel (%p207) target = $region32
      $region31: #{_lambda_.14} parent=5 // pred_region
        %s211 = ssub.s32 %s12, 1
        %s212 = sand.u32 %s74, 1
        %s213 = scalar_lea.sflag [#allocation4], %s212
        %s214 = sand.u32 %s74, 1
        %s215 = smul.addr %s214, 128
        %s216 = scalar_lea.vmem [#allocation3], %s215
        // Predicated region
        $region33: #{_lambda_.14} parent=31 // pred_check
          %p217 = pneg %p87
        $region34: #{_lambda_.14} parent=31 // pred_check_branch
          %219 = sbr.rel (%p217) target = $region36
        $region35: #{_lambda_.14} parent=31 // pred_region
          %221 = dma.done %s213, 2048
        $region36: #{_lambda_.14} parent=31 // pred_fallthru
          _
        %s222 = smul.u32 2, %s22
        %p223 = scmp.lt.s32.totalorder %s222, 1
        %s224 = scalar_select %p223, %s222, 1
        %p225 = scmp.lt.s32.totalorder %s24, 0
        %s226 = scalar_select %p225, %s24, 0
        %s227 = sadd.s32 %s226, %s224
        %s228 = smul.addr %s227, 4
        %s229 = scalar_lea.vmem %s0, %s228
        %p230 = pneg %p59
        %p231 = pneg %p56
        %s232 = sand.u32 %s74, 1
        %s233 = scalar_lea.sflag [#allocation4], %s232
        %s234 = sand.u32 %s74, 1
        %s235 = smul.addr %s234, 128
        %s236 = scalar_lea.vmem [#allocation3], %s235
        %p237 = pneg %p87
        %p238 = pneg %p84
        %s239 = smul.u32 2, %s23
        %p240 = scmp.lt.s32.totalorder %s239, 15
        %s241 = scalar_select %p240, %s239, 15
        %s242 = scalar_lea.vmem %s2, %s241
        %p243 = pneg %p113
        %p244 = pneg %p110
        %p245 = pneg %p141
        %p246 = pneg %p138
        %s247 = sand.u32 %s128, 1
        %s248 = sand.u32 %s128, 1
        %s249 = smul.addr %s248, 16
        %s250 = scalar_lea.vmem [#allocation5], %s249
        %s251 = smul.u32 2, %s22
        %p252 = scmp.lt.s32.totalorder %s251, 1
        %s253 = scalar_select %p252, %s251, 1
        %p254 = scmp.lt.s32.totalorder %s24, 0
        %s255 = scalar_select %p254, %s24, 0
        %s256 = sadd.s32 %s255, %s253
        %s257 = smul.addr %s256, 4
        %s258 = scalar_lea.vmem %s0, %s257
        %s259 = smul.u32 2, %s22
        %s260 = smul.u32 16, %s24
        %s261 = smul.u32 2, %s23
        %s262 = smul.u32 2, %s23
        %p263 = scmp.lt.s32.totalorder %s262, 15
        %s264 = scalar_select %p263, %s262, 15
        %s265 = scalar_lea.vmem %s2, %s264
        %s266 = smul.u32 2, %s23
        %s267 = smul.u32 2, %s22
        %s268 = smul.u32 2, %s23
        %p269 = scmp.eq.s32.totalorder %s24, 0
        // Predicated region
        $region37: #{_lambda_.14} parent=31 // pred_check
          %p270 = pneg %p269
        $region38: #{_lambda_.14} parent=31 // pred_check_branch
          %272 = sbr.rel (%p270) target = $region40
        $region39: #{_lambda_.14} parent=31 // pred_region
          %273 = vst [vmem:[#allocation2] sm:$0xff] 0.0
          %274 = vst [vmem:[#allocation2 + $0x8] sm:$0xff] 0.0
          %275 = vst [vmem:[#allocation2 + $0x10] sm:$0xff] 0.0
          %276 = vst [vmem:[#allocation2 + $0x18] sm:$0xff] 0.0
        $region40: #{_lambda_.14} parent=31 // pred_fallthru
          _
        %v277 = vld [vmem:[#allocation2] sm:$0xff]
        %v278 = vld [vmem:[#allocation2 + $0x8] sm:$0xff]
        %v279 = vld [vmem:[#allocation2 + $0x10] sm:$0xff]
        %v280 = vld [vmem:[#allocation2 + $0x18] sm:$0xff]
        %v281 = vld [vmem:[%s258] sm:$0xf]
        %v282 = vld [vmem:[%s258 + $0x4] sm:$0xf]
        %v283 = vld [vmem:[%s216] sm:$0xff]
        %v284 = vld [vmem:[%s216 + $0x8] sm:$0xff]
        %v285 = vld [vmem:[%s216 + $0x10] sm:$0xff]
        %v286 = vld [vmem:[%s216 + $0x18] sm:$0xff]
        %v287 = vld [vmem:[%s216 + $0x20] sm:$0xff]
        %v288 = vld [vmem:[%s216 + $0x28] sm:$0xff]
        %v289 = vld [vmem:[%s216 + $0x30] sm:$0xff]
        %v290 = vld [vmem:[%s216 + $0x38] sm:$0xff]
        %v291 = vld [vmem:[%s216 + $0x40] sm:$0xff]
        %v292 = vld [vmem:[%s216 + $0x48] sm:$0xff]
        %v293 = vld [vmem:[%s216 + $0x50] sm:$0xff]
        %v294 = vld [vmem:[%s216 + $0x58] sm:$0xff]
        %v295 = vld [vmem:[%s216 + $0x60] sm:$0xff]
        %v296 = vld [vmem:[%s216 + $0x68] sm:$0xff]
        %v297 = vld [vmem:[%s216 + $0x70] sm:$0xff]
        %v298 = vld [vmem:[%s216 + $0x78] sm:$0xff]
        %v301 = vunpack.c.l.b16 %v281
        %v302 = vunpack.c.l.b16 %v282
        %v303 = vpack.c.b16 %v302, %v301
        %v321 = vunpack.c.l.b16 %v283
        %v322 = vunpack.c.h.b16 %v283
        %v323 = vunpack.c.l.b16 %v284
        %v324 = vunpack.c.h.b16 %v284
        %v325 = vunpack.c.l.b16 %v285
        %v326 = vunpack.c.h.b16 %v285
        %v327 = vunpack.c.l.b16 %v286
        %v328 = vunpack.c.h.b16 %v286
        %v329 = vunpack.c.l.b16 %v287
        %v330 = vunpack.c.h.b16 %v287
        %v331 = vunpack.c.l.b16 %v288
        %v332 = vunpack.c.h.b16 %v288
        %v333 = vunpack.c.l.b16 %v289
        %v334 = vunpack.c.h.b16 %v289
        %v335 = vunpack.c.l.b16 %v290
        %v336 = vunpack.c.h.b16 %v290
        %v337 = vunpack.c.l.b16 %v291
        %v338 = vunpack.c.h.b16 %v291
        %v339 = vunpack.c.l.b16 %v292
        %v340 = vunpack.c.h.b16 %v292
        %v341 = vunpack.c.l.b16 %v293
        %v342 = vunpack.c.h.b16 %v293
        %v343 = vunpack.c.l.b16 %v294
        %v344 = vunpack.c.h.b16 %v294
        %v345 = vunpack.c.l.b16 %v295
        %v346 = vunpack.c.h.b16 %v295
        %v347 = vunpack.c.l.b16 %v296
        %v348 = vunpack.c.h.b16 %v296
        %v349 = vunpack.c.l.b16 %v297
        %v350 = vunpack.c.h.b16 %v297
        %v351 = vunpack.c.l.b16 %v298
        %v352 = vunpack.c.h.b16 %v298
        %v353 = vpack.c.b16 %v323, %v321
        %v354 = vpack.c.b16 %v324, %v322
        %v355 = vpack.c.b16 %v327, %v325
        %v356 = vpack.c.b16 %v328, %v326
        %v357 = vpack.c.b16 %v331, %v329
        %v358 = vpack.c.b16 %v332, %v330
        %v359 = vpack.c.b16 %v335, %v333
        %v360 = vpack.c.b16 %v336, %v334
        %v361 = vpack.c.b16 %v339, %v337
        %v362 = vpack.c.b16 %v340, %v338
        %v363 = vpack.c.b16 %v343, %v341
        %v364 = vpack.c.b16 %v344, %v342
        %v365 = vpack.c.b16 %v347, %v345
        %v366 = vpack.c.b16 %v348, %v346
        %v367 = vpack.c.b16 %v351, %v349
        %v368 = vpack.c.b16 %v352, %v350
        %385 = vmatpush.bf16.msra.mxu0 %v367
        %386 = vmatpush.bf16.msra.mxu0 %v365
        %387 = vmatpush.bf16.msra.mxu0 %v363
        %388 = vmatpush.bf16.msra.mxu0 %v361
        %389 = vmatpush.bf16.msra.mxu0 %v359
        %390 = vmatpush.bf16.msra.mxu0 %v357
        %391 = vmatpush.bf16.msra.mxu0 %v355
        %392 = vmatpush.bf16.msra.mxu0 %v353
        %393 = vmatmul.bf16.gmra.mxu0 %v303
        %v394 = vpop.f32.mrf.mxu0
        %v395 = vadd.f32 0.0, %v394
        %v396 = vpop.f32.mrf.mxu0
        %v397 = vadd.f32 0.0, %v396
        %398 = vdwg.mxu0
        %399 = vmatpush.bf16.msra.mxu0 %v368
        %400 = vmatpush.bf16.msra.mxu0 %v366
        %401 = vmatpush.bf16.msra.mxu0 %v364
        %402 = vmatpush.bf16.msra.mxu0 %v362
        %403 = vmatpush.bf16.msra.mxu0 %v360
        %404 = vmatpush.bf16.msra.mxu0 %v358
        %405 = vmatpush.bf16.msra.mxu0 %v356
        %406 = vmatpush.bf16.msra.mxu0 %v354
        %407 = vmatmul.bf16.gmra.mxu0 %v303
        %v408 = vpop.f32.mrf.mxu0
        %v409 = vadd.f32 0.0, %v408
        %v410 = vpop.f32.mrf.mxu0
        %v411 = vadd.f32 0.0, %v410
        %412 = vdwg.mxu0
        %v413 = vadd.f32 %v277, %v395
        %v414 = vadd.f32 %v278, %v409
        %v415 = vadd.f32 %v279, %v397
        %v416 = vadd.f32 %v280, %v411
        %417 = vst [vmem:[#allocation2] sm:$0xff] %v413
        %418 = vst [vmem:[#allocation2 + $0x8] sm:$0xff] %v414
        %419 = vst [vmem:[#allocation2 + $0x10] sm:$0xff] %v415
        %420 = vst [vmem:[#allocation2 + $0x18] sm:$0xff] %v416
        // Predicated region
        $region41: #{_lambda_.14} parent=31 // pred_check
          %p421 = pneg %p269
        $region42: #{_lambda_.14} parent=31 // pred_check_branch
          %423 = sbr.rel (%p421) target = $region44
        $region43: #{_lambda_.14} parent=31 // pred_region
          %v424 = vld [vmem:[#allocation2] sm:$0xff]
          %v425 = vld [vmem:[#allocation2 + $0x8] sm:$0xff]
          %v426 = vld [vmem:[#allocation2 + $0x10] sm:$0xff]
          %v427 = vld [vmem:[#allocation2 + $0x18] sm:$0xff]
          %v428 = vld [vmem:[%s265] sm:$0x3]
          %v430 = vperm.slane %v428, 0
          %v431 = vperm.slane %v428, 1
          %v434 = vadd.f32 %v424, %v430
          %v435 = vadd.f32 %v425, %v431
          %v436 = vadd.f32 %v426, %v430
          %v437 = vadd.f32 %v427, %v431
          %v438 = vmax.f32 %v434, 0.0
          %v439 = vmax.f32 %v435, 0.0
          %v440 = vmax.f32 %v436, 0.0
          %v441 = vmax.f32 %v437, 0.0
          %v442 = vpack.c.bf16 %v439, %v438
          %v443 = vpack.c.bf16 %v441, %v440
          %444 = vst [vmem:[%s250] sm:$0xff] %v442
          %445 = vst [vmem:[%s250 + $0x8] sm:$0xff] %v443
        $region44: #{_lambda_.14} parent=31 // pred_fallthru
          _
        %s446 = sand.u32 %s128, 1
        %s447 = sand.u32 %s128, 1
        %s448 = smul.addr %s447, 16
        %s449 = scalar_lea.vmem [#allocation5], %s448
        // Predicated region
        $region45: #{_lambda_.14} parent=31 // pred_check
          %p450 = pneg %p138
        $region46: #{_lambda_.14} parent=31 // pred_check_branch
          %452 = sbr.rel (%p450) target = $region48
        $region47: #{_lambda_.14} parent=31 // pred_region
          %s453 = smul.u32 2, %s22
          %s454 = smul.u32 2, %s23
          %s455 = smul.addr %s453, 16
          %s456 = sadd.s32 %s454, %s455
          %s457 = smul.addr %s456, 4
          %s458 = scalar_lea.vmem %s3, %s457
          // Predicated region
          $region49: #{_lambda_.14} parent=47 // pred_check
            _
          $region50: #{_lambda_.14} parent=47 // pred_check_branch
            %460 = sbr.rel (0) target = $region52
          $region51: #{_lambda_.14} parent=47 // pred_region
            // Predicated region
            $region53: #{_lambda_.14} parent=51 // pred_check
              _
            $region54: #{_lambda_.14} parent=51 // pred_check_branch
              %462 = sbr.rel (0) target = $region56
            $region55: #{_lambda_.14} parent=51 // pred_region
              // Predicated region
              $region68: #{_lambda_.14} parent=55 // pred_check
                _
              $region69: #{_lambda_.14} parent=55 // pred_check_branch
                %480 = sbr.rel (0) target = $region71
              $region70: #{_lambda_.14} parent=55 // pred_region
                loop: start=0, step=1, limit=1
                $region72: #{_lambda_.14} parent=70 // loop_pre_header
                  _
                $region73: #{_lambda_.14} parent=70 // loop_header
                  %s482 = sphi 0, %s486
                  %p483 = scmp.ge.s32.totalorder %s482, 1
                  %s487 = sphi %s449, %s449
                  %s488 = sphi %s458, %s458
                $region74: #{_lambda_.14} parent=70 // loop_header_branch
                  %485 = sbr.rel (%p483) target = $region78
                $region75: #{_lambda_.14} parent=70 // loop_body
                  %v489 = vld [vmem:[%s487] sm:$0xff]
                  %490 = vst [vmem:[%s488] sm:$0xff] %v489
                  %v491 = vld [vmem:[%s487 + $0x8] sm:$0xff]
                  %492 = vst [vmem:[%s488 + $0x40] sm:$0xff] %v491
                $region76: #{_lambda_.14} parent=70 // loop_footer
                  %s486 = sadd.s32 1, %s482
                $region77: #{_lambda_.14} parent=70 // loop_footer_branch
                  %481 = sbr.rel target = $region73
                $region78: #{_lambda_.14} parent=70 // loop_exit
                  _
              $region71: #{_lambda_.14} parent=55 // pred_fallthru
                _
              // Predicated region
              $region79: #{_lambda_.14} parent=55 // pred_check
                _
              $region80: #{_lambda_.14} parent=55 // pred_check_branch
                %494 = sbr.rel target = $region82
              $region81: #{_lambda_.14} parent=55 // pred_region
                _
              $region82: #{_lambda_.14} parent=55 // pred_fallthru
                _
            $region56: #{_lambda_.14} parent=51 // pred_fallthru
              _
            // Predicated region
            $region57: #{_lambda_.14} parent=51 // pred_check
              _
            $region58: #{_lambda_.14} parent=51 // pred_check_branch
              %464 = sbr.rel target = $region60
            $region59: #{_lambda_.14} parent=51 // pred_region
              %s466 = ssub.s32 256, 1
              loop: start=0, step=1, limit=1
              $region61: #{_lambda_.14} parent=59 // loop_pre_header
                _
              $region62: #{_lambda_.14} parent=59 // loop_header
                %s468 = sphi 0, %s472
                %p469 = scmp.ge.s32.totalorder %s468, 1
                %s473 = sphi %s449, %s449
                %s474 = sphi %s458, %s458
              $region63: #{_lambda_.14} parent=59 // loop_header_branch
                %471 = sbr.rel (%p469) target = $region67
              $region64: #{_lambda_.14} parent=59 // loop_body
                %v475 = vld [vmem:[%s473] sm:%s466]
                %476 = vst [vmem:[%s474] sm:%s466] %v475
                %v477 = vld [vmem:[%s473 + $0x8] sm:%s466]
                %478 = vst [vmem:[%s474 + $0x40] sm:%s466] %v477
              $region65: #{_lambda_.14} parent=59 // loop_footer
                %s472 = sadd.s32 1, %s468
              $region66: #{_lambda_.14} parent=59 // loop_footer_branch
                %467 = sbr.rel target = $region62
              $region67: #{_lambda_.14} parent=59 // loop_exit
                _
            $region60: #{_lambda_.14} parent=51 // pred_fallthru
              _
          $region52: #{_lambda_.14} parent=47 // pred_fallthru
            _
          %495 = vnop
        $region48: #{_lambda_.14} parent=31 // pred_fallthru
          _
      $region32: #{_lambda_.14} parent=5 // pred_fallthru
        _
      %p496 = scmp.le.s32.totalorder 2, %s12
      // Predicated region
      $region83: #{_lambda_.14} parent=5 // pred_check
        %p497 = pneg %p496
      $region84: #{_lambda_.14} parent=5 // pred_check_branch
        %499 = sbr.rel (%p497) target = $region86
      $region85: #{_lambda_.14} parent=5 // pred_region
        %s500 = ssub.s32 %s12, 2
        // Predicated region
        $region87: #{_lambda_.14} parent=85 // pred_check
          %p501 = pneg %p144
        $region88: #{_lambda_.14} parent=85 // pred_check_branch
          %503 = sbr.rel (%p501) target = $region90
        $region89: #{_lambda_.14} parent=85 // pred_region
          %s504 = sand.u32 %s129, 1
          %s505 = sand.u32 %s129, 1
          %s506 = smul.addr %s505, 16
          %s507 = scalar_lea.vmem [#allocation5], %s506
        $region90: #{_lambda_.14} parent=85 // pred_fallthru
          _
      $region86: #{_lambda_.14} parent=5 // pred_fallthru
        _
    $region6: #{_lambda_.14} parent=1 // loop_footer
      %s16 = sadd.s32 1, %s12
    $region7: #{_lambda_.14} parent=1 // loop_footer_branch
      %11 = sbr.rel target = $region3
    $region8: #{_lambda_.14} parent=1 // loop_exit
      _
    %508 = vsyncpa [#allocation4], 1
    %s509 = scalar_lea.sflag [#allocation4], 1
    %510 = vsyncpa %s509, 1

// kernel: _lambda_.21
$region0: #{_lambda_.21}
  #allocation0 [shape = 'u32[]', space=smem, size = 0x4, offset = 0x4, fixed_abs, tag = 'smem constant byte address 0x4 - core index']
  #allocation1 [shape = 'u32[72,128]{1,0:T(1,128)}', space=vmem, size = 0x9000, scoped, tag = 'internal scratch']
  %s0 = inlined_call_operand.vmem [shape: bf16[2,8,128], index: 0, kind: input, shape index: {}]
  %s1 = inlined_call_operand.vmem [shape: bf16[128,128], index: 1, kind: input, shape index: {}]
  %s2 = inlined_call_operand.vmem [shape: f32[1,128], index: 2, kind: input, shape index: {}]
  %s3 = inlined_call_operand.hbm [shape: f32[2,128], index: 3, kind: output, shape index: {}]
  %s4 = sld [smem:[#allocation0]]
  $region22: #{_lambda_.21} parent=0
    _
  %s6 = ssub.s32 1, %s4
  %s7 = scalar_select 0, %s6, %s4
  $region1: #{_lambda_.21} parent=0
    #allocation2 [shape = 'u8[1024]{0}', space=vmem, size = 0x400, scoped, tag = 'output window, operand 0, single buffered']
    #allocation3 [shape = 's32[1]{0}', space=sflag, size = 0x4, scoped, tag = 'scoped memory for _lambda_.21']
    %8 = vsyncpa [#allocation3], 0
    // Predicated region
    $region2: #{_lambda_.21} parent=1 // pred_check
      _
    $region3: #{_lambda_.21} parent=1 // pred_check_branch
      %10 = sbr.rel (0) target = $region5
    $region4: #{_lambda_.21} parent=1 // pred_region
      _
    $region5: #{_lambda_.21} parent=1 // pred_fallthru
      _
    // Predicated region
    $region6: #{_lambda_.21} parent=1 // pred_check
      _
    $region7: #{_lambda_.21} parent=1 // pred_check_branch
      %12 = sbr.rel (0) target = $region9
    $region8: #{_lambda_.21} parent=1 // pred_region
      _
    $region9: #{_lambda_.21} parent=1 // pred_fallthru
      _
    // Predicated region
    $region10: #{_lambda_.21} parent=1 // pred_check
      _
    $region11: #{_lambda_.21} parent=1 // pred_check_branch
      %14 = sbr.rel (0) target = $region13
    $region12: #{_lambda_.21} parent=1 // pred_region
      _
    $region13: #{_lambda_.21} parent=1 // pred_fallthru
      _
    %v15 = vld [vmem:[%s0] sm:$0xf]
    %v16 = vld [vmem:[%s0 + $0x4] sm:$0xf]
    %v17 = vunpack.c.l.bf16 %v15
    %v18 = vunpack.c.l.bf16 %v16
    %v19 = vrot.slane %v17, 4
    %v20 = vadd.f32 %v17, %v19
    %v21 = vrot.slane %v20, 2
    %v22 = vadd.f32 %v20, %v21
    %v23 = vrot.slane %v22, 1
    %v24 = vadd.f32 %v22, %v23
    %v25 = vrot.slane %v18, 4
    %v26 = vadd.f32 %v18, %v25
    %v27 = vrot.slane %v26, 2
    %v28 = vadd.f32 %v26, %v27
    %v29 = vrot.slane %v28, 1
    %v30 = vadd.f32 %v28, %v29
    %v31 = vmul.f32 %v24, 0.125
    %v32 = vmul.f32 %v30, 0.125
    %v33 = vpack.c.bf16 %v31, %v31
    %v34 = vpack.c.bf16 %v32, %v32
    %v35 = vld [vmem:[%s1] sm:$0xf]
    %v36 = vld [vmem:[%s1 + $0x4] sm:$0xf]
    %v37 = vld [vmem:[%s1 + $0x8] sm:$0xf]
    %v38 = vld [vmem:[%s1 + $0xc] sm:$0xf]
    %v39 = vld [vmem:[%s1 + $0x10] sm:$0xf]
    %v40 = vld [vmem:[%s1 + $0x14] sm:$0xf]
    %v41 = vld [vmem:[%s1 + $0x18] sm:$0xf]
    %v42 = vld [vmem:[%s1 + $0x1c] sm:$0xf]
    %v43 = vld [vmem:[%s1 + $0x20] sm:$0xf]
    %v44 = vld [vmem:[%s1 + $0x24] sm:$0xf]
    %v45 = vld [vmem:[%s1 + $0x28] sm:$0xf]
    %v46 = vld [vmem:[%s1 + $0x2c] sm:$0xf]
    %v47 = vld [vmem:[%s1 + $0x30] sm:$0xf]
    %v48 = vld [vmem:[%s1 + $0x34] sm:$0xf]
    %v49 = vld [vmem:[%s1 + $0x38] sm:$0xf]
    %v50 = vld [vmem:[%s1 + $0x3c] sm:$0xf]
    %v51 = vld [vmem:[%s2] sm:$0x1]
    %v53 = vperm.slane %v51, 0
    %v57 = vunpack.c.l.b16 %v33
    %v58 = vunpack.c.l.b16 %v34
    %vm59 = vcmask 1041409
    %v60 = vsel %vm59, %v58, %v57
    %v61 = vpack.c.b16 %v60, %v60
    %v79 = vunpack.c.l.b16 %v35
    %v80 = vunpack.c.l.b16 %v36
    %v81 = vunpack.c.l.b16 %v37
    %v82 = vunpack.c.l.b16 %v38
    %v83 = vunpack.c.l.b16 %v39
    %v84 = vunpack.c.l.b16 %v40
    %v85 = vunpack.c.l.b16 %v41
    %v86 = vunpack.c.l.b16 %v42
    %v87 = vunpack.c.l.b16 %v43
    %v88 = vunpack.c.l.b16 %v44
    %v89 = vunpack.c.l.b16 %v45
    %v90 = vunpack.c.l.b16 %v46
    %v91 = vunpack.c.l.b16 %v47
    %v92 = vunpack.c.l.b16 %v48
    %v93 = vunpack.c.l.b16 %v49
    %v94 = vunpack.c.l.b16 %v50
    %v95 = vpack.c.b16 %v80, %v79
    %v96 = vpack.c.b16 %v82, %v81
    %v97 = vpack.c.b16 %v84, %v83
    %v98 = vpack.c.b16 %v86, %v85
    %v99 = vpack.c.b16 %v88, %v87
    %v100 = vpack.c.b16 %v90, %v89
    %v101 = vpack.c.b16 %v92, %v91
    %v102 = vpack.c.b16 %v94, %v93
    %111 = vmatpush.bf16.msra.mxu0 %v102
    %112 = vmatpush.bf16.msra.mxu0 %v101
    %113 = vmatpush.bf16.msra.mxu0 %v100
    %114 = vmatpush.bf16.msra.mxu0 %v99
    %115 = vmatpush.bf16.msra.mxu0 %v98
    %116 = vmatpush.bf16.msra.mxu0 %v97
    %117 = vmatpush.bf16.msra.mxu0 %v96
    %118 = vmatpush.bf16.msra.mxu0 %v95
    %119 = vmatmul.bf16.gmra.mxu0 %v61
    %v120 = vpop.f32.mrf.mxu0
    %v121 = vadd.f32 %v53, %v120
    %v122 = vpop.f32.mrf.mxu0
    %123 = vdwg.mxu0
    %124 = vst [vmem:[#allocation2] sm:$0x3] %v121
    // Predicated region
    $region14: #{_lambda_.21} parent=1 // pred_check
      _
    $region15: #{_lambda_.21} parent=1 // pred_check_branch
      %126 = sbr.rel (0) target = $region17
    $region16: #{_lambda_.21} parent=1 // pred_region
      %128 = vsyncadd [#allocation3], 0
      %s130 = sshll.u32 [#allocation2], 4
      %s131 = int_to_ptr.vmem [resolvable:$true] %s130
      %s132 = sshll.u32 %s3, 4
      %s133 = int_to_ptr.hbm [resolvable:$true] %s132
      %135 = dma.vmem_to_hbm [thread:$0]  %s131, 32, %s133, [#allocation3]
    $region17: #{_lambda_.21} parent=1 // pred_fallthru
      _
    // Predicated region
    $region18: #{_lambda_.21} parent=1 // pred_check
      _
    $region19: #{_lambda_.21} parent=1 // pred_check_branch
      %137 = sbr.rel (0) target = $region21
    $region20: #{_lambda_.21} parent=1 // pred_region
      %139 = dma.done [#allocation3], 32
    $region21: #{_lambda_.21} parent=1 // pred_fallthru
      _
    %140 = vsyncpa [#allocation3], 1

// kernel: _lambda_.15
$region0: #{_lambda_.15}
  #allocation0 [shape = 'u32[]', space=smem, size = 0x4, offset = 0x4, fixed_abs, tag = 'smem constant byte address 0x4 - core index']
  #allocation1 [shape = 'u32[72,128]{1,0:T(1,128)}', space=vmem, size = 0x9000, scoped, tag = 'internal scratch']
  #allocation2 [shape = 'f32[8,128]{1,0:T(8,128)}', space=vmem, size = 0x1000, scoped, tag = 'scratch operand']
  %s0 = inlined_call_operand.vmem [shape: bf16[16,2048], index: 0, kind: input, shape index: {}]
  %s1 = inlined_call_operand.hbm [shape: bf16[2048,128], index: 1, kind: input, shape index: {}]
  %s2 = inlined_call_operand.vmem [shape: f32[1,128], index: 2, kind: input, shape index: {}]
  %s3 = inlined_call_operand.vmem [shape: bf16[16,128], index: 3, kind: input, shape index: {}]
  %s4 = inlined_call_operand.vmem [shape: f32[1,128], index: 4, kind: input, shape index: {}]
  %s5 = inlined_call_operand.vmem [shape: f32[1,128], index: 5, kind: input, shape index: {}]
  %s6 = inlined_call_operand.vmem [shape: bf16[16,128], index: 6, kind: output, shape index: {}]
  %s7 = sld [smem:[#allocation0]]
  $region69: #{_lambda_.15} parent=0
    _
  %s9 = ssub.s32 1, %s7
  %s10 = scalar_select 0, %s9, %s7
  $region1: #{_lambda_.15} parent=0
    #allocation3 [shape = 'u8[131072]{0}', space=vmem, size = 0x20000, scoped, tag = 'input window, operand 1']
    #allocation4 [shape = 's32[2]{0}', space=sflag, size = 0x8, scoped, tag = 'scoped memory for _lambda_.15']
    %11 = vsyncpa [#allocation4], 0
    %s12 = scalar_lea.sflag [#allocation4], 1
    %13 = vsyncpa %s12, 0
    loop: start=0, step=1, limit=18
    $region2: #{_lambda_.15} parent=1 // loop_pre_header
      _
    $region3: #{_lambda_.15} parent=1 // loop_header
      %s15 = sphi 0, %s19
      %p16 = scmp.ge.s32.totalorder %s15, 18
      %s22 = sphi 0, %s34
      %s23 = sphi 0, %s30
      %s24 = sphi 0, %s22
      %s25 = sphi 0, %s23
      %s26 = sphi 0, %s24
      %s27 = sphi 0, %s25
      %s39 = sphi 0, %s41
      %s42 = sphi 0, %s39
      %s43 = sphi 0, %s42
      %s59 = sphi 0, %s43
      %s65 = sphi 0, %s67
      %s68 = sphi 0, %s65
      %s69 = sphi 0, %s68
      %s85 = sphi 0, %s69
      %s89 = sphi 0, %s89
      %s91 = sphi 0, %s89
      %s92 = sphi 0, %s91
      %s106 = sphi 0, %s92
      %s112 = sphi 0, %s114
      %s115 = sphi 0, %s112
      %s116 = sphi 0, %s115
      %s132 = sphi 0, %s116
      %s136 = sphi 0, %s136
      %s138 = sphi 0, %s136
      %s139 = sphi 0, %s138
      %s153 = sphi 0, %s139
      %s157 = sphi 0, %s157
      %s159 = sphi 0, %s157
      %s160 = sphi 0, %s159
      %s174 = sphi 0, %s160
      %s180 = sphi 0, %s182
      %s183 = sphi 0, %s180
      %s184 = sphi 0, %s183
      %s200 = sphi 0, %s184
    $region4: #{_lambda_.15} parent=1 // loop_header_branch
      %18 = sbr.rel (%p16) target = $region8
    $region5: #{_lambda_.15} parent=1 // loop_body
      %s20 = ssub.s32 %s15, 1
      %s21 = ssub.s32 %s15, 2
      %s28 = sadd.s32 1, %s23
      %p29 = scmp.ge.s32.totalorder %s28, 8
      %s30 = scalar_select %p29, 0, %s28
      %s31 = sadd.s32 1, %s22
      %s32 = scalar_select %p29, %s31, %s22
      %p33 = scmp.ge.s32.totalorder %s32, 2
      %s34 = scalar_select %p33, 0, %s32
      %s35 = ssub.s32 %s22, %s34
      %s36 = ssub.s32 %s23, %s30
      %s37 = sor.u32 %s35, %s36
      %p38 = scmp.eq.s32.totalorder %s37, 0
      %s40 = sadd.s32 %s39, 1
      %s41 = scalar_select %p38, %s39, %s40
      %p44 = pneg %p38
      %p45 = scmp.eq.s32.totalorder %s15, 15
      %p46 = por %p44, %p45
      %p47 = scmp.ne.s32.totalorder %s39, %s42
      %p48 = scmp.eq.s32.totalorder %s15, 0
      %p49 = por %p47, %p48
      %p50 = scmp.ne.s32.totalorder %s39, %s42
      %p51 = scmp.eq.s32.totalorder %s20, 15
      %p52 = por %p50, %p51
      %p53 = scmp.ne.s32.totalorder %s42, %s43
      %p54 = scmp.eq.s32.totalorder %s20, 0
      %p55 = por %p53, %p54
      %p56 = scmp.ne.s32.totalorder %s42, %s43
      %p57 = scmp.eq.s32.totalorder %s21, 15
      %p58 = por %p56, %p57
      %p60 = scmp.ne.s32.totalorder %s43, %s59
      %p61 = scmp.eq.s32.totalorder %s21, 0
      %p62 = por %p60, %p61
      %s63 = ssub.s32 %s23, %s30
      %p64 = scmp.eq.s32.totalorder %s63, 0
      %s66 = sadd.s32 %s65, 1
      %s67 = scalar_select %p64, %s65, %s66
      %p70 = pneg %p64
      %p71 = scmp.eq.s32.totalorder %s15, 15
      %p72 = por %p70, %p71
      %p73 = scmp.ne.s32.totalorder %s65, %s68
      %p74 = scmp.eq.s32.totalorder %s15, 0
      %p75 = por %p73, %p74
      %p76 = scmp.ne.s32.totalorder %s65, %s68
      %p77 = scmp.eq.s32.totalorder %s20, 15
      %p78 = por %p76, %p77
      %p79 = scmp.ne.s32.totalorder %s68, %s69
      %p80 = scmp.eq.s32.totalorder %s20, 0
      %p81 = por %p79, %p80
      %p82 = scmp.ne.s32.totalorder %s68, %s69
      %p83 = scmp.eq.s32.totalorder %s21, 15
      %p84 = por %p82, %p83
      %p86 = scmp.ne.s32.totalorder %s69, %s85
      %p87 = scmp.eq.s32.totalorder %s21, 0
      %p88 = por %p86, %p87
      %s90 = sadd.s32 %s89, 1
      %p93 = scmp.eq.s32.totalorder %s15, 15
      %p94 = scmp.ne.s32.totalorder %s89, %s91
      %p95 = scmp.eq.s32.totalorder %s15, 0
      %p96 = por %p94, %p95
      %p97 = scmp.ne.s32.totalorder %s89, %s91
      %p98 = scmp.eq.s32.totalorder %s20, 15
      %p99 = por %p97, %p98
      %p100 = scmp.ne.s32.totalorder %s91, %s92
      %p101 = scmp.eq.s32.totalorder %s20, 0
      %p102 = por %p100, %p101
      %p103 = scmp.ne.s32.totalorder %s91, %s92
      %p104 = scmp.eq.s32.totalorder %s21, 15
      %p105 = por %p103, %p104
      %p107 = scmp.ne.s32.totalorder %s92, %s106
      %p108 = scmp.eq.s32.totalorder %s21, 0
      %p109 = por %p107, %p108
      %s110 = ssub.s32 %s22, %s34
      %p111 = scmp.eq.s32.totalorder %s110, 0
      %s113 = sadd.s32 %s112, 1
      %s114 = scalar_select %p111, %s112, %s113
      %p117 = pneg %p111
      %p118 = scmp.eq.s32.totalorder %s15, 15
      %p119 = por %p117, %p118
      %p120 = scmp.ne.s32.totalorder %s112, %s115
      %p121 = scmp.eq.s32.totalorder %s15, 0
      %p122 = por %p120, %p121
      %p123 = scmp.ne.s32.totalorder %s112, %s115
      %p124 = scmp.eq.s32.totalorder %s20, 15
      %p125 = por %p123, %p124
      %p126 = scmp.ne.s32.totalorder %s115, %s116
      %p127 = scmp.eq.s32.totalorder %s20, 0
      %p128 = por %p126, %p127
      %p129 = scmp.ne.s32.totalorder %s115, %s116
      %p130 = scmp.eq.s32.totalorder %s21, 15
      %p131 = por %p129, %p130
      %p133 = scmp.ne.s32.totalorder %s116, %s132
      %p134 = scmp.eq.s32.totalorder %s21, 0
      %p135 = por %p133, %p134
      %s137 = sadd.s32 %s136, 1
      %p140 = scmp.eq.s32.totalorder %s15, 15
      %p141 = scmp.ne.s32.totalorder %s136, %s138
      %p142 = scmp.eq.s32.totalorder %s15, 0
      %p143 = por %p141, %p142
      %p144 = scmp.ne.s32.totalorder %s136, %s138
      %p145 = scmp.eq.s32.totalorder %s20, 15
      %p146 = por %p144, %p145
      %p147 = scmp.ne.s32.totalorder %s138, %s139
      %p148 = scmp.eq.s32.totalorder %s20, 0
      %p149 = por %p147, %p148
      %p150 = scmp.ne.s32.totalorder %s138, %s139
      %p151 = scmp.eq.s32.totalorder %s21, 15
      %p152 = por %p150, %p151
      %p154 = scmp.ne.s32.totalorder %s139, %s153
      %p155 = scmp.eq.s32.totalorder %s21, 0
      %p156 = por %p154, %p155
      %s158 = sadd.s32 %s157, 1
      %p161 = scmp.eq.s32.totalorder %s15, 15
      %p162 = scmp.ne.s32.totalorder %s157, %s159
      %p163 = scmp.eq.s32.totalorder %s15, 0
      %p164 = por %p162, %p163
      %p165 = scmp.ne.s32.totalorder %s157, %s159
      %p166 = scmp.eq.s32.totalorder %s20, 15
      %p167 = por %p165, %p166
      %p168 = scmp.ne.s32.totalorder %s159, %s160
      %p169 = scmp.eq.s32.totalorder %s20, 0
      %p170 = por %p168, %p169
      %p171 = scmp.ne.s32.totalorder %s159, %s160
      %p172 = scmp.eq.s32.totalorder %s21, 15
      %p173 = por %p171, %p172
      %p175 = scmp.ne.s32.totalorder %s160, %s174
      %p176 = scmp.eq.s32.totalorder %s21, 0
      %p177 = por %p175, %p176
      %s178 = ssub.s32 %s22, %s34
      %p179 = scmp.eq.s32.totalorder %s178, 0
      %s181 = sadd.s32 %s180, 1
      %s182 = scalar_select %p179, %s180, %s181
      %p185 = pneg %p179
      %p186 = scmp.eq.s32.totalorder %s15, 15
      %p187 = por %p185, %p186
      %p188 = scmp.ne.s32.totalorder %s180, %s183
      %p189 = scmp.eq.s32.totalorder %s15, 0
      %p190 = por %p188, %p189
      %p191 = scmp.ne.s32.totalorder %s180, %s183
      %p192 = scmp.eq.s32.totalorder %s20, 15
      %p193 = por %p191, %p192
      %p194 = scmp.ne.s32.totalorder %s183, %s184
      %p195 = scmp.eq.s32.totalorder %s20, 0
      %p196 = por %p194, %p195
      %p197 = scmp.ne.s32.totalorder %s183, %s184
      %p198 = scmp.eq.s32.totalorder %s21, 15
      %p199 = por %p197, %p198
      %p201 = scmp.ne.s32.totalorder %s184, %s200
      %p202 = scmp.eq.s32.totalorder %s21, 0
      %p203 = por %p201, %p202
      %p204 = scmp.le.s32.totalorder 1, %s15
      %p205 = scmp.lt.s32.totalorder %s15, 17
      %p206 = pnand %p204, %p205
      %p207 = pneg %p206
      // Predicated region
      $region9: #{_lambda_.15} parent=5 // pred_check
        _
      $region10: #{_lambda_.15} parent=5 // pred_check_branch
        %209 = sbr.rel (%p206) target = $region12
      $region11: #{_lambda_.15} parent=5 // pred_region
        %s210 = ssub.s32 %s15, 1
        // Predicated region
        $region13: #{_lambda_.15} parent=11 // pred_check
          %p211 = pneg %p102
        $region14: #{_lambda_.15} parent=11 // pred_check_branch
          %213 = sbr.rel (%p211) target = $region16
        $region15: #{_lambda_.15} parent=11 // pred_region
          _
        $region16: #{_lambda_.15} parent=11 // pred_fallthru
          _
        // Predicated region
        $region17: #{_lambda_.15} parent=11 // pred_check
          %p214 = pneg %p149
        $region18: #{_lambda_.15} parent=11 // pred_check_branch
          %216 = sbr.rel (%p214) target = $region20
        $region19: #{_lambda_.15} parent=11 // pred_region
          _
        $region20: #{_lambda_.15} parent=11 // pred_fallthru
          _
        // Predicated region
        $region21: #{_lambda_.15} parent=11 // pred_check
          %p217 = pneg %p170
        $region22: #{_lambda_.15} parent=11 // pred_check_branch
          %219 = sbr.rel (%p217) target = $region24
        $region23: #{_lambda_.15} parent=11 // pred_region
          _
        $region24: #{_lambda_.15} parent=11 // pred_fallthru
          _
      $region12: #{_lambda_.15} parent=5 // pred_fallthru
        _
      %p220 = scmp.lt.s32.totalorder %s15, 16
      // Predicated region
      $region25: #{_lambda_.15} parent=5 // pred_check
        %p221 = pneg %p220
      $region26: #{_lambda_.15} parent=5 // pred_check_branch
        %223 = sbr.rel (%p221) target = $region28
      $region27: #{_lambda_.15} parent=5 // pred_region
        // Predicated region
        $region29: #{_lambda_.15} parent=27 // pred_check
          %p224 = pneg %p49
        $region30: #{_lambda_.15} parent=27 // pred_check_branch
          %226 = sbr.rel (%p224) target = $region32
        $region31: #{_lambda_.15} parent=27 // pred_region
          %s227 = smul.u32 2, %s23
          %p228 = scmp.lt.s32.totalorder %s22, 1
          %s229 = scalar_select %p228, %s22, 1
          %p230 = scmp.lt.s32.totalorder %s227, 15
          %s231 = scalar_select %p230, %s227, 15
          %s232 = smul.addr %s229, 16
          %s233 = sadd.s32 %s231, %s232
          %s234 = smul.addr %s233, 4
          %s235 = scalar_lea.vmem %s0, %s234
          %s236 = smul.u32 2, %s23
        $region32: #{_lambda_.15} parent=27 // pred_fallthru
          _
        // Predicated region
        $region33: #{_lambda_.15} parent=27 // pred_check
          %p237 = pneg %p75
        $region34: #{_lambda_.15} parent=27 // pred_check_branch
          %239 = sbr.rel (%p237) target = $region36
        $region35: #{_lambda_.15} parent=27 // pred_region
          %s240 = sand.u32 %s65, 1
          %s241 = scalar_lea.sflag [#allocation4], %s240
          %s242 = sand.u32 %s65, 1
          %s243 = smul.addr %s242, 128
          %s244 = scalar_lea.vmem [#allocation3], %s243
          %s245 = smul.u32 32, %s23
          %247 = vsyncadd %s241, 0
          %s248 = smul.addr %s245, 4
          %s249 = scalar_lea.hbm %s1, %s248
          %s250 = sshll.u32 %s249, 4
          %s251 = int_to_ptr.hbm [resolvable:$true] %s250
          %s252 = sshll.u32 %s244, 4
          %s253 = int_to_ptr.vmem [resolvable:$true] %s252
          %258 = dma.hbm_to_vmem [thread:$0]  %s251, 2048, %s253, %s241, 64, 64, 4
        $region36: #{_lambda_.15} parent=27 // pred_fallthru
          _
        // Predicated region
        $region37: #{_lambda_.15} parent=27 // pred_check
          %p259 = pneg %p122
        $region38: #{_lambda_.15} parent=27 // pred_check_branch
          %261 = sbr.rel (%p259) target = $region40
        $region39: #{_lambda_.15} parent=27 // pred_region
          %p262 = scmp.lt.s32.totalorder %s22, 1
          %s263 = scalar_select %p262, %s22, 1
          %s264 = smul.addr %s263, 4
          %s265 = scalar_lea.vmem %s3, %s264
        $region40: #{_lambda_.15} parent=27 // pred_fallthru
          _
      $region28: #{_lambda_.15} parent=5 // pred_fallthru
        _
      %p266 = scmp.le.s32.totalorder 1, %s15
      %p267 = scmp.lt.s32.totalorder %s15, 17
      %p268 = pnand %p266, %p267
      %p269 = pneg %p268
      // Predicated region
      $region41: #{_lambda_.15} parent=5 // pred_check
        _
      $region42: #{_lambda_.15} parent=5 // pred_check_branch
        %271 = sbr.rel (%p268) target = $region44
      $region43: #{_lambda_.15} parent=5 // pred_region
        %s272 = ssub.s32 %s15, 1
        %s273 = sand.u32 %s68, 1
        %s274 = scalar_lea.sflag [#allocation4], %s273
        %s275 = sand.u32 %s68, 1
        %s276 = smul.addr %s275, 128
        %s277 = scalar_lea.vmem [#allocation3], %s276
        // Predicated region
        $region45: #{_lambda_.15} parent=43 // pred_check
          %p278 = pneg %p81
        $region46: #{_lambda_.15} parent=43 // pred_check_branch
          %280 = sbr.rel (%p278) target = $region48
        $region47: #{_lambda_.15} parent=43 // pred_region
          %282 = dma.done %s274, 2048
        $region48: #{_lambda_.15} parent=43 // pred_fallthru
          _
        %s283 = smul.u32 2, %s25
        %p284 = scmp.lt.s32.totalorder %s24, 1
        %s285 = scalar_select %p284, %s24, 1
        %p286 = scmp.lt.s32.totalorder %s283, 15
        %s287 = scalar_select %p286, %s283, 15
        %s288 = smul.addr %s285, 16
        %s289 = sadd.s32 %s287, %s288
        %s290 = smul.addr %s289, 4
        %s291 = scalar_lea.vmem %s0, %s290
        %p292 = pneg %p55
        %p293 = pneg %p52
        %s294 = sand.u32 %s68, 1
        %s295 = scalar_lea.sflag [#allocation4], %s294
        %s296 = sand.u32 %s68, 1
        %s297 = smul.addr %s296, 128
        %s298 = scalar_lea.vmem [#allocation3], %s297
        %p299 = pneg %p81
        %p300 = pneg %p78
        %p301 = pneg %p102
        %p302 = pneg %p99
        %p303 = scmp.lt.s32.totalorder %s24, 1
        %s304 = scalar_select %p303, %s24, 1
        %s305 = smul.addr %s304, 4
        %s306 = scalar_lea.vmem %s3, %s305
        %p307 = pneg %p128
        %p308 = pneg %p125
        %p309 = pneg %p149
        %p310 = pneg %p146
        %p311 = pneg %p170
        %p312 = pneg %p167
        %p313 = pneg %p196
        %p314 = pneg %p193
        %p315 = scmp.lt.s32.totalorder %s24, 1
        %s316 = scalar_select %p315, %s24, 1
        %s317 = smul.addr %s316, 4
        %s318 = scalar_lea.vmem %s6, %s317
        %s319 = smul.u32 2, %s25
        %p320 = scmp.lt.s32.totalorder %s24, 1
        %s321 = scalar_select %p320, %s24, 1
        %p322 = scmp.lt.s32.totalorder %s319, 15
        %s323 = scalar_select %p322, %s319, 15
        %s324 = smul.addr %s321, 16
        %s325 = sadd.s32 %s323, %s324
        %s326 = smul.addr %s325, 4
        %s327 = scalar_lea.vmem %s0, %s326
        %s328 = smul.u32 2, %s25
        %s329 = smul.u32 32, %s25
        %p330 = scmp.lt.s32.totalorder %s24, 1
        %s331 = scalar_select %p330, %s24, 1
        %s332 = smul.addr %s331, 4
        %s333 = scalar_lea.vmem %s3, %s332
        %p334 = scmp.lt.s32.totalorder %s24, 1
        %s335 = scalar_select %p334, %s24, 1
        %s336 = smul.addr %s335, 4
        %s337 = scalar_lea.vmem %s6, %s336
        %p338 = scmp.eq.s32.totalorder %s25, 0
        // Predicated region
        $region49: #{_lambda_.15} parent=43 // pred_check
          %p339 = pneg %p338
        $region50: #{_lambda_.15} parent=43 // pred_check_branch
          %341 = sbr.rel (%p339) target = $region52
        $region51: #{_lambda_.15} parent=43 // pred_region
          %342 = vst [vmem:[#allocation2] sm:$0xff] 0.0
        $region52: #{_lambda_.15} parent=43 // pred_fallthru
          _
        %v343 = vld [vmem:[#allocation2] sm:$0xff]
        %v344 = vld [vmem:[%s327] sm:$0xff]
        %v345 = vld [vmem:[%s277] sm:$0xf]
        %v346 = vld [vmem:[%s277 + $0x4] sm:$0xf]
        %v347 = vld [vmem:[%s277 + $0x8] sm:$0xf]
        %v348 = vld [vmem:[%s277 + $0xc] sm:$0xf]
        %v349 = vld [vmem:[%s277 + $0x10] sm:$0xf]
        %v350 = vld [vmem:[%s277 + $0x14] sm:$0xf]
        %v351 = vld [vmem:[%s277 + $0x18] sm:$0xf]
        %v352 = vld [vmem:[%s277 + $0x1c] sm:$0xf]
        %v353 = vld [vmem:[%s277 + $0x20] sm:$0xf]
        %v354 = vld [vmem:[%s277 + $0x24] sm:$0xf]
        %v355 = vld [vmem:[%s277 + $0x28] sm:$0xf]
        %v356 = vld [vmem:[%s277 + $0x2c] sm:$0xf]
        %v357 = vld [vmem:[%s277 + $0x30] sm:$0xf]
        %v358 = vld [vmem:[%s277 + $0x34] sm:$0xf]
        %v359 = vld [vmem:[%s277 + $0x38] sm:$0xf]
        %v360 = vld [vmem:[%s277 + $0x3c] sm:$0xf]
        %v361 = vld [vmem:[%s277 + $0x40] sm:$0xf]
        %v362 = vld [vmem:[%s277 + $0x44] sm:$0xf]
        %v363 = vld [vmem:[%s277 + $0x48] sm:$0xf]
        %v364 = vld [vmem:[%s277 + $0x4c] sm:$0xf]
        %v365 = vld [vmem:[%s277 + $0x50] sm:$0xf]
        %v366 = vld [vmem:[%s277 + $0x54] sm:$0xf]
        %v367 = vld [vmem:[%s277 + $0x58] sm:$0xf]
        %v368 = vld [vmem:[%s277 + $0x5c] sm:$0xf]
        %v369 = vld [vmem:[%s277 + $0x60] sm:$0xf]
        %v370 = vld [vmem:[%s277 + $0x64] sm:$0xf]
        %v371 = vld [vmem:[%s277 + $0x68] sm:$0xf]
        %v372 = vld [vmem:[%s277 + $0x6c] sm:$0xf]
        %v373 = vld [vmem:[%s277 + $0x70] sm:$0xf]
        %v374 = vld [vmem:[%s277 + $0x74] sm:$0xf]
        %v375 = vld [vmem:[%s277 + $0x78] sm:$0xf]
        %v376 = vld [vmem:[%s277 + $0x7c] sm:$0xf]
        %v378 = vunpack.c.l.b16 %v344
        %v379 = vunpack.c.h.b16 %v344
        %v380 = vpack.c.b16 %v378, %v378
        %v381 = vpack.c.b16 %v379, %v379
        %v416 = vunpack.c.l.b16 %v345
        %v417 = vunpack.c.l.b16 %v346
        %v418 = vunpack.c.l.b16 %v347
        %v419 = vunpack.c.l.b16 %v348
        %v420 = vunpack.c.l.b16 %v349
        %v421 = vunpack.c.l.b16 %v350
        %v422 = vunpack.c.l.b16 %v351
        %v423 = vunpack.c.l.b16 %v352
        %v424 = vunpack.c.l.b16 %v353
        %v425 = vunpack.c.l.b16 %v354
        %v426 = vunpack.c.l.b16 %v355
        %v427 = vunpack.c.l.b16 %v356
        %v428 = vunpack.c.l.b16 %v357
        %v429 = vunpack.c.l.b16 %v358
        %v430 = vunpack.c.l.b16 %v359
        %v431 = vunpack.c.l.b16 %v360
        %v432 = vunpack.c.l.b16 %v361
        %v433 = vunpack.c.l.b16 %v362
        %v434 = vunpack.c.l.b16 %v363
        %v435 = vunpack.c.l.b16 %v364
        %v436 = vunpack.c.l.b16 %v365
        %v437 = vunpack.c.l.b16 %v366
        %v438 = vunpack.c.l.b16 %v367
        %v439 = vunpack.c.l.b16 %v368
        %v440 = vunpack.c.l.b16 %v369
        %v441 = vunpack.c.l.b16 %v370
        %v442 = vunpack.c.l.b16 %v371
        %v443 = vunpack.c.l.b16 %v372
        %v444 = vunpack.c.l.b16 %v373
        %v445 = vunpack.c.l.b16 %v374
        %v446 = vunpack.c.l.b16 %v375
        %v447 = vunpack.c.l.b16 %v376
        %v448 = vpack.c.b16 %v417, %v416
        %v449 = vpack.c.b16 %v419, %v418
        %v450 = vpack.c.b16 %v421, %v420
        %v451 = vpack.c.b16 %v423, %v422
        %v452 = vpack.c.b16 %v425, %v424
        %v453 = vpack.c.b16 %v427, %v426
        %v454 = vpack.c.b16 %v429, %v428
        %v455 = vpack.c.b16 %v431, %v430
        %v456 = vpack.c.b16 %v433, %v432
        %v457 = vpack.c.b16 %v435, %v434
        %v458 = vpack.c.b16 %v437, %v436
        %v459 = vpack.c.b16 %v439, %v438
        %v460 = vpack.c.b16 %v441, %v440
        %v461 = vpack.c.b16 %v443, %v442
        %v462 = vpack.c.b16 %v445, %v444
        %v463 = vpack.c.b16 %v447, %v446
        %480 = vmatpush.bf16.msra.mxu0 %v455
        %481 = vmatpush.bf16.msra.mxu0 %v454
        %482 = vmatpush.bf16.msra.mxu0 %v453
        %483 = vmatpush.bf16.msra.mxu0 %v452
        %484 = vmatpush.bf16.msra.mxu0 %v451
        %485 = vmatpush.bf16.msra.mxu0 %v450
        %486 = vmatpush.bf16.msra.mxu0 %v449
        %487 = vmatpush.bf16.msra.mxu0 %v448
        %488 = vmatmul.bf16.gmra.mxu0 %v380
        %v489 = vpop.f32.mrf.mxu0
        %v490 = vadd.f32 0.0, %v489
        %v491 = vpop.f32.mrf.mxu0
        %492 = vdwg.mxu0
        %493 = vmatpush.bf16.msra.mxu0 %v463
        %494 = vmatpush.bf16.msra.mxu0 %v462
        %495 = vmatpush.bf16.msra.mxu0 %v461
        %496 = vmatpush.bf16.msra.mxu0 %v460
        %497 = vmatpush.bf16.msra.mxu0 %v459
        %498 = vmatpush.bf16.msra.mxu0 %v458
        %499 = vmatpush.bf16.msra.mxu0 %v457
        %500 = vmatpush.bf16.msra.mxu0 %v456
        %501 = vmatmul.bf16.gmra.mxu0 %v381
        %v502 = vpop.f32.mrf.mxu0
        %v503 = vadd.f32 %v490, %v502
        %v504 = vpop.f32.mrf.mxu0
        %505 = vdwg.mxu0
        %v506 = vadd.f32 %v343, %v503
        %507 = vst [vmem:[#allocation2] sm:$0xff] %v506
        %p508 = scmp.eq.s32.totalorder %s25, 7
        // Predicated region
        $region53: #{_lambda_.15} parent=43 // pred_check
          %p509 = pneg %p508
        $region54: #{_lambda_.15} parent=43 // pred_check_branch
          %511 = sbr.rel (%p509) target = $region56
        $region55: #{_lambda_.15} parent=43 // pred_region
          %v512 = vld [vmem:[#allocation2] sm:$0xff]
          %v513 = vld [vmem:[%s2] sm:$0x1]
          %v515 = vperm.slane %v513, 0
          %v517 = vadd.f32 %v512, %v515
          %v518 = vld [vmem:[%s333] sm:$0xf]
          %v519 = vunpack.c.l.bf16 %v518
          %v520 = vadd.f32 %v517, %v519
          %521 = vadd.xlane.f32.xlu0 %v520
          %v522 = vpop.xlane.xlu0 %521
          %v523 = vrcp.pop 128.0
          %v524 = vmul.f32 128.0, %v523
          %v525 = vsub.f32 1.0, %v524
          %v526 = vmul.f32 %v523, %v525
          %v527 = vadd.f32 %v523, %v526
          %vm528 = vweird.f32 %v523
          %v529 = vsel %vm528, %v523, %v527
          %v530 = vmul.f32 %v522, %v529
          %v531 = vsub.f32 %v520, %v530
          %v532 = vmul.f32 %v531, %v531
          %533 = vadd.xlane.f32.xlu0 %v532
          %v534 = vpop.xlane.xlu0 %533
          %v535 = vmul.f32 %v534, %v529
          %v536 = vadd.f32 %v535, 1e-05
          %v537 = vrsqrt.pop %v536
          %v538 = vmul.f32 %v537, %v536
          %v539 = vmul.f32 %v538, %v537
          %v540 = vmul.f32 0.5, %v539
          %v541 = vsub.f32 1.5, %v540
          %v542 = vmul.f32 %v537, %v541
          %vm543 = vweird.f32 %v536
          %vm544 = vweird.f32 %v537
          %vm545 = vmor %vm543, %vm544
          %v546 = vsel %vm545, %v537, %v542
          %v547 = vmul.f32 %v531, %v546
          %v548 = vld [vmem:[%s4] sm:$0x1]
          %v550 = vperm.slane %v548, 0
          %v552 = vmul.f32 %v547, %v550
          %v553 = vld [vmem:[%s5] sm:$0x1]
          %v555 = vperm.slane %v553, 0
          %v557 = vadd.f32 %v552, %v555
          %v558 = vpack.c.bf16 %v557, %v557
          %559 = vst [vmem:[%s337] sm:$0xf] %v558
        $region56: #{_lambda_.15} parent=43 // pred_fallthru
          _
        %p560 = scmp.lt.s32.totalorder %s24, 1
        %s561 = scalar_select %p560, %s24, 1
        %s562 = smul.addr %s561, 4
        %s563 = scalar_lea.vmem %s6, %s562
        // Predicated region
        $region57: #{_lambda_.15} parent=43 // pred_check
          %p564 = pneg %p193
        $region58: #{_lambda_.15} parent=43 // pred_check_branch
          %566 = sbr.rel (%p564) target = $region60
        $region59: #{_lambda_.15} parent=43 // pred_region
          _
        $region60: #{_lambda_.15} parent=43 // pred_fallthru
          _
      $region44: #{_lambda_.15} parent=5 // pred_fallthru
        _
      %p567 = scmp.le.s32.totalorder 2, %s15
      // Predicated region
      $region61: #{_lambda_.15} parent=5 // pred_check
        %p568 = pneg %p567
      $region62: #{_lambda_.15} parent=5 // pred_check_branch
        %570 = sbr.rel (%p568) target = $region64
      $region63: #{_lambda_.15} parent=5 // pred_region
        %s571 = ssub.s32 %s15, 2
        // Predicated region
        $region65: #{_lambda_.15} parent=63 // pred_check
          %p572 = pneg %p199
        $region66: #{_lambda_.15} parent=63 // pred_check_branch
          %574 = sbr.rel (%p572) target = $region68
        $region67: #{_lambda_.15} parent=63 // pred_region
          %p575 = scmp.lt.s32.totalorder %s26, 1
          %s576 = scalar_select %p575, %s26, 1
          %s577 = smul.addr %s576, 4
          %s578 = scalar_lea.vmem %s6, %s577
        $region68: #{_lambda_.15} parent=63 // pred_fallthru
          _
      $region64: #{_lambda_.15} parent=5 // pred_fallthru
        _
    $region6: #{_lambda_.15} parent=1 // loop_footer
      %s19 = sadd.s32 1, %s15
    $region7: #{_lambda_.15} parent=1 // loop_footer_branch
      %14 = sbr.rel target = $region3
    $region8: #{_lambda_.15} parent=1 // loop_exit
      _
    %579 = vsyncpa [#allocation4], 1
    %s580 = scalar_lea.sflag [#allocation4], 1
    %581 = vsyncpa %s580, 1

</llo_original>
